<compile_context>
chip_gen: v5e
topology: v5e:2x2
jax: 0.10.0
libtpu: 0.0.40
codegen_flags: <defaults>
</compile_context>

<pallas_src>
import functools

import jax
import jax.numpy as jnp
from jax.experimental import pallas as pl
from jax.experimental.pallas import tpu as pltpu

# ----------------------------- configuration --------------------------------
LATENT_SIZE = 29
D_IN = LATENT_SIZE + 3          # 32
HIDDEN = [64, 64, 64, 64]
LATENT_IN = (2,)                # concat the full input at layer 2
N_POINTS = 8192                 # example batch (4 grid steps at TILE_N=2048)

DESIRED_TILE_N = 4096           # big-tile target (VMEM is a non-issue)
MIN_TILE_N = 256


def decoder_dims():
    """Mirror Decoder.__init__ / get_layer_dims for the config above."""
    dims = [D_IN] + HIDDEN + [1]
    layer_io = []
    for layer in range(len(dims) - 1):
        in_dim = dims[layer]
        if layer + 1 in LATENT_IN:
            out_dim = dims[layer + 1] - dims[0]
        else:
            out_dim = dims[layer + 1]
        layer_io.append((in_dim, out_dim))
    return layer_io


# ------------------------------ parameters ----------------------------------
def init_params(key):
    """Deterministic PyTorch-Linear-style init, torch (out, in) layout.

    weight_norm: W = g * v / ||v||_2(dim=1); at init g = ||v|| -> W == v.
    """
    params = []
    for (in_dim, out_dim) in decoder_dims():
        key, kw, kb = jax.random.split(key, 3)
        bound = 1.0 / jnp.sqrt(jnp.float32(in_dim))
        v = jax.random.uniform(kw, (out_dim, in_dim), jnp.float32, -bound, bound)
        b = jax.random.uniform(kb, (out_dim,), jnp.float32, -bound, bound)
        params.append((v, b))
    return params


def pack_params(params):
    """Pack the 5 (W, b) pairs into two slabs.

    Weight slab  W[4, 128, 64]  (bf16, zero padded), torch (out, in) layout:
      [0, 0:64 , 0:32] W0    (64,32)   \  stacked: one (128,32) matmul vs x^T
      [0, 64:128,0:32] W2_x  (64,32)   /  (columns of W2 that multiply input_)
      [1, 0:32 , :   ] W1    (32,64)
      [2, 0:64 , 0:32] W2_h  (64,32)      (columns of W2 that multiply h)
      [3, 0:64 , :   ] W3    (64,64)
    Bias slab  B[6, 64, 1]  (f32), column vectors (transposed orientation):
      [0..3] b0..b3, [4,0,0] b4, [5,:,0] W4 (final 64->1 projection kept f32).
    """
    (w0, b0), (w1, b1), (w2, b2), (w3, b3), (w4, b4) = params

    W = jnp.zeros((4, 128, 64), jnp.float32)
    W = W.at[0, 0:64, 0:D_IN].set(w0)             # layer-0 weight
    W = W.at[0, 64:128, 0:D_IN].set(w2[:, 32:])   # layer-2 columns hitting input_
    W = W.at[1, 0:32, :].set(w1)                  # (32, 64)
    W = W.at[2, 0:64, 0:32].set(w2[:, :32])       # layer-2 columns hitting h
    W = W.at[3, 0:64, :].set(w3)                  # (64, 64)

    B = jnp.zeros((6, 64, 1), jnp.float32)
    B = B.at[0, :, 0].set(b0)
    B = B.at[1, 0:32, 0].set(b1)
    B = B.at[2, :, 0].set(b2)
    B = B.at[3, :, 0].set(b3)
    B = B.at[4, 0, 0].set(b4[0])
    B = B.at[5, :, 0].set(w4[0, :])               # W4 stays f32 (VPU path)

    return W.astype(jnp.bfloat16), B


# -------------------------------- kernel ------------------------------------
def decoder_kernel(xt_ref, w_ref, b_ref, out_ref):
    # Transposed orientation: activations are (features, TILE_N) so every
    # intermediate and the output are lane-dense (points live on lanes).
    xt = xt_ref[...]                              # (32, TN) bf16, pre-transposed

    w0x = w_ref[0, :, 0:D_IN]                     # (128, 32) bf16: [W0; W2_x]
    w1 = w_ref[1, 0:32, :]                        # (32, 64)
    w2h = w_ref[2, 0:64, 0:32]                    # (64, 32)
    w3 = w_ref[3, 0:64, :]                        # (64, 64)

    b0 = b_ref[0]                                 # (64, 1) f32
    b1 = b_ref[1, 0:32, :]                        # (32, 1)
    b2 = b_ref[2]                                 # (64, 1)
    b3 = b_ref[3]                                 # (64, 1)
    b4 = b_ref[4, 0:1, :]                         # (1, 1)
    w4 = b_ref[5]                                 # (64, 1) f32 final projection

    # fused layer-0 / layer-2-x matmul: (128,32) @ (32,TN) -> (128, TN) f32
    hx = jnp.dot(w0x, xt, preferred_element_type=jnp.float32)
    h = jnp.maximum(hx[0:64, :] + b0, 0.0).astype(jnp.bfloat16)   # layer-0 out
    x2 = hx[64:128, :]                            # layer-2 x contribution (f32)

    # layer 1: (32,64) @ (64,TN) -> (32, TN)
    h = jnp.dot(w1, h, preferred_element_type=jnp.float32) + b1
    h = jnp.maximum(h, 0.0).astype(jnp.bfloat16)

    # layer 2 (latent_in): cat([h, input_]) realized as W2_h@h + W2_x@x
    h = jnp.dot(w2h, h, preferred_element_type=jnp.float32) + x2 + b2
    h = jnp.maximum(h, 0.0).astype(jnp.bfloat16)  # (64, TN)

    # layer 3: (64,64) @ (64,TN) -> (64, TN)
    h = jnp.dot(w3, h, preferred_element_type=jnp.float32) + b3
    h = jnp.maximum(h, 0.0)                       # f32

    # layer 4: 64 -> 1 on the VPU/XLU (multiply + sublane reduce, skip the MXU)
    y = jnp.sum(h * w4, axis=0, keepdims=True) + b4               # (1, TN)
    out_ref[...] = jnp.tanh(y)                    # EUP


# ------------------------------- wrapper -------------------------------------
def _pick_tile_n(n):
    """Occupancy-aware tile: as large as possible but keep >=~4 grid steps
    (>=2 pipelined steps per TensorCore on v7x) once n is large enough."""
    quarter = -(-n // 4)                          # cdiv(n, 4)
    tile = max(MIN_TILE_N, min(DESIRED_TILE_N, quarter))
    return ((tile + 127) // 128) * 128            # round up to lane multiple


@functools.partial(jax.jit, static_argnames=("tile_n",))
def _decoder_forward_impl(x, w_packed, b_packed, tile_n):
    n, d_in = x.shape
    n_pad = ((n + tile_n - 1) // tile_n) * tile_n

    # One fused XLA pass over x: cast -> transpose -> pad along the lane dim.
    # Kernel consumes x^T (features on sublanes, points on lanes).
    xt = jnp.pad(x.astype(jnp.bfloat16).T, ((0, 0), (0, n_pad - n)))

    grid = (n_pad // tile_n,)

    out = pl.pallas_call(
        decoder_kernel,
        out_shape=jax.ShapeDtypeStruct((1, n_pad), jnp.float32),
        grid=grid,
        in_specs=[
            # pre-transposed points tile: lane-dense x operand
            pl.BlockSpec((D_IN, tile_n), lambda i: (0, i)),
            # packed parameter slabs: constant index_map -> one DMA each,
            # re-fetch across grid steps is skipped by the pipeline.
            pl.BlockSpec(w_packed.shape, lambda i: (0, 0, 0)),
            pl.BlockSpec(b_packed.shape, lambda i: (0, 0, 0)),
        ],
        # lane-dense output block (1, tile_n): unmasked vector stores
        out_specs=pl.BlockSpec((1, tile_n), lambda i: (0, i)),
        compiler_params=pltpu.CompilerParams(
            dimension_semantics=("parallel",)),
    )(xt, w_packed, b_packed)

    # (1, n_pad) -> (n, 1); the reshape is layout-preserving (free).
    return out.reshape(n_pad, 1)[:n]


def decoder_forward(x, w_packed, b_packed):
    n, d_in = x.shape
    assert d_in == D_IN
    return _decoder_forward_impl(x, w_packed, b_packed, _pick_tile_n(n))


# ---------------------------- pure-JAX reference -----------------------------
def decoder_ref(x, params):
    """Reference with the kernel's dtype policy: bf16 MXU operands / f32
    accumulate on layers 0-3, full f32 on the final 64->1 projection."""
    x_in = x
    h = x
    n_layers = len(params)
    for layer_idx, (w, b) in enumerate(params):
        if layer_idx in LATENT_IN:
            h = jnp.concatenate([h, x_in], axis=1)
        if layer_idx < n_layers - 1:
            h = jnp.dot(h.astype(jnp.bfloat16), w.T.astype(jnp.bfloat16),
                        preferred_element_type=jnp.float32) + b
            h = jnp.maximum(h, 0.0)
        else:
            h = jnp.dot(h, w.T) + b
    return jnp.tanh(h)


# --------------------------------- main --------------------------------------
if __name__ == "__main__":
    key = jax.random.PRNGKey(0)
    key, k_in = jax.random.split(key)

    params = init_params(key)
    w_packed, b_packed = pack_params(params)

    # input_: [N, latent_size + 3] (last 3 columns play the role of xyz)
    x = jax.random.normal(k_in, (N_POINTS, D_IN), jnp.float32)

    out = jax.block_until_ready(decoder_forward(x, w_packed, b_packed))
    ref = decoder_ref(x, params)
    assert out.shape == (N_POINTS, 1)
    err = float(jnp.max(jnp.abs(out - ref)))
    assert err < 1e-2, f"max abs err = {err}"

    # ragged batch -> exercises the padding path (small tile, 2 grid steps)
    x2 = jax.random.normal(jax.random.PRNGKey(1), (300, D_IN), jnp.float32)
    out2 = jax.block_until_ready(decoder_forward(x2, w_packed, b_packed))
    ref2 = decoder_ref(x2, params)
    assert out2.shape == (300, 1)
    err2 = float(jnp.max(jnp.abs(out2 - ref2)))
    assert err2 < 1e-2, f"max abs err (ragged) = {err2}"

    print("KERNEL_OK")
</pallas_src>

<mosaic_0001>
module attributes {stable_mosaic.version = 11 : i64} {
  func.func @decoder_kernel(%arg0: i32, %arg1: memref<32x2048xbf16, #tpu.memory_space<vmem>>, %arg2: memref<4x128x64xbf16, #tpu.memory_space<vmem>>, %arg3: memref<6x64x1xf32, #tpu.memory_space<vmem>>, %arg4: memref<1x2048xf32, #tpu.memory_space<vmem>>) attributes {dimension_semantics = [#tpu.dimension_semantics<parallel>], iteration_bounds = array<i64: 4>, scalar_prefetch = 0 : i64, scratch_operands = 0 : i64, tpu.core_type = #tpu.core_type<tc>, window_params = [{transform_indices = @transform_0, window_bounds = array<i64: 32, 2048>}, {pipeline_mode = #tpu.pipeline_mode<synchronous>, transform_indices = @transform_1, window_bounds = array<i64: 4, 128, 64>}, {pipeline_mode = #tpu.pipeline_mode<synchronous>, transform_indices = @transform_2, window_bounds = array<i64: 6, 64, 1>}, {transform_indices = @transform_3, window_bounds = array<i64: 1, 2048>}]} {
    %c0 = arith.constant 0 : index
    %c0_0 = arith.constant 0 : index
    %0 = vector.load %arg1[%c0, %c0_0] : memref<32x2048xbf16, #tpu.memory_space<vmem>>, vector<32x2048xbf16>
    %c0_1 = arith.constant 0 : index
    %c0_2 = arith.constant 0 : index
    %c0_3 = arith.constant 0 : index
    %1 = vector.load %arg2[%c0_1, %c0_2, %c0_3] : memref<4x128x64xbf16, #tpu.memory_space<vmem>>, vector<1x128x32xbf16>
    %2 = vector.shape_cast %1 : vector<1x128x32xbf16> to vector<128x32xbf16>
    %c1 = arith.constant 1 : index
    %c0_4 = arith.constant 0 : index
    %c0_5 = arith.constant 0 : index
    %3 = vector.load %arg2[%c1, %c0_4, %c0_5] : memref<4x128x64xbf16, #tpu.memory_space<vmem>>, vector<1x32x64xbf16>
    %4 = vector.shape_cast %3 : vector<1x32x64xbf16> to vector<32x64xbf16>
    %c2 = arith.constant 2 : index
    %c0_6 = arith.constant 0 : index
    %c0_7 = arith.constant 0 : index
    %5 = vector.load %arg2[%c2, %c0_6, %c0_7] : memref<4x128x64xbf16, #tpu.memory_space<vmem>>, vector<1x64x32xbf16>
    %6 = vector.shape_cast %5 : vector<1x64x32xbf16> to vector<64x32xbf16>
    %c3 = arith.constant 3 : index
    %c0_8 = arith.constant 0 : index
    %c0_9 = arith.constant 0 : index
    %7 = vector.load %arg2[%c3, %c0_8, %c0_9] : memref<4x128x64xbf16, #tpu.memory_space<vmem>>, vector<1x64x64xbf16>
    %8 = vector.shape_cast %7 : vector<1x64x64xbf16> to vector<64x64xbf16>
    %c0_10 = arith.constant 0 : index
    %c0_11 = arith.constant 0 : index
    %c0_12 = arith.constant 0 : index
    %9 = vector.load %arg3[%c0_10, %c0_11, %c0_12] : memref<6x64x1xf32, #tpu.memory_space<vmem>>, vector<1x64x1xf32>
    %10 = vector.shape_cast %9 : vector<1x64x1xf32> to vector<64x1xf32>
    %c1_13 = arith.constant 1 : index
    %c0_14 = arith.constant 0 : index
    %c0_15 = arith.constant 0 : index
    %11 = vector.load %arg3[%c1_13, %c0_14, %c0_15] : memref<6x64x1xf32, #tpu.memory_space<vmem>>, vector<1x32x1xf32>
    %12 = vector.shape_cast %11 : vector<1x32x1xf32> to vector<32x1xf32>
    %c2_16 = arith.constant 2 : index
    %c0_17 = arith.constant 0 : index
    %c0_18 = arith.constant 0 : index
    %13 = vector.load %arg3[%c2_16, %c0_17, %c0_18] : memref<6x64x1xf32, #tpu.memory_space<vmem>>, vector<1x64x1xf32>
    %14 = vector.shape_cast %13 : vector<1x64x1xf32> to vector<64x1xf32>
    %c3_19 = arith.constant 3 : index
    %c0_20 = arith.constant 0 : index
    %c0_21 = arith.constant 0 : index
    %15 = vector.load %arg3[%c3_19, %c0_20, %c0_21] : memref<6x64x1xf32, #tpu.memory_space<vmem>>, vector<1x64x1xf32>
    %16 = vector.shape_cast %15 : vector<1x64x1xf32> to vector<64x1xf32>
    %c4 = arith.constant 4 : index
    %c0_22 = arith.constant 0 : index
    %c0_23 = arith.constant 0 : index
    %17 = vector.load %arg3[%c4, %c0_22, %c0_23] : memref<6x64x1xf32, #tpu.memory_space<vmem>>, vector<1x1x1xf32>
    %18 = vector.shape_cast %17 : vector<1x1x1xf32> to vector<1x1xf32>
    %c5 = arith.constant 5 : index
    %c0_24 = arith.constant 0 : index
    %c0_25 = arith.constant 0 : index
    %19 = vector.load %arg3[%c5, %c0_24, %c0_25] : memref<6x64x1xf32, #tpu.memory_space<vmem>>, vector<1x64x1xf32>
    %20 = vector.shape_cast %19 : vector<1x64x1xf32> to vector<64x1xf32>
    %cst = arith.constant dense<0.000000e+00> : vector<128x2048xf32>
    %21 = tpu.matmul %2, %0, %cst {dimension_numbers = #tpu.dot_dimension_numbers<[1], [0], [0], [1], [0, 0, 1, 1], [], []>} : vector<128x32xbf16>, vector<32x2048xbf16>, vector<128x2048xf32> -> vector<128x2048xf32>
    %22 = vector.extract_strided_slice %21 {offsets = [0, 0], sizes = [64, 2048], strides = [1, 1]} : vector<128x2048xf32> to vector<64x2048xf32>
    %23 = vector.broadcast %10 : vector<64x1xf32> to vector<64x2048xf32>
    %24 = arith.addf %22, %23 : vector<64x2048xf32>
    %cst_26 = arith.constant 0.000000e+00 : f32
    %25 = vector.broadcast %cst_26 : f32 to vector<64x2048xf32>
    %26 = arith.maximumf %24, %25 : vector<64x2048xf32>
    %27 = arith.truncf %26 : vector<64x2048xf32> to vector<64x2048xbf16>
    %28 = vector.extract_strided_slice %21 {offsets = [64, 0], sizes = [64, 2048], strides = [1, 1]} : vector<128x2048xf32> to vector<64x2048xf32>
    %cst_27 = arith.constant dense<0.000000e+00> : vector<32x2048xf32>
    %29 = tpu.matmul %4, %27, %cst_27 {dimension_numbers = #tpu.dot_dimension_numbers<[1], [0], [0], [1], [0, 0, 1, 1], [], []>} : vector<32x64xbf16>, vector<64x2048xbf16>, vector<32x2048xf32> -> vector<32x2048xf32>
    %30 = vector.broadcast %12 : vector<32x1xf32> to vector<32x2048xf32>
    %31 = arith.addf %29, %30 : vector<32x2048xf32>
    %cst_28 = arith.constant 0.000000e+00 : f32
    %32 = vector.broadcast %cst_28 : f32 to vector<32x2048xf32>
    %33 = arith.maximumf %31, %32 : vector<32x2048xf32>
    %34 = arith.truncf %33 : vector<32x2048xf32> to vector<32x2048xbf16>
    %cst_29 = arith.constant dense<0.000000e+00> : vector<64x2048xf32>
    %35 = tpu.matmul %6, %34, %cst_29 {dimension_numbers = #tpu.dot_dimension_numbers<[1], [0], [0], [1], [0, 0, 1, 1], [], []>} : vector<64x32xbf16>, vector<32x2048xbf16>, vector<64x2048xf32> -> vector<64x2048xf32>
    %36 = arith.addf %35, %28 : vector<64x2048xf32>
    %37 = vector.broadcast %14 : vector<64x1xf32> to vector<64x2048xf32>
    %38 = arith.addf %36, %37 : vector<64x2048xf32>
    %cst_30 = arith.constant 0.000000e+00 : f32
    %39 = vector.broadcast %cst_30 : f32 to vector<64x2048xf32>
    %40 = arith.maximumf %38, %39 : vector<64x2048xf32>
    %41 = arith.truncf %40 : vector<64x2048xf32> to vector<64x2048xbf16>
    %cst_31 = arith.constant dense<0.000000e+00> : vector<64x2048xf32>
    %42 = tpu.matmul %8, %41, %cst_31 {dimension_numbers = #tpu.dot_dimension_numbers<[1], [0], [0], [1], [0, 0, 1, 1], [], []>} : vector<64x64xbf16>, vector<64x2048xbf16>, vector<64x2048xf32> -> vector<64x2048xf32>
    %43 = vector.broadcast %16 : vector<64x1xf32> to vector<64x2048xf32>
    %44 = arith.addf %42, %43 : vector<64x2048xf32>
    %cst_32 = arith.constant 0.000000e+00 : f32
    %45 = vector.broadcast %cst_32 : f32 to vector<64x2048xf32>
    %46 = arith.maximumf %44, %45 : vector<64x2048xf32>
    %47 = vector.broadcast %20 : vector<64x1xf32> to vector<64x2048xf32>
    %48 = arith.mulf %46, %47 : vector<64x2048xf32>
    %cst_33 = arith.constant dense<0.000000e+00> : vector<2048xf32>
    %49 = vector.multi_reduction <add>, %48, %cst_33 [0] : vector<64x2048xf32> to vector<2048xf32>
    %50 = vector.shape_cast %49 : vector<2048xf32> to vector<1x2048xf32>
    %51 = vector.broadcast %18 : vector<1x1xf32> to vector<1x2048xf32>
    %52 = arith.addf %50, %51 : vector<1x2048xf32>
    %53 = math.tanh %52 : vector<1x2048xf32>
    %c0_34 = arith.constant 0 : index
    %c0_35 = arith.constant 0 : index
    %54 = vector.load %arg4[%c0_34, %c0_35] : memref<1x2048xf32, #tpu.memory_space<vmem>>, vector<1x2048xf32>
    tpu.vector_store %arg4[%c0_34, %c0_35], %53 {strides = array<i32>} : memref<1x2048xf32, #tpu.memory_space<vmem>>, vector<1x2048xf32>,
    return
  }
  func.func @transform_0(%arg0: i32) -> (i32, i32) {
    %c0_i32 = arith.constant 0 : i32
    %c0_i32_0 = arith.constant 0 : i32
    return %c0_i32, %arg0 : i32, i32
  }
  func.func @transform_1(%arg0: i32) -> (i32, i32, i32) {
    %c0_i32 = arith.constant 0 : i32
    %c0_i32_0 = arith.constant 0 : i32
    %c0_i32_1 = arith.constant 0 : i32
    %c0_i32_2 = arith.constant 0 : i32
    return %c0_i32, %c0_i32_0, %c0_i32_1 : i32, i32, i32
  }
  func.func @transform_2(%arg0: i32) -> (i32, i32, i32) {
    %c0_i32 = arith.constant 0 : i32
    %c0_i32_0 = arith.constant 0 : i32
    %c0_i32_1 = arith.constant 0 : i32
    %c0_i32_2 = arith.constant 0 : i32
    return %c0_i32, %c0_i32_0, %c0_i32_1 : i32, i32, i32
  }
  func.func @transform_3(%arg0: i32) -> (i32, i32) {
    %c0_i32 = arith.constant 0 : i32
    %c0_i32_0 = arith.constant 0 : i32
    return %c0_i32, %arg0 : i32, i32
  }
}

</mosaic_0001>

<llo_original>
// kernel: _decoder_forward_impl.1
$region0: #{_decoder_forward_impl.1}
  #allocation0 [shape = 'u32[]', space=smem, size = 0x4, offset = 0x4, fixed_abs, tag = 'smem constant byte address 0x4 - core index']
  #allocation1 [shape = 'u32[72,128]{1,0:T(1,128)}', space=vmem, size = 0x9000, scoped, tag = 'internal scratch']
  %s0 = inlined_call_operand.vmem [shape: bf16[32,8192], index: 0, kind: input, shape index: {}]
  %s1 = inlined_call_operand.vmem [shape: bf16[4,128,64], index: 1, kind: input, shape index: {}]
  %s2 = inlined_call_operand.vmem [shape: f32[6,64,1], index: 2, kind: input, shape index: {}]
  %s3 = inlined_call_operand.hbm [shape: f32[1,8192], index: 3, kind: output, shape index: {}]
  %s4 = sld [smem:[#allocation0]]
  $region68: #{_decoder_forward_impl.1} parent=0
    _
  %s6 = ssub.s32 1, %s4
  %s7 = scalar_select 0, %s6, %s4
  $region1: #{_decoder_forward_impl.1} parent=0
    #allocation2 [shape = 'u8[262144]{0}', space=vmem, size = 0x40000, scoped, tag = 'input window, operand 0']
    #allocation3 [shape = 'u8[16384]{0}', space=vmem, size = 0x4000, scoped, tag = 'output window, operand 0']
    #allocation4 [shape = 's32[2]{0}', space=sflag, size = 0x8, scoped, tag = 'scoped memory for _decoder_forward_impl.1']
    %8 = vsyncpa [#allocation4], 0
    %s9 = scalar_lea.sflag [#allocation4], 1
    %10 = vsyncpa %s9, 0
    loop: start=0, step=1, limit=6
    $region2: #{_decoder_forward_impl.1} parent=1 // loop_pre_header
      _
    $region3: #{_decoder_forward_impl.1} parent=1 // loop_header
      %s12 = sphi 0, %s16
      %p13 = scmp.ge.s32.totalorder %s12, 6
      %s22 = sphi 0, %s24
      %s25 = sphi 0, %s22
      %s26 = sphi 0, %s25
      %s42 = sphi 0, %s26
      %s46 = sphi 0, %s46
      %s48 = sphi 0, %s46
      %s49 = sphi 0, %s48
      %s63 = sphi 0, %s49
      %s67 = sphi 0, %s67
      %s69 = sphi 0, %s67
      %s70 = sphi 0, %s69
      %s84 = sphi 0, %s70
      %s90 = sphi 0, %s92
      %s93 = sphi 0, %s90
      %s94 = sphi 0, %s93
      %s110 = sphi 0, %s94
    $region4: #{_decoder_forward_impl.1} parent=1 // loop_header_branch
      %15 = sbr.rel (%p13) target = $region8
    $region5: #{_decoder_forward_impl.1} parent=1 // loop_body
      %s17 = ssub.s32 %s12, 1
      %s18 = ssub.s32 %s12, 2
      %s19 = sadd.s32 %s12, 1
      %s20 = ssub.s32 %s12, %s19
      %p21 = scmp.eq.s32.totalorder %s20, 0
      %s23 = sadd.s32 %s22, 1
      %s24 = scalar_select %p21, %s22, %s23
      %p27 = pneg %p21
      %p28 = scmp.eq.s32.totalorder %s12, 3
      %p29 = por %p27, %p28
      %p30 = scmp.ne.s32.totalorder %s22, %s25
      %p31 = scmp.eq.s32.totalorder %s12, 0
      %p32 = por %p30, %p31
      %p33 = scmp.ne.s32.totalorder %s22, %s25
      %p34 = scmp.eq.s32.totalorder %s17, 3
      %p35 = por %p33, %p34
      %p36 = scmp.ne.s32.totalorder %s25, %s26
      %p37 = scmp.eq.s32.totalorder %s17, 0
      %p38 = por %p36, %p37
      %p39 = scmp.ne.s32.totalorder %s25, %s26
      %p40 = scmp.eq.s32.totalorder %s18, 3
      %p41 = por %p39, %p40
      %p43 = scmp.ne.s32.totalorder %s26, %s42
      %p44 = scmp.eq.s32.totalorder %s18, 0
      %p45 = por %p43, %p44
      %s47 = sadd.s32 %s46, 1
      %p50 = scmp.eq.s32.totalorder %s12, 3
      %p51 = scmp.ne.s32.totalorder %s46, %s48
      %p52 = scmp.eq.s32.totalorder %s12, 0
      %p53 = por %p51, %p52
      %p54 = scmp.ne.s32.totalorder %s46, %s48
      %p55 = scmp.eq.s32.totalorder %s17, 3
      %p56 = por %p54, %p55
      %p57 = scmp.ne.s32.totalorder %s48, %s49
      %p58 = scmp.eq.s32.totalorder %s17, 0
      %p59 = por %p57, %p58
      %p60 = scmp.ne.s32.totalorder %s48, %s49
      %p61 = scmp.eq.s32.totalorder %s18, 3
      %p62 = por %p60, %p61
      %p64 = scmp.ne.s32.totalorder %s49, %s63
      %p65 = scmp.eq.s32.totalorder %s18, 0
      %p66 = por %p64, %p65
      %s68 = sadd.s32 %s67, 1
      %p71 = scmp.eq.s32.totalorder %s12, 3
      %p72 = scmp.ne.s32.totalorder %s67, %s69
      %p73 = scmp.eq.s32.totalorder %s12, 0
      %p74 = por %p72, %p73
      %p75 = scmp.ne.s32.totalorder %s67, %s69
      %p76 = scmp.eq.s32.totalorder %s17, 3
      %p77 = por %p75, %p76
      %p78 = scmp.ne.s32.totalorder %s69, %s70
      %p79 = scmp.eq.s32.totalorder %s17, 0
      %p80 = por %p78, %p79
      %p81 = scmp.ne.s32.totalorder %s69, %s70
      %p82 = scmp.eq.s32.totalorder %s18, 3
      %p83 = por %p81, %p82
      %p85 = scmp.ne.s32.totalorder %s70, %s84
      %p86 = scmp.eq.s32.totalorder %s18, 0
      %p87 = por %p85, %p86
      %s88 = ssub.s32 %s12, %s19
      %p89 = scmp.eq.s32.totalorder %s88, 0
      %s91 = sadd.s32 %s90, 1
      %s92 = scalar_select %p89, %s90, %s91
      %p95 = pneg %p89
      %p96 = scmp.eq.s32.totalorder %s12, 3
      %p97 = por %p95, %p96
      %p98 = scmp.ne.s32.totalorder %s90, %s93
      %p99 = scmp.eq.s32.totalorder %s12, 0
      %p100 = por %p98, %p99
      %p101 = scmp.ne.s32.totalorder %s90, %s93
      %p102 = scmp.eq.s32.totalorder %s17, 3
      %p103 = por %p101, %p102
      %p104 = scmp.ne.s32.totalorder %s93, %s94
      %p105 = scmp.eq.s32.totalorder %s17, 0
      %p106 = por %p104, %p105
      %p107 = scmp.ne.s32.totalorder %s93, %s94
      %p108 = scmp.eq.s32.totalorder %s18, 3
      %p109 = por %p107, %p108
      %p111 = scmp.ne.s32.totalorder %s94, %s110
      %p112 = scmp.eq.s32.totalorder %s18, 0
      %p113 = por %p111, %p112
      %p114 = scmp.le.s32.totalorder 1, %s12
      %p115 = scmp.lt.s32.totalorder %s12, 5
      %p116 = pnand %p114, %p115
      %p117 = pneg %p116
      // Predicated region
      $region9: #{_decoder_forward_impl.1} parent=5 // pred_check
        _
      $region10: #{_decoder_forward_impl.1} parent=5 // pred_check_branch
        %119 = sbr.rel (%p116) target = $region12
      $region11: #{_decoder_forward_impl.1} parent=5 // pred_region
        %s120 = ssub.s32 %s12, 1
        // Predicated region
        $region13: #{_decoder_forward_impl.1} parent=11 // pred_check
          %p121 = pneg %p59
        $region14: #{_decoder_forward_impl.1} parent=11 // pred_check_branch
          %123 = sbr.rel (%p121) target = $region16
        $region15: #{_decoder_forward_impl.1} parent=11 // pred_region
          _
        $region16: #{_decoder_forward_impl.1} parent=11 // pred_fallthru
          _
        // Predicated region
        $region17: #{_decoder_forward_impl.1} parent=11 // pred_check
          %p124 = pneg %p80
        $region18: #{_decoder_forward_impl.1} parent=11 // pred_check_branch
          %126 = sbr.rel (%p124) target = $region20
        $region19: #{_decoder_forward_impl.1} parent=11 // pred_region
          _
        $region20: #{_decoder_forward_impl.1} parent=11 // pred_fallthru
          _
      $region12: #{_decoder_forward_impl.1} parent=5 // pred_fallthru
        _
      %p127 = scmp.lt.s32.totalorder %s12, 4
      // Predicated region
      $region21: #{_decoder_forward_impl.1} parent=5 // pred_check
        %p128 = pneg %p127
      $region22: #{_decoder_forward_impl.1} parent=5 // pred_check_branch
        %130 = sbr.rel (%p128) target = $region24
      $region23: #{_decoder_forward_impl.1} parent=5 // pred_region
        // Predicated region
        $region25: #{_decoder_forward_impl.1} parent=23 // pred_check
          %p131 = pneg %p32
        $region26: #{_decoder_forward_impl.1} parent=23 // pred_check_branch
          %133 = sbr.rel (%p131) target = $region28
        $region27: #{_decoder_forward_impl.1} parent=23 // pred_region
          %s134 = sand.u32 %s22, 1
          %s135 = sand.u32 %s22, 1
          %s136 = smul.addr %s135, 256
          %s137 = scalar_lea.vmem [#allocation2], %s136
          %s138 = smul.u32 16, %s12
          %s139 = smul.addr %s138, 4
          %s140 = scalar_lea.vmem %s0, %s139
          // Predicated region
          $region29: #{_decoder_forward_impl.1} parent=27 // pred_check
            _
          $region30: #{_decoder_forward_impl.1} parent=27 // pred_check_branch
            %142 = sbr.rel (0) target = $region32
          $region31: #{_decoder_forward_impl.1} parent=27 // pred_region
            // Predicated region
            $region33: #{_decoder_forward_impl.1} parent=31 // pred_check
              _
            $region34: #{_decoder_forward_impl.1} parent=31 // pred_check_branch
              %144 = sbr.rel (0) target = $region36
            $region35: #{_decoder_forward_impl.1} parent=31 // pred_region
              loop: start=0, step=1, limit=1
              $region37: #{_decoder_forward_impl.1} parent=35 // loop_pre_header
                _
              $region38: #{_decoder_forward_impl.1} parent=35 // loop_header
                %s146 = sphi 0, %s150
                %p147 = scmp.ge.s32.totalorder %s146, 1
                %s151 = sphi %s140, %s140
                %s152 = sphi %s137, %s137
              $region39: #{_decoder_forward_impl.1} parent=35 // loop_header_branch
                %149 = sbr.rel (%p147) target = $region43
              $region40: #{_decoder_forward_impl.1} parent=35 // loop_body
                %v153 = vld [vmem:[%s151] sm:$0xff]
                %154 = vst [vmem:[%s152] sm:$0xff] %v153
                %v155 = vld [vmem:[%s151 + $0x8] sm:$0xff]
                %156 = vst [vmem:[%s152 + $0x8] sm:$0xff] %v155
                %v157 = vld [vmem:[%s151 + $0x10] sm:$0xff]
                %158 = vst [vmem:[%s152 + $0x10] sm:$0xff] %v157
                %v159 = vld [vmem:[%s151 + $0x18] sm:$0xff]
                %160 = vst [vmem:[%s152 + $0x18] sm:$0xff] %v159
                %v161 = vld [vmem:[%s151 + $0x20] sm:$0xff]
                %162 = vst [vmem:[%s152 + $0x20] sm:$0xff] %v161
                %v163 = vld [vmem:[%s151 + $0x28] sm:$0xff]
                %164 = vst [vmem:[%s152 + $0x28] sm:$0xff] %v163
                %v165 = vld [vmem:[%s151 + $0x30] sm:$0xff]
                %166 = vst [vmem:[%s152 + $0x30] sm:$0xff] %v165
                %v167 = vld [vmem:[%s151 + $0x38] sm:$0xff]
                %168 = vst [vmem:[%s152 + $0x38] sm:$0xff] %v167
                %v169 = vld [vmem:[%s151 + $0x100] sm:$0xff]
                %170 = vst [vmem:[%s152 + $0x40] sm:$0xff] %v169
                %v171 = vld [vmem:[%s151 + $0x108] sm:$0xff]
                %172 = vst [vmem:[%s152 + $0x48] sm:$0xff] %v171
                %v173 = vld [vmem:[%s151 + $0x110] sm:$0xff]
                %174 = vst [vmem:[%s152 + $0x50] sm:$0xff] %v173
                %v175 = vld [vmem:[%s151 + $0x118] sm:$0xff]
                %176 = vst [vmem:[%s152 + $0x58] sm:$0xff] %v175
                %v177 = vld [vmem:[%s151 + $0x120] sm:$0xff]
                %178 = vst [vmem:[%s152 + $0x60] sm:$0xff] %v177
                %v179 = vld [vmem:[%s151 + $0x128] sm:$0xff]
                %180 = vst [vmem:[%s152 + $0x68] sm:$0xff] %v179
                %v181 = vld [vmem:[%s151 + $0x130] sm:$0xff]
                %182 = vst [vmem:[%s152 + $0x70] sm:$0xff] %v181
                %v183 = vld [vmem:[%s151 + $0x138] sm:$0xff]
                %184 = vst [vmem:[%s152 + $0x78] sm:$0xff] %v183
                %v185 = vld [vmem:[%s151 + $0x200] sm:$0xff]
                %186 = vst [vmem:[%s152 + $0x80] sm:$0xff] %v185
                %v187 = vld [vmem:[%s151 + $0x208] sm:$0xff]
                %188 = vst [vmem:[%s152 + $0x88] sm:$0xff] %v187
                %v189 = vld [vmem:[%s151 + $0x210] sm:$0xff]
                %190 = vst [vmem:[%s152 + $0x90] sm:$0xff] %v189
                %v191 = vld [vmem:[%s151 + $0x218] sm:$0xff]
                %192 = vst [vmem:[%s152 + $0x98] sm:$0xff] %v191
                %v193 = vld [vmem:[%s151 + $0x220] sm:$0xff]
                %194 = vst [vmem:[%s152 + $0xa0] sm:$0xff] %v193
                %v195 = vld [vmem:[%s151 + $0x228] sm:$0xff]
                %196 = vst [vmem:[%s152 + $0xa8] sm:$0xff] %v195
                %v197 = vld [vmem:[%s151 + $0x230] sm:$0xff]
                %198 = vst [vmem:[%s152 + $0xb0] sm:$0xff] %v197
                %v199 = vld [vmem:[%s151 + $0x238] sm:$0xff]
                %200 = vst [vmem:[%s152 + $0xb8] sm:$0xff] %v199
                %v201 = vld [vmem:[%s151 + $0x300] sm:$0xff]
                %202 = vst [vmem:[%s152 + $0xc0] sm:$0xff] %v201
                %v203 = vld [vmem:[%s151 + $0x308] sm:$0xff]
                %204 = vst [vmem:[%s152 + $0xc8] sm:$0xff] %v203
                %v205 = vld [vmem:[%s151 + $0x310] sm:$0xff]
                %206 = vst [vmem:[%s152 + $0xd0] sm:$0xff] %v205
                %v207 = vld [vmem:[%s151 + $0x318] sm:$0xff]
                %208 = vst [vmem:[%s152 + $0xd8] sm:$0xff] %v207
                %v209 = vld [vmem:[%s151 + $0x320] sm:$0xff]
                %210 = vst [vmem:[%s152 + $0xe0] sm:$0xff] %v209
                %v211 = vld [vmem:[%s151 + $0x328] sm:$0xff]
                %212 = vst [vmem:[%s152 + $0xe8] sm:$0xff] %v211
                %v213 = vld [vmem:[%s151 + $0x330] sm:$0xff]
                %214 = vst [vmem:[%s152 + $0xf0] sm:$0xff] %v213
                %v215 = vld [vmem:[%s151 + $0x338] sm:$0xff]
                %216 = vst [vmem:[%s152 + $0xf8] sm:$0xff] %v215
              $region41: #{_decoder_forward_impl.1} parent=35 // loop_footer
                %s150 = sadd.s32 1, %s146
              $region42: #{_decoder_forward_impl.1} parent=35 // loop_footer_branch
                %145 = sbr.rel target = $region38
              $region43: #{_decoder_forward_impl.1} parent=35 // loop_exit
                _
            $region36: #{_decoder_forward_impl.1} parent=31 // pred_fallthru
              _
            // Predicated region
            $region44: #{_decoder_forward_impl.1} parent=31 // pred_check
              _
            $region45: #{_decoder_forward_impl.1} parent=31 // pred_check_branch
              %218 = sbr.rel target = $region47
            $region46: #{_decoder_forward_impl.1} parent=31 // pred_region
              _
            $region47: #{_decoder_forward_impl.1} parent=31 // pred_fallthru
              _
          $region32: #{_decoder_forward_impl.1} parent=27 // pred_fallthru
            _
          %219 = vnop
        $region28: #{_decoder_forward_impl.1} parent=23 // pred_fallthru
          _
      $region24: #{_decoder_forward_impl.1} parent=5 // pred_fallthru
        _
      %p220 = scmp.le.s32.totalorder 1, %s12
      %p221 = scmp.lt.s32.totalorder %s12, 5
      %p222 = pnand %p220, %p221
      %p223 = pneg %p222
      // Predicated region
      $region48: #{_decoder_forward_impl.1} parent=5 // pred_check
        _
      $region49: #{_decoder_forward_impl.1} parent=5 // pred_check_branch
        %225 = sbr.rel (%p222) target = $region51
      $region50: #{_decoder_forward_impl.1} parent=5 // pred_region
        %s226 = ssub.s32 %s12, 1
        %s227 = sand.u32 %s25, 1
        %s228 = sand.u32 %s25, 1
        %s229 = smul.addr %s228, 256
        %s230 = scalar_lea.vmem [#allocation2], %s229
        // Predicated region
        $region52: #{_decoder_forward_impl.1} parent=50 // pred_check
          %p231 = pneg %p38
        $region53: #{_decoder_forward_impl.1} parent=50 // pred_check_branch
          %233 = sbr.rel (%p231) target = $region55
        $region54: #{_decoder_forward_impl.1} parent=50 // pred_region
          _
        $region55: #{_decoder_forward_impl.1} parent=50 // pred_fallthru
          _
        %s234 = sand.u32 %s25, 1
        %s235 = sand.u32 %s25, 1
        %s236 = smul.addr %s235, 256
        %s237 = scalar_lea.vmem [#allocation2], %s236
        %p238 = pneg %p38
        %p239 = pneg %p35
        %p240 = pneg %p59
        %p241 = pneg %p56
        %p242 = pneg %p80
        %p243 = pneg %p77
        %p244 = pneg %p106
        %p245 = pneg %p103
        %s246 = sand.u32 %s93, 1
        %s247 = scalar_lea.sflag [#allocation4], %s246
        %s248 = sand.u32 %s93, 1
        %s249 = smul.addr %s248, 16
        %s250 = scalar_lea.vmem [#allocation3], %s249
        %s251 = smul.u32 16, %s17
        %s252 = smul.u32 16, %s17
        %v254 = vld [vmem:[%s230] sm:$0xff]
        %v255 = vld [vmem:[%s230 + $0x8] sm:$0xff]
        %v256 = vld [vmem:[%s230 + $0x10] sm:$0xff]
        %v257 = vld [vmem:[%s230 + $0x18] sm:$0xff]
        %v258 = vld [vmem:[%s230 + $0x20] sm:$0xff]
        %v259 = vld [vmem:[%s230 + $0x28] sm:$0xff]
        %v260 = vld [vmem:[%s230 + $0x30] sm:$0xff]
        %v261 = vld [vmem:[%s230 + $0x38] sm:$0xff]
        %v262 = vld [vmem:[%s230 + $0x40] sm:$0xff]
        %v263 = vld [vmem:[%s230 + $0x48] sm:$0xff]
        %v264 = vld [vmem:[%s230 + $0x50] sm:$0xff]
        %v265 = vld [vmem:[%s230 + $0x58] sm:$0xff]
        %v266 = vld [vmem:[%s230 + $0x60] sm:$0xff]
        %v267 = vld [vmem:[%s230 + $0x68] sm:$0xff]
        %v268 = vld [vmem:[%s230 + $0x70] sm:$0xff]
        %v269 = vld [vmem:[%s230 + $0x78] sm:$0xff]
        %v270 = vld [vmem:[%s230 + $0x80] sm:$0xff]
        %v271 = vld [vmem:[%s230 + $0x88] sm:$0xff]
        %v272 = vld [vmem:[%s230 + $0x90] sm:$0xff]
        %v273 = vld [vmem:[%s230 + $0x98] sm:$0xff]
        %v274 = vld [vmem:[%s230 + $0xa0] sm:$0xff]
        %v275 = vld [vmem:[%s230 + $0xa8] sm:$0xff]
        %v276 = vld [vmem:[%s230 + $0xb0] sm:$0xff]
        %v277 = vld [vmem:[%s230 + $0xb8] sm:$0xff]
        %v278 = vld [vmem:[%s230 + $0xc0] sm:$0xff]
        %v279 = vld [vmem:[%s230 + $0xc8] sm:$0xff]
        %v280 = vld [vmem:[%s230 + $0xd0] sm:$0xff]
        %v281 = vld [vmem:[%s230 + $0xd8] sm:$0xff]
        %v282 = vld [vmem:[%s230 + $0xe0] sm:$0xff]
        %v283 = vld [vmem:[%s230 + $0xe8] sm:$0xff]
        %v284 = vld [vmem:[%s230 + $0xf0] sm:$0xff]
        %v285 = vld [vmem:[%s230 + $0xf8] sm:$0xff]
        %v286 = vld [vmem:[%s1] sm:$0xf]
        %v287 = vld [vmem:[%s1 + $0x4] sm:$0xf]
        %v288 = vld [vmem:[%s1 + $0x8] sm:$0xf]
        %v289 = vld [vmem:[%s1 + $0xc] sm:$0xf]
        %v290 = vld [vmem:[%s1 + $0x10] sm:$0xf]
        %v291 = vld [vmem:[%s1 + $0x14] sm:$0xf]
        %v292 = vld [vmem:[%s1 + $0x18] sm:$0xf]
        %v293 = vld [vmem:[%s1 + $0x1c] sm:$0xf]
        %v294 = vld [vmem:[%s1 + $0x20] sm:$0xf]
        %v295 = vld [vmem:[%s1 + $0x24] sm:$0xf]
        %v296 = vld [vmem:[%s1 + $0x28] sm:$0xf]
        %v297 = vld [vmem:[%s1 + $0x2c] sm:$0xf]
        %v298 = vld [vmem:[%s1 + $0x30] sm:$0xf]
        %v299 = vld [vmem:[%s1 + $0x34] sm:$0xf]
        %v300 = vld [vmem:[%s1 + $0x38] sm:$0xf]
        %v301 = vld [vmem:[%s1 + $0x3c] sm:$0xf]
        %s302 = scalar_lea.vmem %s1, 64
        %v303 = vld [vmem:[%s302] sm:$0xf]
        %v304 = vld [vmem:[%s302 + $0x4] sm:$0xf]
        %v305 = vld [vmem:[%s302 + $0x8] sm:$0xf]
        %v306 = vld [vmem:[%s302 + $0xc] sm:$0xf]
        %s307 = scalar_lea.vmem %s1, 128
        %v308 = vld [vmem:[%s307] sm:$0xf]
        %v309 = vld [vmem:[%s307 + $0x4] sm:$0xf]
        %v310 = vld [vmem:[%s307 + $0x8] sm:$0xf]
        %v311 = vld [vmem:[%s307 + $0xc] sm:$0xf]
        %v312 = vld [vmem:[%s307 + $0x10] sm:$0xf]
        %v313 = vld [vmem:[%s307 + $0x14] sm:$0xf]
        %v314 = vld [vmem:[%s307 + $0x18] sm:$0xf]
        %v315 = vld [vmem:[%s307 + $0x1c] sm:$0xf]
        %s316 = scalar_lea.vmem %s1, 192
        %v317 = vld [vmem:[%s316] sm:$0xf]
        %v318 = vld [vmem:[%s316 + $0x4] sm:$0xf]
        %v319 = vld [vmem:[%s316 + $0x8] sm:$0xf]
        %v320 = vld [vmem:[%s316 + $0xc] sm:$0xf]
        %v321 = vld [vmem:[%s316 + $0x10] sm:$0xf]
        %v322 = vld [vmem:[%s316 + $0x14] sm:$0xf]
        %v323 = vld [vmem:[%s316 + $0x18] sm:$0xf]
        %v324 = vld [vmem:[%s316 + $0x1c] sm:$0xf]
        %v325 = vld [vmem:[%s2] sm:$0xff]
        %v326 = vld [vmem:[%s2 + $0x8] sm:$0xff]
        %v327 = vld [vmem:[%s2 + $0x10] sm:$0xff]
        %v328 = vld [vmem:[%s2 + $0x18] sm:$0xff]
        %v329 = vld [vmem:[%s2 + $0x20] sm:$0xff]
        %v330 = vld [vmem:[%s2 + $0x28] sm:$0xff]
        %v331 = vld [vmem:[%s2 + $0x30] sm:$0xff]
        %v332 = vld [vmem:[%s2 + $0x38] sm:$0xff]
        %s333 = scalar_lea.vmem %s2, 64
        %v334 = vld [vmem:[%s333] sm:$0xff]
        %v335 = vld [vmem:[%s333 + $0x8] sm:$0xff]
        %v336 = vld [vmem:[%s333 + $0x10] sm:$0xff]
        %v337 = vld [vmem:[%s333 + $0x18] sm:$0xff]
        %s338 = scalar_lea.vmem %s2, 128
        %v339 = vld [vmem:[%s338] sm:$0xff]
        %v340 = vld [vmem:[%s338 + $0x8] sm:$0xff]
        %v341 = vld [vmem:[%s338 + $0x10] sm:$0xff]
        %v342 = vld [vmem:[%s338 + $0x18] sm:$0xff]
        %v343 = vld [vmem:[%s338 + $0x20] sm:$0xff]
        %v344 = vld [vmem:[%s338 + $0x28] sm:$0xff]
        %v345 = vld [vmem:[%s338 + $0x30] sm:$0xff]
        %v346 = vld [vmem:[%s338 + $0x38] sm:$0xff]
        %s347 = scalar_lea.vmem %s2, 192
        %v348 = vld [vmem:[%s347] sm:$0xff]
        %v349 = vld [vmem:[%s347 + $0x8] sm:$0xff]
        %v350 = vld [vmem:[%s347 + $0x10] sm:$0xff]
        %v351 = vld [vmem:[%s347 + $0x18] sm:$0xff]
        %v352 = vld [vmem:[%s347 + $0x20] sm:$0xff]
        %v353 = vld [vmem:[%s347 + $0x28] sm:$0xff]
        %v354 = vld [vmem:[%s347 + $0x30] sm:$0xff]
        %v355 = vld [vmem:[%s347 + $0x38] sm:$0xff]
        %s356 = scalar_lea.vmem %s2, 256
        %v357 = vld [vmem:[%s356] sm:$0x1]
        %s358 = scalar_lea.vmem %s2, 320
        %v359 = vld [vmem:[%s358] sm:$0xff]
        %v360 = vld [vmem:[%s358 + $0x8] sm:$0xff]
        %v361 = vld [vmem:[%s358 + $0x10] sm:$0xff]
        %v362 = vld [vmem:[%s358 + $0x18] sm:$0xff]
        %v363 = vld [vmem:[%s358 + $0x20] sm:$0xff]
        %v364 = vld [vmem:[%s358 + $0x28] sm:$0xff]
        %v365 = vld [vmem:[%s358 + $0x30] sm:$0xff]
        %v366 = vld [vmem:[%s358 + $0x38] sm:$0xff]
        %v383 = vunpack.c.l.b16 %v286
        %v384 = vunpack.c.l.b16 %v287
        %v385 = vunpack.c.l.b16 %v288
        %v386 = vunpack.c.l.b16 %v289
        %v387 = vunpack.c.l.b16 %v290
        %v388 = vunpack.c.l.b16 %v291
        %v389 = vunpack.c.l.b16 %v292
        %v390 = vunpack.c.l.b16 %v293
        %v391 = vunpack.c.l.b16 %v294
        %v392 = vunpack.c.l.b16 %v295
        %v393 = vunpack.c.l.b16 %v296
        %v394 = vunpack.c.l.b16 %v297
        %v395 = vunpack.c.l.b16 %v298
        %v396 = vunpack.c.l.b16 %v299
        %v397 = vunpack.c.l.b16 %v300
        %v398 = vunpack.c.l.b16 %v301
        %v399 = vpack.c.b16 %v384, %v383
        %v400 = vpack.c.b16 %v386, %v385
        %v401 = vpack.c.b16 %v388, %v387
        %v402 = vpack.c.b16 %v390, %v389
        %v403 = vpack.c.b16 %v392, %v391
        %v404 = vpack.c.b16 %v394, %v393
        %v405 = vpack.c.b16 %v396, %v395
        %v406 = vpack.c.b16 %v398, %v397
        %v439 = vunpack.c.l.b16 %v254
        %v440 = vunpack.c.h.b16 %v254
        %v441 = vunpack.c.l.b16 %v255
        %v442 = vunpack.c.h.b16 %v255
        %v443 = vunpack.c.l.b16 %v256
        %v444 = vunpack.c.h.b16 %v256
        %v445 = vunpack.c.l.b16 %v257
        %v446 = vunpack.c.h.b16 %v257
        %v447 = vunpack.c.l.b16 %v258
        %v448 = vunpack.c.h.b16 %v258
        %v449 = vunpack.c.l.b16 %v259
        %v450 = vunpack.c.h.b16 %v259
        %v451 = vunpack.c.l.b16 %v260
        %v452 = vunpack.c.h.b16 %v260
        %v453 = vunpack.c.l.b16 %v261
        %v454 = vunpack.c.h.b16 %v261
        %v455 = vunpack.c.l.b16 %v262
        %v456 = vunpack.c.h.b16 %v262
        %v457 = vunpack.c.l.b16 %v263
        %v458 = vunpack.c.h.b16 %v263
        %v459 = vunpack.c.l.b16 %v264
        %v460 = vunpack.c.h.b16 %v264
        %v461 = vunpack.c.l.b16 %v265
        %v462 = vunpack.c.h.b16 %v265
        %v463 = vunpack.c.l.b16 %v266
        %v464 = vunpack.c.h.b16 %v266
        %v465 = vunpack.c.l.b16 %v267
        %v466 = vunpack.c.h.b16 %v267
        %v467 = vunpack.c.l.b16 %v268
        %v468 = vunpack.c.h.b16 %v268
        %v469 = vunpack.c.l.b16 %v269
        %v470 = vunpack.c.h.b16 %v269
        %v471 = vunpack.c.l.b16 %v270
        %v472 = vunpack.c.h.b16 %v270
        %v473 = vunpack.c.l.b16 %v271
        %v474 = vunpack.c.h.b16 %v271
        %v475 = vunpack.c.l.b16 %v272
        %v476 = vunpack.c.h.b16 %v272
        %v477 = vunpack.c.l.b16 %v273
        %v478 = vunpack.c.h.b16 %v273
        %v479 = vunpack.c.l.b16 %v274
        %v480 = vunpack.c.h.b16 %v274
        %v481 = vunpack.c.l.b16 %v275
        %v482 = vunpack.c.h.b16 %v275
        %v483 = vunpack.c.l.b16 %v276
        %v484 = vunpack.c.h.b16 %v276
        %v485 = vunpack.c.l.b16 %v277
        %v486 = vunpack.c.h.b16 %v277
        %v487 = vunpack.c.l.b16 %v278
        %v488 = vunpack.c.h.b16 %v278
        %v489 = vunpack.c.l.b16 %v279
        %v490 = vunpack.c.h.b16 %v279
        %v491 = vunpack.c.l.b16 %v280
        %v492 = vunpack.c.h.b16 %v280
        %v493 = vunpack.c.l.b16 %v281
        %v494 = vunpack.c.h.b16 %v281
        %v495 = vunpack.c.l.b16 %v282
        %v496 = vunpack.c.h.b16 %v282
        %v497 = vunpack.c.l.b16 %v283
        %v498 = vunpack.c.h.b16 %v283
        %v499 = vunpack.c.l.b16 %v284
        %v500 = vunpack.c.h.b16 %v284
        %v501 = vunpack.c.l.b16 %v285
        %v502 = vunpack.c.h.b16 %v285
        %v503 = vpack.c.b16 %v455, %v439
        %v504 = vpack.c.b16 %v456, %v440
        %v505 = vpack.c.b16 %v457, %v441
        %v506 = vpack.c.b16 %v458, %v442
        %v507 = vpack.c.b16 %v459, %v443
        %v508 = vpack.c.b16 %v460, %v444
        %v509 = vpack.c.b16 %v461, %v445
        %v510 = vpack.c.b16 %v462, %v446
        %v511 = vpack.c.b16 %v463, %v447
        %v512 = vpack.c.b16 %v464, %v448
        %v513 = vpack.c.b16 %v465, %v449
        %v514 = vpack.c.b16 %v466, %v450
        %v515 = vpack.c.b16 %v467, %v451
        %v516 = vpack.c.b16 %v468, %v452
        %v517 = vpack.c.b16 %v469, %v453
        %v518 = vpack.c.b16 %v470, %v454
        %v519 = vpack.c.b16 %v487, %v471
        %v520 = vpack.c.b16 %v488, %v472
        %v521 = vpack.c.b16 %v489, %v473
        %v522 = vpack.c.b16 %v490, %v474
        %v523 = vpack.c.b16 %v491, %v475
        %v524 = vpack.c.b16 %v492, %v476
        %v525 = vpack.c.b16 %v493, %v477
        %v526 = vpack.c.b16 %v494, %v478
        %v527 = vpack.c.b16 %v495, %v479
        %v528 = vpack.c.b16 %v496, %v480
        %v529 = vpack.c.b16 %v497, %v481
        %v530 = vpack.c.b16 %v498, %v482
        %v531 = vpack.c.b16 %v499, %v483
        %v532 = vpack.c.b16 %v500, %v484
        %v533 = vpack.c.b16 %v501, %v485
        %v534 = vpack.c.b16 %v502, %v486
        %vm567 = vcmask 261120
        %v569 = vsel %vm567, %v399, 0
        %v572 = vsel %vm567, %v400, 0
        %v575 = vsel %vm567, %v401, 0
        %v578 = vsel %vm567, %v402, 0
        %v581 = vsel %vm567, %v403, 0
        %v584 = vsel %vm567, %v404, 0
        %v587 = vsel %vm567, %v405, 0
        %v590 = vsel %vm567, %v406, 0
        %592 = vmatpush.bf16.msra.mxu0 0
        %593 = vmatpush.bf16.msra.mxu0 0
        %594 = vmatpush.bf16.msra.mxu0 0
        %595 = vmatpush.bf16.msra.mxu0 0
        %596 = vmatpush.bf16.msra.mxu0 0
        %597 = vmatpush.bf16.msra.mxu0 0
        %598 = vmatpush.bf16.msra.mxu0 %v519
        %599 = vmatpush.bf16.msra.mxu0 %v503
        %600 = vmatmul.bf16.gmra.mxu0 %v569
        %v601 = vpop.f32.mrf.mxu0
        %v602 = vadd.f32 0.0, %v601
        %v603 = vpop.f32.mrf.mxu0
        %v604 = vadd.f32 0.0, %v603
        %605 = vmatmul.bf16.gmra.mxu0 %v572
        %v606 = vpop.f32.mrf.mxu0
        %v607 = vadd.f32 0.0, %v606
        %v608 = vpop.f32.mrf.mxu0
        %v609 = vadd.f32 0.0, %v608
        %610 = vmatmul.bf16.gmra.mxu0 %v575
        %v611 = vpop.f32.mrf.mxu0
        %v612 = vadd.f32 0.0, %v611
        %v613 = vpop.f32.mrf.mxu0
        %v614 = vadd.f32 0.0, %v613
        %615 = vmatmul.bf16.gmra.mxu0 %v578
        %v616 = vpop.f32.mrf.mxu0
        %v617 = vadd.f32 0.0, %v616
        %v618 = vpop.f32.mrf.mxu0
        %v619 = vadd.f32 0.0, %v618
        %620 = vmatmul.bf16.gmra.mxu0 %v581
        %v621 = vpop.f32.mrf.mxu0
        %v622 = vadd.f32 0.0, %v621
        %v623 = vpop.f32.mrf.mxu0
        %v624 = vadd.f32 0.0, %v623
        %625 = vmatmul.bf16.gmra.mxu0 %v584
        %v626 = vpop.f32.mrf.mxu0
        %v627 = vadd.f32 0.0, %v626
        %v628 = vpop.f32.mrf.mxu0
        %v629 = vadd.f32 0.0, %v628
        %630 = vmatmul.bf16.gmra.mxu0 %v587
        %v631 = vpop.f32.mrf.mxu0
        %v632 = vadd.f32 0.0, %v631
        %v633 = vpop.f32.mrf.mxu0
        %v634 = vadd.f32 0.0, %v633
        %635 = vmatmul.bf16.gmra.mxu0 %v590
        %v636 = vpop.f32.mrf.mxu0
        %v637 = vadd.f32 0.0, %v636
        %v638 = vpop.f32.mrf.mxu0
        %v639 = vadd.f32 0.0, %v638
        %640 = vdwg.mxu0
        %641 = vmatpush.bf16.msra.mxu0 0
        %642 = vmatpush.bf16.msra.mxu0 0
        %643 = vmatpush.bf16.msra.mxu0 0
        %644 = vmatpush.bf16.msra.mxu0 0
        %645 = vmatpush.bf16.msra.mxu0 0
        %646 = vmatpush.bf16.msra.mxu0 0
        %647 = vmatpush.bf16.msra.mxu0 %v520
        %648 = vmatpush.bf16.msra.mxu0 %v504
        %649 = vmatmul.bf16.gmra.mxu0 %v569
        %v650 = vpop.f32.mrf.mxu0
        %v651 = vadd.f32 0.0, %v650
        %v652 = vpop.f32.mrf.mxu0
        %v653 = vadd.f32 0.0, %v652
        %654 = vmatmul.bf16.gmra.mxu0 %v572
        %v655 = vpop.f32.mrf.mxu0
        %v656 = vadd.f32 0.0, %v655
        %v657 = vpop.f32.mrf.mxu0
        %v658 = vadd.f32 0.0, %v657
        %659 = vmatmul.bf16.gmra.mxu0 %v575
        %v660 = vpop.f32.mrf.mxu0
        %v661 = vadd.f32 0.0, %v660
        %v662 = vpop.f32.mrf.mxu0
        %v663 = vadd.f32 0.0, %v662
        %664 = vmatmul.bf16.gmra.mxu0 %v578
        %v665 = vpop.f32.mrf.mxu0
        %v666 = vadd.f32 0.0, %v665
        %v667 = vpop.f32.mrf.mxu0
        %v668 = vadd.f32 0.0, %v667
        %669 = vmatmul.bf16.gmra.mxu0 %v581
        %v670 = vpop.f32.mrf.mxu0
        %v671 = vadd.f32 0.0, %v670
        %v672 = vpop.f32.mrf.mxu0
        %v673 = vadd.f32 0.0, %v672
        %674 = vmatmul.bf16.gmra.mxu0 %v584
        %v675 = vpop.f32.mrf.mxu0
        %v676 = vadd.f32 0.0, %v675
        %v677 = vpop.f32.mrf.mxu0
        %v678 = vadd.f32 0.0, %v677
        %679 = vmatmul.bf16.gmra.mxu0 %v587
        %v680 = vpop.f32.mrf.mxu0
        %v681 = vadd.f32 0.0, %v680
        %v682 = vpop.f32.mrf.mxu0
        %v683 = vadd.f32 0.0, %v682
        %684 = vmatmul.bf16.gmra.mxu0 %v590
        %v685 = vpop.f32.mrf.mxu0
        %v686 = vadd.f32 0.0, %v685
        %v687 = vpop.f32.mrf.mxu0
        %v688 = vadd.f32 0.0, %v687
        %689 = vdwg.mxu0
        %690 = vmatpush.bf16.msra.mxu0 0
        %691 = vmatpush.bf16.msra.mxu0 0
        %692 = vmatpush.bf16.msra.mxu0 0
        %693 = vmatpush.bf16.msra.mxu0 0
        %694 = vmatpush.bf16.msra.mxu0 0
        %695 = vmatpush.bf16.msra.mxu0 0
        %696 = vmatpush.bf16.msra.mxu0 %v521
        %697 = vmatpush.bf16.msra.mxu0 %v505
        %698 = vmatmul.bf16.gmra.mxu0 %v569
        %v699 = vpop.f32.mrf.mxu0
        %v700 = vadd.f32 0.0, %v699
        %v701 = vpop.f32.mrf.mxu0
        %v702 = vadd.f32 0.0, %v701
        %703 = vmatmul.bf16.gmra.mxu0 %v572
        %v704 = vpop.f32.mrf.mxu0
        %v705 = vadd.f32 0.0, %v704
        %v706 = vpop.f32.mrf.mxu0
        %v707 = vadd.f32 0.0, %v706
        %708 = vmatmul.bf16.gmra.mxu0 %v575
        %v709 = vpop.f32.mrf.mxu0
        %v710 = vadd.f32 0.0, %v709
        %v711 = vpop.f32.mrf.mxu0
        %v712 = vadd.f32 0.0, %v711
        %713 = vmatmul.bf16.gmra.mxu0 %v578
        %v714 = vpop.f32.mrf.mxu0
        %v715 = vadd.f32 0.0, %v714
        %v716 = vpop.f32.mrf.mxu0
        %v717 = vadd.f32 0.0, %v716
        %718 = vmatmul.bf16.gmra.mxu0 %v581
        %v719 = vpop.f32.mrf.mxu0
        %v720 = vadd.f32 0.0, %v719
        %v721 = vpop.f32.mrf.mxu0
        %v722 = vadd.f32 0.0, %v721
        %723 = vmatmul.bf16.gmra.mxu0 %v584
        %v724 = vpop.f32.mrf.mxu0
        %v725 = vadd.f32 0.0, %v724
        %v726 = vpop.f32.mrf.mxu0
        %v727 = vadd.f32 0.0, %v726
        %728 = vmatmul.bf16.gmra.mxu0 %v587
        %v729 = vpop.f32.mrf.mxu0
        %v730 = vadd.f32 0.0, %v729
        %v731 = vpop.f32.mrf.mxu0
        %v732 = vadd.f32 0.0, %v731
        %733 = vmatmul.bf16.gmra.mxu0 %v590
        %v734 = vpop.f32.mrf.mxu0
        %v735 = vadd.f32 0.0, %v734
        %v736 = vpop.f32.mrf.mxu0
        %v737 = vadd.f32 0.0, %v736
        %738 = vdwg.mxu0
        %739 = vmatpush.bf16.msra.mxu0 0
        %740 = vmatpush.bf16.msra.mxu0 0
        %741 = vmatpush.bf16.msra.mxu0 0
        %742 = vmatpush.bf16.msra.mxu0 0
        %743 = vmatpush.bf16.msra.mxu0 0
        %744 = vmatpush.bf16.msra.mxu0 0
        %745 = vmatpush.bf16.msra.mxu0 %v522
        %746 = vmatpush.bf16.msra.mxu0 %v506
        %747 = vmatmul.bf16.gmra.mxu0 %v569
        %v748 = vpop.f32.mrf.mxu0
        %v749 = vadd.f32 0.0, %v748
        %v750 = vpop.f32.mrf.mxu0
        %v751 = vadd.f32 0.0, %v750
        %752 = vmatmul.bf16.gmra.mxu0 %v572
        %v753 = vpop.f32.mrf.mxu0
        %v754 = vadd.f32 0.0, %v753
        %v755 = vpop.f32.mrf.mxu0
        %v756 = vadd.f32 0.0, %v755
        %757 = vmatmul.bf16.gmra.mxu0 %v575
        %v758 = vpop.f32.mrf.mxu0
        %v759 = vadd.f32 0.0, %v758
        %v760 = vpop.f32.mrf.mxu0
        %v761 = vadd.f32 0.0, %v760
        %762 = vmatmul.bf16.gmra.mxu0 %v578
        %v763 = vpop.f32.mrf.mxu0
        %v764 = vadd.f32 0.0, %v763
        %v765 = vpop.f32.mrf.mxu0
        %v766 = vadd.f32 0.0, %v765
        %767 = vmatmul.bf16.gmra.mxu0 %v581
        %v768 = vpop.f32.mrf.mxu0
        %v769 = vadd.f32 0.0, %v768
        %v770 = vpop.f32.mrf.mxu0
        %v771 = vadd.f32 0.0, %v770
        %772 = vmatmul.bf16.gmra.mxu0 %v584
        %v773 = vpop.f32.mrf.mxu0
        %v774 = vadd.f32 0.0, %v773
        %v775 = vpop.f32.mrf.mxu0
        %v776 = vadd.f32 0.0, %v775
        %777 = vmatmul.bf16.gmra.mxu0 %v587
        %v778 = vpop.f32.mrf.mxu0
        %v779 = vadd.f32 0.0, %v778
        %v780 = vpop.f32.mrf.mxu0
        %v781 = vadd.f32 0.0, %v780
        %782 = vmatmul.bf16.gmra.mxu0 %v590
        %v783 = vpop.f32.mrf.mxu0
        %v784 = vadd.f32 0.0, %v783
        %v785 = vpop.f32.mrf.mxu0
        %v786 = vadd.f32 0.0, %v785
        %787 = vdwg.mxu0
        %788 = vmatpush.bf16.msra.mxu0 0
        %789 = vmatpush.bf16.msra.mxu0 0
        %790 = vmatpush.bf16.msra.mxu0 0
        %791 = vmatpush.bf16.msra.mxu0 0
        %792 = vmatpush.bf16.msra.mxu0 0
        %793 = vmatpush.bf16.msra.mxu0 0
        %794 = vmatpush.bf16.msra.mxu0 %v523
        %795 = vmatpush.bf16.msra.mxu0 %v507
        %796 = vmatmul.bf16.gmra.mxu0 %v569
        %v797 = vpop.f32.mrf.mxu0
        %v798 = vadd.f32 0.0, %v797
        %v799 = vpop.f32.mrf.mxu0
        %v800 = vadd.f32 0.0, %v799
        %801 = vmatmul.bf16.gmra.mxu0 %v572
        %v802 = vpop.f32.mrf.mxu0
        %v803 = vadd.f32 0.0, %v802
        %v804 = vpop.f32.mrf.mxu0
        %v805 = vadd.f32 0.0, %v804
        %806 = vmatmul.bf16.gmra.mxu0 %v575
        %v807 = vpop.f32.mrf.mxu0
        %v808 = vadd.f32 0.0, %v807
        %v809 = vpop.f32.mrf.mxu0
        %v810 = vadd.f32 0.0, %v809
        %811 = vmatmul.bf16.gmra.mxu0 %v578
        %v812 = vpop.f32.mrf.mxu0
        %v813 = vadd.f32 0.0, %v812
        %v814 = vpop.f32.mrf.mxu0
        %v815 = vadd.f32 0.0, %v814
        %816 = vmatmul.bf16.gmra.mxu0 %v581
        %v817 = vpop.f32.mrf.mxu0
        %v818 = vadd.f32 0.0, %v817
        %v819 = vpop.f32.mrf.mxu0
        %v820 = vadd.f32 0.0, %v819
        %821 = vmatmul.bf16.gmra.mxu0 %v584
        %v822 = vpop.f32.mrf.mxu0
        %v823 = vadd.f32 0.0, %v822
        %v824 = vpop.f32.mrf.mxu0
        %v825 = vadd.f32 0.0, %v824
        %826 = vmatmul.bf16.gmra.mxu0 %v587
        %v827 = vpop.f32.mrf.mxu0
        %v828 = vadd.f32 0.0, %v827
        %v829 = vpop.f32.mrf.mxu0
        %v830 = vadd.f32 0.0, %v829
        %831 = vmatmul.bf16.gmra.mxu0 %v590
        %v832 = vpop.f32.mrf.mxu0
        %v833 = vadd.f32 0.0, %v832
        %v834 = vpop.f32.mrf.mxu0
        %v835 = vadd.f32 0.0, %v834
        %836 = vdwg.mxu0
        %837 = vmatpush.bf16.msra.mxu0 0
        %838 = vmatpush.bf16.msra.mxu0 0
        %839 = vmatpush.bf16.msra.mxu0 0
        %840 = vmatpush.bf16.msra.mxu0 0
        %841 = vmatpush.bf16.msra.mxu0 0
        %842 = vmatpush.bf16.msra.mxu0 0
        %843 = vmatpush.bf16.msra.mxu0 %v524
        %844 = vmatpush.bf16.msra.mxu0 %v508
        %845 = vmatmul.bf16.gmra.mxu0 %v569
        %v846 = vpop.f32.mrf.mxu0
        %v847 = vadd.f32 0.0, %v846
        %v848 = vpop.f32.mrf.mxu0
        %v849 = vadd.f32 0.0, %v848
        %850 = vmatmul.bf16.gmra.mxu0 %v572
        %v851 = vpop.f32.mrf.mxu0
        %v852 = vadd.f32 0.0, %v851
        %v853 = vpop.f32.mrf.mxu0
        %v854 = vadd.f32 0.0, %v853
        %855 = vmatmul.bf16.gmra.mxu0 %v575
        %v856 = vpop.f32.mrf.mxu0
        %v857 = vadd.f32 0.0, %v856
        %v858 = vpop.f32.mrf.mxu0
        %v859 = vadd.f32 0.0, %v858
        %860 = vmatmul.bf16.gmra.mxu0 %v578
        %v861 = vpop.f32.mrf.mxu0
        %v862 = vadd.f32 0.0, %v861
        %v863 = vpop.f32.mrf.mxu0
        %v864 = vadd.f32 0.0, %v863
        %865 = vmatmul.bf16.gmra.mxu0 %v581
        %v866 = vpop.f32.mrf.mxu0
        %v867 = vadd.f32 0.0, %v866
        %v868 = vpop.f32.mrf.mxu0
        %v869 = vadd.f32 0.0, %v868
        %870 = vmatmul.bf16.gmra.mxu0 %v584
        %v871 = vpop.f32.mrf.mxu0
        %v872 = vadd.f32 0.0, %v871
        %v873 = vpop.f32.mrf.mxu0
        %v874 = vadd.f32 0.0, %v873
        %875 = vmatmul.bf16.gmra.mxu0 %v587
        %v876 = vpop.f32.mrf.mxu0
        %v877 = vadd.f32 0.0, %v876
        %v878 = vpop.f32.mrf.mxu0
        %v879 = vadd.f32 0.0, %v878
        %880 = vmatmul.bf16.gmra.mxu0 %v590
        %v881 = vpop.f32.mrf.mxu0
        %v882 = vadd.f32 0.0, %v881
        %v883 = vpop.f32.mrf.mxu0
        %v884 = vadd.f32 0.0, %v883
        %885 = vdwg.mxu0
        %886 = vmatpush.bf16.msra.mxu0 0
        %887 = vmatpush.bf16.msra.mxu0 0
        %888 = vmatpush.bf16.msra.mxu0 0
        %889 = vmatpush.bf16.msra.mxu0 0
        %890 = vmatpush.bf16.msra.mxu0 0
        %891 = vmatpush.bf16.msra.mxu0 0
        %892 = vmatpush.bf16.msra.mxu0 %v525
        %893 = vmatpush.bf16.msra.mxu0 %v509
        %894 = vmatmul.bf16.gmra.mxu0 %v569
        %v895 = vpop.f32.mrf.mxu0
        %v896 = vadd.f32 0.0, %v895
        %v897 = vpop.f32.mrf.mxu0
        %v898 = vadd.f32 0.0, %v897
        %899 = vmatmul.bf16.gmra.mxu0 %v572
        %v900 = vpop.f32.mrf.mxu0
        %v901 = vadd.f32 0.0, %v900
        %v902 = vpop.f32.mrf.mxu0
        %v903 = vadd.f32 0.0, %v902
        %904 = vmatmul.bf16.gmra.mxu0 %v575
        %v905 = vpop.f32.mrf.mxu0
        %v906 = vadd.f32 0.0, %v905
        %v907 = vpop.f32.mrf.mxu0
        %v908 = vadd.f32 0.0, %v907
        %909 = vmatmul.bf16.gmra.mxu0 %v578
        %v910 = vpop.f32.mrf.mxu0
        %v911 = vadd.f32 0.0, %v910
        %v912 = vpop.f32.mrf.mxu0
        %v913 = vadd.f32 0.0, %v912
        %914 = vmatmul.bf16.gmra.mxu0 %v581
        %v915 = vpop.f32.mrf.mxu0
        %v916 = vadd.f32 0.0, %v915
        %v917 = vpop.f32.mrf.mxu0
        %v918 = vadd.f32 0.0, %v917
        %919 = vmatmul.bf16.gmra.mxu0 %v584
        %v920 = vpop.f32.mrf.mxu0
        %v921 = vadd.f32 0.0, %v920
        %v922 = vpop.f32.mrf.mxu0
        %v923 = vadd.f32 0.0, %v922
        %924 = vmatmul.bf16.gmra.mxu0 %v587
        %v925 = vpop.f32.mrf.mxu0
        %v926 = vadd.f32 0.0, %v925
        %v927 = vpop.f32.mrf.mxu0
        %v928 = vadd.f32 0.0, %v927
        %929 = vmatmul.bf16.gmra.mxu0 %v590
        %v930 = vpop.f32.mrf.mxu0
        %v931 = vadd.f32 0.0, %v930
        %v932 = vpop.f32.mrf.mxu0
        %v933 = vadd.f32 0.0, %v932
        %934 = vdwg.mxu0
        %935 = vmatpush.bf16.msra.mxu0 0
        %936 = vmatpush.bf16.msra.mxu0 0
        %937 = vmatpush.bf16.msra.mxu0 0
        %938 = vmatpush.bf16.msra.mxu0 0
        %939 = vmatpush.bf16.msra.mxu0 0
        %940 = vmatpush.bf16.msra.mxu0 0
        %941 = vmatpush.bf16.msra.mxu0 %v526
        %942 = vmatpush.bf16.msra.mxu0 %v510
        %943 = vmatmul.bf16.gmra.mxu0 %v569
        %v944 = vpop.f32.mrf.mxu0
        %v945 = vadd.f32 0.0, %v944
        %v946 = vpop.f32.mrf.mxu0
        %v947 = vadd.f32 0.0, %v946
        %948 = vmatmul.bf16.gmra.mxu0 %v572
        %v949 = vpop.f32.mrf.mxu0
        %v950 = vadd.f32 0.0, %v949
        %v951 = vpop.f32.mrf.mxu0
        %v952 = vadd.f32 0.0, %v951
        %953 = vmatmul.bf16.gmra.mxu0 %v575
        %v954 = vpop.f32.mrf.mxu0
        %v955 = vadd.f32 0.0, %v954
        %v956 = vpop.f32.mrf.mxu0
        %v957 = vadd.f32 0.0, %v956
        %958 = vmatmul.bf16.gmra.mxu0 %v578
        %v959 = vpop.f32.mrf.mxu0
        %v960 = vadd.f32 0.0, %v959
        %v961 = vpop.f32.mrf.mxu0
        %v962 = vadd.f32 0.0, %v961
        %963 = vmatmul.bf16.gmra.mxu0 %v581
        %v964 = vpop.f32.mrf.mxu0
        %v965 = vadd.f32 0.0, %v964
        %v966 = vpop.f32.mrf.mxu0
        %v967 = vadd.f32 0.0, %v966
        %968 = vmatmul.bf16.gmra.mxu0 %v584
        %v969 = vpop.f32.mrf.mxu0
        %v970 = vadd.f32 0.0, %v969
        %v971 = vpop.f32.mrf.mxu0
        %v972 = vadd.f32 0.0, %v971
        %973 = vmatmul.bf16.gmra.mxu0 %v587
        %v974 = vpop.f32.mrf.mxu0
        %v975 = vadd.f32 0.0, %v974
        %v976 = vpop.f32.mrf.mxu0
        %v977 = vadd.f32 0.0, %v976
        %978 = vmatmul.bf16.gmra.mxu0 %v590
        %v979 = vpop.f32.mrf.mxu0
        %v980 = vadd.f32 0.0, %v979
        %v981 = vpop.f32.mrf.mxu0
        %v982 = vadd.f32 0.0, %v981
        %983 = vdwg.mxu0
        %984 = vmatpush.bf16.msra.mxu0 0
        %985 = vmatpush.bf16.msra.mxu0 0
        %986 = vmatpush.bf16.msra.mxu0 0
        %987 = vmatpush.bf16.msra.mxu0 0
        %988 = vmatpush.bf16.msra.mxu0 0
        %989 = vmatpush.bf16.msra.mxu0 0
        %990 = vmatpush.bf16.msra.mxu0 %v527
        %991 = vmatpush.bf16.msra.mxu0 %v511
        %992 = vmatmul.bf16.gmra.mxu0 %v569
        %v993 = vpop.f32.mrf.mxu0
        %v994 = vadd.f32 0.0, %v993
        %v995 = vpop.f32.mrf.mxu0
        %v996 = vadd.f32 0.0, %v995
        %997 = vmatmul.bf16.gmra.mxu0 %v572
        %v998 = vpop.f32.mrf.mxu0
        %v999 = vadd.f32 0.0, %v998
        %v1000 = vpop.f32.mrf.mxu0
        %v1001 = vadd.f32 0.0, %v1000
        %1002 = vmatmul.bf16.gmra.mxu0 %v575
        %v1003 = vpop.f32.mrf.mxu0
        %v1004 = vadd.f32 0.0, %v1003
        %v1005 = vpop.f32.mrf.mxu0
        %v1006 = vadd.f32 0.0, %v1005
        %1007 = vmatmul.bf16.gmra.mxu0 %v578
        %v1008 = vpop.f32.mrf.mxu0
        %v1009 = vadd.f32 0.0, %v1008
        %v1010 = vpop.f32.mrf.mxu0
        %v1011 = vadd.f32 0.0, %v1010
        %1012 = vmatmul.bf16.gmra.mxu0 %v581
        %v1013 = vpop.f32.mrf.mxu0
        %v1014 = vadd.f32 0.0, %v1013
        %v1015 = vpop.f32.mrf.mxu0
        %v1016 = vadd.f32 0.0, %v1015
        %1017 = vmatmul.bf16.gmra.mxu0 %v584
        %v1018 = vpop.f32.mrf.mxu0
        %v1019 = vadd.f32 0.0, %v1018
        %v1020 = vpop.f32.mrf.mxu0
        %v1021 = vadd.f32 0.0, %v1020
        %1022 = vmatmul.bf16.gmra.mxu0 %v587
        %v1023 = vpop.f32.mrf.mxu0
        %v1024 = vadd.f32 0.0, %v1023
        %v1025 = vpop.f32.mrf.mxu0
        %v1026 = vadd.f32 0.0, %v1025
        %1027 = vmatmul.bf16.gmra.mxu0 %v590
        %v1028 = vpop.f32.mrf.mxu0
        %v1029 = vadd.f32 0.0, %v1028
        %v1030 = vpop.f32.mrf.mxu0
        %v1031 = vadd.f32 0.0, %v1030
        %1032 = vdwg.mxu0
        %1033 = vmatpush.bf16.msra.mxu0 0
        %1034 = vmatpush.bf16.msra.mxu0 0
        %1035 = vmatpush.bf16.msra.mxu0 0
        %1036 = vmatpush.bf16.msra.mxu0 0
        %1037 = vmatpush.bf16.msra.mxu0 0
        %1038 = vmatpush.bf16.msra.mxu0 0
        %1039 = vmatpush.bf16.msra.mxu0 %v528
        %1040 = vmatpush.bf16.msra.mxu0 %v512
        %1041 = vmatmul.bf16.gmra.mxu0 %v569
        %v1042 = vpop.f32.mrf.mxu0
        %v1043 = vadd.f32 0.0, %v1042
        %v1044 = vpop.f32.mrf.mxu0
        %v1045 = vadd.f32 0.0, %v1044
        %1046 = vmatmul.bf16.gmra.mxu0 %v572
        %v1047 = vpop.f32.mrf.mxu0
        %v1048 = vadd.f32 0.0, %v1047
        %v1049 = vpop.f32.mrf.mxu0
        %v1050 = vadd.f32 0.0, %v1049
        %1051 = vmatmul.bf16.gmra.mxu0 %v575
        %v1052 = vpop.f32.mrf.mxu0
        %v1053 = vadd.f32 0.0, %v1052
        %v1054 = vpop.f32.mrf.mxu0
        %v1055 = vadd.f32 0.0, %v1054
        %1056 = vmatmul.bf16.gmra.mxu0 %v578
        %v1057 = vpop.f32.mrf.mxu0
        %v1058 = vadd.f32 0.0, %v1057
        %v1059 = vpop.f32.mrf.mxu0
        %v1060 = vadd.f32 0.0, %v1059
        %1061 = vmatmul.bf16.gmra.mxu0 %v581
        %v1062 = vpop.f32.mrf.mxu0
        %v1063 = vadd.f32 0.0, %v1062
        %v1064 = vpop.f32.mrf.mxu0
        %v1065 = vadd.f32 0.0, %v1064
        %1066 = vmatmul.bf16.gmra.mxu0 %v584
        %v1067 = vpop.f32.mrf.mxu0
        %v1068 = vadd.f32 0.0, %v1067
        %v1069 = vpop.f32.mrf.mxu0
        %v1070 = vadd.f32 0.0, %v1069
        %1071 = vmatmul.bf16.gmra.mxu0 %v587
        %v1072 = vpop.f32.mrf.mxu0
        %v1073 = vadd.f32 0.0, %v1072
        %v1074 = vpop.f32.mrf.mxu0
        %v1075 = vadd.f32 0.0, %v1074
        %1076 = vmatmul.bf16.gmra.mxu0 %v590
        %v1077 = vpop.f32.mrf.mxu0
        %v1078 = vadd.f32 0.0, %v1077
        %v1079 = vpop.f32.mrf.mxu0
        %v1080 = vadd.f32 0.0, %v1079
        %1081 = vdwg.mxu0
        %1082 = vmatpush.bf16.msra.mxu0 0
        %1083 = vmatpush.bf16.msra.mxu0 0
        %1084 = vmatpush.bf16.msra.mxu0 0
        %1085 = vmatpush.bf16.msra.mxu0 0
        %1086 = vmatpush.bf16.msra.mxu0 0
        %1087 = vmatpush.bf16.msra.mxu0 0
        %1088 = vmatpush.bf16.msra.mxu0 %v529
        %1089 = vmatpush.bf16.msra.mxu0 %v513
        %1090 = vmatmul.bf16.gmra.mxu0 %v569
        %v1091 = vpop.f32.mrf.mxu0
        %v1092 = vadd.f32 0.0, %v1091
        %v1093 = vpop.f32.mrf.mxu0
        %v1094 = vadd.f32 0.0, %v1093
        %1095 = vmatmul.bf16.gmra.mxu0 %v572
        %v1096 = vpop.f32.mrf.mxu0
        %v1097 = vadd.f32 0.0, %v1096
        %v1098 = vpop.f32.mrf.mxu0
        %v1099 = vadd.f32 0.0, %v1098
        %1100 = vmatmul.bf16.gmra.mxu0 %v575
        %v1101 = vpop.f32.mrf.mxu0
        %v1102 = vadd.f32 0.0, %v1101
        %v1103 = vpop.f32.mrf.mxu0
        %v1104 = vadd.f32 0.0, %v1103
        %1105 = vmatmul.bf16.gmra.mxu0 %v578
        %v1106 = vpop.f32.mrf.mxu0
        %v1107 = vadd.f32 0.0, %v1106
        %v1108 = vpop.f32.mrf.mxu0
        %v1109 = vadd.f32 0.0, %v1108
        %1110 = vmatmul.bf16.gmra.mxu0 %v581
        %v1111 = vpop.f32.mrf.mxu0
        %v1112 = vadd.f32 0.0, %v1111
        %v1113 = vpop.f32.mrf.mxu0
        %v1114 = vadd.f32 0.0, %v1113
        %1115 = vmatmul.bf16.gmra.mxu0 %v584
        %v1116 = vpop.f32.mrf.mxu0
        %v1117 = vadd.f32 0.0, %v1116
        %v1118 = vpop.f32.mrf.mxu0
        %v1119 = vadd.f32 0.0, %v1118
        %1120 = vmatmul.bf16.gmra.mxu0 %v587
        %v1121 = vpop.f32.mrf.mxu0
        %v1122 = vadd.f32 0.0, %v1121
        %v1123 = vpop.f32.mrf.mxu0
        %v1124 = vadd.f32 0.0, %v1123
        %1125 = vmatmul.bf16.gmra.mxu0 %v590
        %v1126 = vpop.f32.mrf.mxu0
        %v1127 = vadd.f32 0.0, %v1126
        %v1128 = vpop.f32.mrf.mxu0
        %v1129 = vadd.f32 0.0, %v1128
        %1130 = vdwg.mxu0
        %1131 = vmatpush.bf16.msra.mxu0 0
        %1132 = vmatpush.bf16.msra.mxu0 0
        %1133 = vmatpush.bf16.msra.mxu0 0
        %1134 = vmatpush.bf16.msra.mxu0 0
        %1135 = vmatpush.bf16.msra.mxu0 0
        %1136 = vmatpush.bf16.msra.mxu0 0
        %1137 = vmatpush.bf16.msra.mxu0 %v530
        %1138 = vmatpush.bf16.msra.mxu0 %v514
        %1139 = vmatmul.bf16.gmra.mxu0 %v569
        %v1140 = vpop.f32.mrf.mxu0
        %v1141 = vadd.f32 0.0, %v1140
        %v1142 = vpop.f32.mrf.mxu0
        %v1143 = vadd.f32 0.0, %v1142
        %1144 = vmatmul.bf16.gmra.mxu0 %v572
        %v1145 = vpop.f32.mrf.mxu0
        %v1146 = vadd.f32 0.0, %v1145
        %v1147 = vpop.f32.mrf.mxu0
        %v1148 = vadd.f32 0.0, %v1147
        %1149 = vmatmul.bf16.gmra.mxu0 %v575
        %v1150 = vpop.f32.mrf.mxu0
        %v1151 = vadd.f32 0.0, %v1150
        %v1152 = vpop.f32.mrf.mxu0
        %v1153 = vadd.f32 0.0, %v1152
        %1154 = vmatmul.bf16.gmra.mxu0 %v578
        %v1155 = vpop.f32.mrf.mxu0
        %v1156 = vadd.f32 0.0, %v1155
        %v1157 = vpop.f32.mrf.mxu0
        %v1158 = vadd.f32 0.0, %v1157
        %1159 = vmatmul.bf16.gmra.mxu0 %v581
        %v1160 = vpop.f32.mrf.mxu0
        %v1161 = vadd.f32 0.0, %v1160
        %v1162 = vpop.f32.mrf.mxu0
        %v1163 = vadd.f32 0.0, %v1162
        %1164 = vmatmul.bf16.gmra.mxu0 %v584
        %v1165 = vpop.f32.mrf.mxu0
        %v1166 = vadd.f32 0.0, %v1165
        %v1167 = vpop.f32.mrf.mxu0
        %v1168 = vadd.f32 0.0, %v1167
        %1169 = vmatmul.bf16.gmra.mxu0 %v587
        %v1170 = vpop.f32.mrf.mxu0
        %v1171 = vadd.f32 0.0, %v1170
        %v1172 = vpop.f32.mrf.mxu0
        %v1173 = vadd.f32 0.0, %v1172
        %1174 = vmatmul.bf16.gmra.mxu0 %v590
        %v1175 = vpop.f32.mrf.mxu0
        %v1176 = vadd.f32 0.0, %v1175
        %v1177 = vpop.f32.mrf.mxu0
        %v1178 = vadd.f32 0.0, %v1177
        %1179 = vdwg.mxu0
        %1180 = vmatpush.bf16.msra.mxu0 0
        %1181 = vmatpush.bf16.msra.mxu0 0
        %1182 = vmatpush.bf16.msra.mxu0 0
        %1183 = vmatpush.bf16.msra.mxu0 0
        %1184 = vmatpush.bf16.msra.mxu0 0
        %1185 = vmatpush.bf16.msra.mxu0 0
        %1186 = vmatpush.bf16.msra.mxu0 %v531
        %1187 = vmatpush.bf16.msra.mxu0 %v515
        %1188 = vmatmul.bf16.gmra.mxu0 %v569
        %v1189 = vpop.f32.mrf.mxu0
        %v1190 = vadd.f32 0.0, %v1189
        %v1191 = vpop.f32.mrf.mxu0
        %v1192 = vadd.f32 0.0, %v1191
        %1193 = vmatmul.bf16.gmra.mxu0 %v572
        %v1194 = vpop.f32.mrf.mxu0
        %v1195 = vadd.f32 0.0, %v1194
        %v1196 = vpop.f32.mrf.mxu0
        %v1197 = vadd.f32 0.0, %v1196
        %1198 = vmatmul.bf16.gmra.mxu0 %v575
        %v1199 = vpop.f32.mrf.mxu0
        %v1200 = vadd.f32 0.0, %v1199
        %v1201 = vpop.f32.mrf.mxu0
        %v1202 = vadd.f32 0.0, %v1201
        %1203 = vmatmul.bf16.gmra.mxu0 %v578
        %v1204 = vpop.f32.mrf.mxu0
        %v1205 = vadd.f32 0.0, %v1204
        %v1206 = vpop.f32.mrf.mxu0
        %v1207 = vadd.f32 0.0, %v1206
        %1208 = vmatmul.bf16.gmra.mxu0 %v581
        %v1209 = vpop.f32.mrf.mxu0
        %v1210 = vadd.f32 0.0, %v1209
        %v1211 = vpop.f32.mrf.mxu0
        %v1212 = vadd.f32 0.0, %v1211
        %1213 = vmatmul.bf16.gmra.mxu0 %v584
        %v1214 = vpop.f32.mrf.mxu0
        %v1215 = vadd.f32 0.0, %v1214
        %v1216 = vpop.f32.mrf.mxu0
        %v1217 = vadd.f32 0.0, %v1216
        %1218 = vmatmul.bf16.gmra.mxu0 %v587
        %v1219 = vpop.f32.mrf.mxu0
        %v1220 = vadd.f32 0.0, %v1219
        %v1221 = vpop.f32.mrf.mxu0
        %v1222 = vadd.f32 0.0, %v1221
        %1223 = vmatmul.bf16.gmra.mxu0 %v590
        %v1224 = vpop.f32.mrf.mxu0
        %v1225 = vadd.f32 0.0, %v1224
        %v1226 = vpop.f32.mrf.mxu0
        %v1227 = vadd.f32 0.0, %v1226
        %1228 = vdwg.mxu0
        %1229 = vmatpush.bf16.msra.mxu0 0
        %1230 = vmatpush.bf16.msra.mxu0 0
        %1231 = vmatpush.bf16.msra.mxu0 0
        %1232 = vmatpush.bf16.msra.mxu0 0
        %1233 = vmatpush.bf16.msra.mxu0 0
        %1234 = vmatpush.bf16.msra.mxu0 0
        %1235 = vmatpush.bf16.msra.mxu0 %v532
        %1236 = vmatpush.bf16.msra.mxu0 %v516
        %1237 = vmatmul.bf16.gmra.mxu0 %v569
        %v1238 = vpop.f32.mrf.mxu0
        %v1239 = vadd.f32 0.0, %v1238
        %v1240 = vpop.f32.mrf.mxu0
        %v1241 = vadd.f32 0.0, %v1240
        %1242 = vmatmul.bf16.gmra.mxu0 %v572
        %v1243 = vpop.f32.mrf.mxu0
        %v1244 = vadd.f32 0.0, %v1243
        %v1245 = vpop.f32.mrf.mxu0
        %v1246 = vadd.f32 0.0, %v1245
        %1247 = vmatmul.bf16.gmra.mxu0 %v575
        %v1248 = vpop.f32.mrf.mxu0
        %v1249 = vadd.f32 0.0, %v1248
        %v1250 = vpop.f32.mrf.mxu0
        %v1251 = vadd.f32 0.0, %v1250
        %1252 = vmatmul.bf16.gmra.mxu0 %v578
        %v1253 = vpop.f32.mrf.mxu0
        %v1254 = vadd.f32 0.0, %v1253
        %v1255 = vpop.f32.mrf.mxu0
        %v1256 = vadd.f32 0.0, %v1255
        %1257 = vmatmul.bf16.gmra.mxu0 %v581
        %v1258 = vpop.f32.mrf.mxu0
        %v1259 = vadd.f32 0.0, %v1258
        %v1260 = vpop.f32.mrf.mxu0
        %v1261 = vadd.f32 0.0, %v1260
        %1262 = vmatmul.bf16.gmra.mxu0 %v584
        %v1263 = vpop.f32.mrf.mxu0
        %v1264 = vadd.f32 0.0, %v1263
        %v1265 = vpop.f32.mrf.mxu0
        %v1266 = vadd.f32 0.0, %v1265
        %1267 = vmatmul.bf16.gmra.mxu0 %v587
        %v1268 = vpop.f32.mrf.mxu0
        %v1269 = vadd.f32 0.0, %v1268
        %v1270 = vpop.f32.mrf.mxu0
        %v1271 = vadd.f32 0.0, %v1270
        %1272 = vmatmul.bf16.gmra.mxu0 %v590
        %v1273 = vpop.f32.mrf.mxu0
        %v1274 = vadd.f32 0.0, %v1273
        %v1275 = vpop.f32.mrf.mxu0
        %v1276 = vadd.f32 0.0, %v1275
        %1277 = vdwg.mxu0
        %1278 = vmatpush.bf16.msra.mxu0 0
        %1279 = vmatpush.bf16.msra.mxu0 0
        %1280 = vmatpush.bf16.msra.mxu0 0
        %1281 = vmatpush.bf16.msra.mxu0 0
        %1282 = vmatpush.bf16.msra.mxu0 0
        %1283 = vmatpush.bf16.msra.mxu0 0
        %1284 = vmatpush.bf16.msra.mxu0 %v533
        %1285 = vmatpush.bf16.msra.mxu0 %v517
        %1286 = vmatmul.bf16.gmra.mxu0 %v569
        %v1287 = vpop.f32.mrf.mxu0
        %v1288 = vadd.f32 0.0, %v1287
        %v1289 = vpop.f32.mrf.mxu0
        %v1290 = vadd.f32 0.0, %v1289
        %1291 = vmatmul.bf16.gmra.mxu0 %v572
        %v1292 = vpop.f32.mrf.mxu0
        %v1293 = vadd.f32 0.0, %v1292
        %v1294 = vpop.f32.mrf.mxu0
        %v1295 = vadd.f32 0.0, %v1294
        %1296 = vmatmul.bf16.gmra.mxu0 %v575
        %v1297 = vpop.f32.mrf.mxu0
        %v1298 = vadd.f32 0.0, %v1297
        %v1299 = vpop.f32.mrf.mxu0
        %v1300 = vadd.f32 0.0, %v1299
        %1301 = vmatmul.bf16.gmra.mxu0 %v578
        %v1302 = vpop.f32.mrf.mxu0
        %v1303 = vadd.f32 0.0, %v1302
        %v1304 = vpop.f32.mrf.mxu0
        %v1305 = vadd.f32 0.0, %v1304
        %1306 = vmatmul.bf16.gmra.mxu0 %v581
        %v1307 = vpop.f32.mrf.mxu0
        %v1308 = vadd.f32 0.0, %v1307
        %v1309 = vpop.f32.mrf.mxu0
        %v1310 = vadd.f32 0.0, %v1309
        %1311 = vmatmul.bf16.gmra.mxu0 %v584
        %v1312 = vpop.f32.mrf.mxu0
        %v1313 = vadd.f32 0.0, %v1312
        %v1314 = vpop.f32.mrf.mxu0
        %v1315 = vadd.f32 0.0, %v1314
        %1316 = vmatmul.bf16.gmra.mxu0 %v587
        %v1317 = vpop.f32.mrf.mxu0
        %v1318 = vadd.f32 0.0, %v1317
        %v1319 = vpop.f32.mrf.mxu0
        %v1320 = vadd.f32 0.0, %v1319
        %1321 = vmatmul.bf16.gmra.mxu0 %v590
        %v1322 = vpop.f32.mrf.mxu0
        %v1323 = vadd.f32 0.0, %v1322
        %v1324 = vpop.f32.mrf.mxu0
        %v1325 = vadd.f32 0.0, %v1324
        %1326 = vdwg.mxu0
        %1327 = vmatpush.bf16.msra.mxu0 0
        %1328 = vmatpush.bf16.msra.mxu0 0
        %1329 = vmatpush.bf16.msra.mxu0 0
        %1330 = vmatpush.bf16.msra.mxu0 0
        %1331 = vmatpush.bf16.msra.mxu0 0
        %1332 = vmatpush.bf16.msra.mxu0 0
        %1333 = vmatpush.bf16.msra.mxu0 %v534
        %1334 = vmatpush.bf16.msra.mxu0 %v518
        %1335 = vmatmul.bf16.gmra.mxu0 %v569
        %v1336 = vpop.f32.mrf.mxu0
        %v1337 = vadd.f32 0.0, %v1336
        %v1338 = vpop.f32.mrf.mxu0
        %v1339 = vadd.f32 0.0, %v1338
        %1340 = vmatmul.bf16.gmra.mxu0 %v572
        %v1341 = vpop.f32.mrf.mxu0
        %v1342 = vadd.f32 0.0, %v1341
        %v1343 = vpop.f32.mrf.mxu0
        %v1344 = vadd.f32 0.0, %v1343
        %1345 = vmatmul.bf16.gmra.mxu0 %v575
        %v1346 = vpop.f32.mrf.mxu0
        %v1347 = vadd.f32 0.0, %v1346
        %v1348 = vpop.f32.mrf.mxu0
        %v1349 = vadd.f32 0.0, %v1348
        %1350 = vmatmul.bf16.gmra.mxu0 %v578
        %v1351 = vpop.f32.mrf.mxu0
        %v1352 = vadd.f32 0.0, %v1351
        %v1353 = vpop.f32.mrf.mxu0
        %v1354 = vadd.f32 0.0, %v1353
        %1355 = vmatmul.bf16.gmra.mxu0 %v581
        %v1356 = vpop.f32.mrf.mxu0
        %v1357 = vadd.f32 0.0, %v1356
        %v1358 = vpop.f32.mrf.mxu0
        %v1359 = vadd.f32 0.0, %v1358
        %1360 = vmatmul.bf16.gmra.mxu0 %v584
        %v1361 = vpop.f32.mrf.mxu0
        %v1362 = vadd.f32 0.0, %v1361
        %v1363 = vpop.f32.mrf.mxu0
        %v1364 = vadd.f32 0.0, %v1363
        %1365 = vmatmul.bf16.gmra.mxu0 %v587
        %v1366 = vpop.f32.mrf.mxu0
        %v1367 = vadd.f32 0.0, %v1366
        %v1368 = vpop.f32.mrf.mxu0
        %v1369 = vadd.f32 0.0, %v1368
        %1370 = vmatmul.bf16.gmra.mxu0 %v590
        %v1371 = vpop.f32.mrf.mxu0
        %v1372 = vadd.f32 0.0, %v1371
        %v1373 = vpop.f32.mrf.mxu0
        %v1374 = vadd.f32 0.0, %v1373
        %1375 = vdwg.mxu0
        %1377 = vset.pattern.permute.xlu0 0
        %1378 = vperm.xlu0 %1377, %v325
        %v1379 = vpop.permute.xlu0 %1378
        %1382 = vset.pattern.permute.xlu0 0
        %1383 = vperm.xlu0 %1382, %v326
        %v1384 = vpop.permute.xlu0 %1383
        %1387 = vset.pattern.permute.xlu0 0
        %1388 = vperm.xlu0 %1387, %v327
        %v1389 = vpop.permute.xlu0 %1388
        %1392 = vset.pattern.permute.xlu0 0
        %1393 = vperm.xlu0 %1392, %v328
        %v1394 = vpop.permute.xlu0 %1393
        %1397 = vset.pattern.permute.xlu0 0
        %1398 = vperm.xlu0 %1397, %v329
        %v1399 = vpop.permute.xlu0 %1398
        %1402 = vset.pattern.permute.xlu0 0
        %1403 = vperm.xlu0 %1402, %v330
        %v1404 = vpop.permute.xlu0 %1403
        %1407 = vset.pattern.permute.xlu0 0
        %1408 = vperm.xlu0 %1407, %v331
        %v1409 = vpop.permute.xlu0 %1408
        %1412 = vset.pattern.permute.xlu0 0
        %1413 = vperm.xlu0 %1412, %v332
        %v1414 = vpop.permute.xlu0 %1413
        %v1416 = vadd.f32 %v602, %v1379
        %v1417 = vadd.f32 %v651, %v1379
        %v1418 = vadd.f32 %v700, %v1379
        %v1419 = vadd.f32 %v749, %v1379
        %v1420 = vadd.f32 %v798, %v1379
        %v1421 = vadd.f32 %v847, %v1379
        %v1422 = vadd.f32 %v896, %v1379
        %v1423 = vadd.f32 %v945, %v1379
        %v1424 = vadd.f32 %v994, %v1379
        %v1425 = vadd.f32 %v1043, %v1379
        %v1426 = vadd.f32 %v1092, %v1379
        %v1427 = vadd.f32 %v1141, %v1379
        %v1428 = vadd.f32 %v1190, %v1379
        %v1429 = vadd.f32 %v1239, %v1379
        %v1430 = vadd.f32 %v1288, %v1379
        %v1431 = vadd.f32 %v1337, %v1379
        %v1432 = vadd.f32 %v604, %v1384
        %v1433 = vadd.f32 %v653, %v1384
        %v1434 = vadd.f32 %v702, %v1384
        %v1435 = vadd.f32 %v751, %v1384
        %v1436 = vadd.f32 %v800, %v1384
        %v1437 = vadd.f32 %v849, %v1384
        %v1438 = vadd.f32 %v898, %v1384
        %v1439 = vadd.f32 %v947, %v1384
        %v1440 = vadd.f32 %v996, %v1384
        %v1441 = vadd.f32 %v1045, %v1384
        %v1442 = vadd.f32 %v1094, %v1384
        %v1443 = vadd.f32 %v1143, %v1384
        %v1444 = vadd.f32 %v1192, %v1384
        %v1445 = vadd.f32 %v1241, %v1384
        %v1446 = vadd.f32 %v1290, %v1384
        %v1447 = vadd.f32 %v1339, %v1384
        %v1448 = vadd.f32 %v607, %v1389
        %v1449 = vadd.f32 %v656, %v1389
        %v1450 = vadd.f32 %v705, %v1389
        %v1451 = vadd.f32 %v754, %v1389
        %v1452 = vadd.f32 %v803, %v1389
        %v1453 = vadd.f32 %v852, %v1389
        %v1454 = vadd.f32 %v901, %v1389
        %v1455 = vadd.f32 %v950, %v1389
        %v1456 = vadd.f32 %v999, %v1389
        %v1457 = vadd.f32 %v1048, %v1389
        %v1458 = vadd.f32 %v1097, %v1389
        %v1459 = vadd.f32 %v1146, %v1389
        %v1460 = vadd.f32 %v1195, %v1389
        %v1461 = vadd.f32 %v1244, %v1389
        %v1462 = vadd.f32 %v1293, %v1389
        %v1463 = vadd.f32 %v1342, %v1389
        %v1464 = vadd.f32 %v609, %v1394
        %v1465 = vadd.f32 %v658, %v1394
        %v1466 = vadd.f32 %v707, %v1394
        %v1467 = vadd.f32 %v756, %v1394
        %v1468 = vadd.f32 %v805, %v1394
        %v1469 = vadd.f32 %v854, %v1394
        %v1470 = vadd.f32 %v903, %v1394
        %v1471 = vadd.f32 %v952, %v1394
        %v1472 = vadd.f32 %v1001, %v1394
        %v1473 = vadd.f32 %v1050, %v1394
        %v1474 = vadd.f32 %v1099, %v1394
        %v1475 = vadd.f32 %v1148, %v1394
        %v1476 = vadd.f32 %v1197, %v1394
        %v1477 = vadd.f32 %v1246, %v1394
        %v1478 = vadd.f32 %v1295, %v1394
        %v1479 = vadd.f32 %v1344, %v1394
        %v1480 = vadd.f32 %v612, %v1399
        %v1481 = vadd.f32 %v661, %v1399
        %v1482 = vadd.f32 %v710, %v1399
        %v1483 = vadd.f32 %v759, %v1399
        %v1484 = vadd.f32 %v808, %v1399
        %v1485 = vadd.f32 %v857, %v1399
        %v1486 = vadd.f32 %v906, %v1399
        %v1487 = vadd.f32 %v955, %v1399
        %v1488 = vadd.f32 %v1004, %v1399
        %v1489 = vadd.f32 %v1053, %v1399
        %v1490 = vadd.f32 %v1102, %v1399
        %v1491 = vadd.f32 %v1151, %v1399
        %v1492 = vadd.f32 %v1200, %v1399
        %v1493 = vadd.f32 %v1249, %v1399
        %v1494 = vadd.f32 %v1298, %v1399
        %v1495 = vadd.f32 %v1347, %v1399
        %v1496 = vadd.f32 %v614, %v1404
        %v1497 = vadd.f32 %v663, %v1404
        %v1498 = vadd.f32 %v712, %v1404
        %v1499 = vadd.f32 %v761, %v1404
        %v1500 = vadd.f32 %v810, %v1404
        %v1501 = vadd.f32 %v859, %v1404
        %v1502 = vadd.f32 %v908, %v1404
        %v1503 = vadd.f32 %v957, %v1404
        %v1504 = vadd.f32 %v1006, %v1404
        %v1505 = vadd.f32 %v1055, %v1404
        %v1506 = vadd.f32 %v1104, %v1404
        %v1507 = vadd.f32 %v1153, %v1404
        %v1508 = vadd.f32 %v1202, %v1404
        %v1509 = vadd.f32 %v1251, %v1404
        %v1510 = vadd.f32 %v1300, %v1404
        %v1511 = vadd.f32 %v1349, %v1404
        %v1512 = vadd.f32 %v617, %v1409
        %v1513 = vadd.f32 %v666, %v1409
        %v1514 = vadd.f32 %v715, %v1409
        %v1515 = vadd.f32 %v764, %v1409
        %v1516 = vadd.f32 %v813, %v1409
        %v1517 = vadd.f32 %v862, %v1409
        %v1518 = vadd.f32 %v911, %v1409
        %v1519 = vadd.f32 %v960, %v1409
        %v1520 = vadd.f32 %v1009, %v1409
        %v1521 = vadd.f32 %v1058, %v1409
        %v1522 = vadd.f32 %v1107, %v1409
        %v1523 = vadd.f32 %v1156, %v1409
        %v1524 = vadd.f32 %v1205, %v1409
        %v1525 = vadd.f32 %v1254, %v1409
        %v1526 = vadd.f32 %v1303, %v1409
        %v1527 = vadd.f32 %v1352, %v1409
        %v1528 = vadd.f32 %v619, %v1414
        %v1529 = vadd.f32 %v668, %v1414
        %v1530 = vadd.f32 %v717, %v1414
        %v1531 = vadd.f32 %v766, %v1414
        %v1532 = vadd.f32 %v815, %v1414
        %v1533 = vadd.f32 %v864, %v1414
        %v1534 = vadd.f32 %v913, %v1414
        %v1535 = vadd.f32 %v962, %v1414
        %v1536 = vadd.f32 %v1011, %v1414
        %v1537 = vadd.f32 %v1060, %v1414
        %v1538 = vadd.f32 %v1109, %v1414
        %v1539 = vadd.f32 %v1158, %v1414
        %v1540 = vadd.f32 %v1207, %v1414
        %v1541 = vadd.f32 %v1256, %v1414
        %v1542 = vadd.f32 %v1305, %v1414
        %v1543 = vadd.f32 %v1354, %v1414
        %v1544 = vmax.f32 %v1416, 0.0
        %v1545 = vmax.f32 %v1417, 0.0
        %v1546 = vmax.f32 %v1418, 0.0
        %v1547 = vmax.f32 %v1419, 0.0
        %v1548 = vmax.f32 %v1420, 0.0
        %v1549 = vmax.f32 %v1421, 0.0
        %v1550 = vmax.f32 %v1422, 0.0
        %v1551 = vmax.f32 %v1423, 0.0
        %v1552 = vmax.f32 %v1424, 0.0
        %v1553 = vmax.f32 %v1425, 0.0
        %v1554 = vmax.f32 %v1426, 0.0
        %v1555 = vmax.f32 %v1427, 0.0
        %v1556 = vmax.f32 %v1428, 0.0
        %v1557 = vmax.f32 %v1429, 0.0
        %v1558 = vmax.f32 %v1430, 0.0
        %v1559 = vmax.f32 %v1431, 0.0
        %v1560 = vmax.f32 %v1432, 0.0
        %v1561 = vmax.f32 %v1433, 0.0
        %v1562 = vmax.f32 %v1434, 0.0
        %v1563 = vmax.f32 %v1435, 0.0
        %v1564 = vmax.f32 %v1436, 0.0
        %v1565 = vmax.f32 %v1437, 0.0
        %v1566 = vmax.f32 %v1438, 0.0
        %v1567 = vmax.f32 %v1439, 0.0
        %v1568 = vmax.f32 %v1440, 0.0
        %v1569 = vmax.f32 %v1441, 0.0
        %v1570 = vmax.f32 %v1442, 0.0
        %v1571 = vmax.f32 %v1443, 0.0
        %v1572 = vmax.f32 %v1444, 0.0
        %v1573 = vmax.f32 %v1445, 0.0
        %v1574 = vmax.f32 %v1446, 0.0
        %v1575 = vmax.f32 %v1447, 0.0
        %v1576 = vmax.f32 %v1448, 0.0
        %v1577 = vmax.f32 %v1449, 0.0
        %v1578 = vmax.f32 %v1450, 0.0
        %v1579 = vmax.f32 %v1451, 0.0
        %v1580 = vmax.f32 %v1452, 0.0
        %v1581 = vmax.f32 %v1453, 0.0
        %v1582 = vmax.f32 %v1454, 0.0
        %v1583 = vmax.f32 %v1455, 0.0
        %v1584 = vmax.f32 %v1456, 0.0
        %v1585 = vmax.f32 %v1457, 0.0
        %v1586 = vmax.f32 %v1458, 0.0
        %v1587 = vmax.f32 %v1459, 0.0
        %v1588 = vmax.f32 %v1460, 0.0
        %v1589 = vmax.f32 %v1461, 0.0
        %v1590 = vmax.f32 %v1462, 0.0
        %v1591 = vmax.f32 %v1463, 0.0
        %v1592 = vmax.f32 %v1464, 0.0
        %v1593 = vmax.f32 %v1465, 0.0
        %v1594 = vmax.f32 %v1466, 0.0
        %v1595 = vmax.f32 %v1467, 0.0
        %v1596 = vmax.f32 %v1468, 0.0
        %v1597 = vmax.f32 %v1469, 0.0
        %v1598 = vmax.f32 %v1470, 0.0
        %v1599 = vmax.f32 %v1471, 0.0
        %v1600 = vmax.f32 %v1472, 0.0
        %v1601 = vmax.f32 %v1473, 0.0
        %v1602 = vmax.f32 %v1474, 0.0
        %v1603 = vmax.f32 %v1475, 0.0
        %v1604 = vmax.f32 %v1476, 0.0
        %v1605 = vmax.f32 %v1477, 0.0
        %v1606 = vmax.f32 %v1478, 0.0
        %v1607 = vmax.f32 %v1479, 0.0
        %v1608 = vmax.f32 %v1480, 0.0
        %v1609 = vmax.f32 %v1481, 0.0
        %v1610 = vmax.f32 %v1482, 0.0
        %v1611 = vmax.f32 %v1483, 0.0
        %v1612 = vmax.f32 %v1484, 0.0
        %v1613 = vmax.f32 %v1485, 0.0
        %v1614 = vmax.f32 %v1486, 0.0
        %v1615 = vmax.f32 %v1487, 0.0
        %v1616 = vmax.f32 %v1488, 0.0
        %v1617 = vmax.f32 %v1489, 0.0
        %v1618 = vmax.f32 %v1490, 0.0
        %v1619 = vmax.f32 %v1491, 0.0
        %v1620 = vmax.f32 %v1492, 0.0
        %v1621 = vmax.f32 %v1493, 0.0
        %v1622 = vmax.f32 %v1494, 0.0
        %v1623 = vmax.f32 %v1495, 0.0
        %v1624 = vmax.f32 %v1496, 0.0
        %v1625 = vmax.f32 %v1497, 0.0
        %v1626 = vmax.f32 %v1498, 0.0
        %v1627 = vmax.f32 %v1499, 0.0
        %v1628 = vmax.f32 %v1500, 0.0
        %v1629 = vmax.f32 %v1501, 0.0
        %v1630 = vmax.f32 %v1502, 0.0
        %v1631 = vmax.f32 %v1503, 0.0
        %v1632 = vmax.f32 %v1504, 0.0
        %v1633 = vmax.f32 %v1505, 0.0
        %v1634 = vmax.f32 %v1506, 0.0
        %v1635 = vmax.f32 %v1507, 0.0
        %v1636 = vmax.f32 %v1508, 0.0
        %v1637 = vmax.f32 %v1509, 0.0
        %v1638 = vmax.f32 %v1510, 0.0
        %v1639 = vmax.f32 %v1511, 0.0
        %v1640 = vmax.f32 %v1512, 0.0
        %v1641 = vmax.f32 %v1513, 0.0
        %v1642 = vmax.f32 %v1514, 0.0
        %v1643 = vmax.f32 %v1515, 0.0
        %v1644 = vmax.f32 %v1516, 0.0
        %v1645 = vmax.f32 %v1517, 0.0
        %v1646 = vmax.f32 %v1518, 0.0
        %v1647 = vmax.f32 %v1519, 0.0
        %v1648 = vmax.f32 %v1520, 0.0
        %v1649 = vmax.f32 %v1521, 0.0
        %v1650 = vmax.f32 %v1522, 0.0
        %v1651 = vmax.f32 %v1523, 0.0
        %v1652 = vmax.f32 %v1524, 0.0
        %v1653 = vmax.f32 %v1525, 0.0
        %v1654 = vmax.f32 %v1526, 0.0
        %v1655 = vmax.f32 %v1527, 0.0
        %v1656 = vmax.f32 %v1528, 0.0
        %v1657 = vmax.f32 %v1529, 0.0
        %v1658 = vmax.f32 %v1530, 0.0
        %v1659 = vmax.f32 %v1531, 0.0
        %v1660 = vmax.f32 %v1532, 0.0
        %v1661 = vmax.f32 %v1533, 0.0
        %v1662 = vmax.f32 %v1534, 0.0
        %v1663 = vmax.f32 %v1535, 0.0
        %v1664 = vmax.f32 %v1536, 0.0
        %v1665 = vmax.f32 %v1537, 0.0
        %v1666 = vmax.f32 %v1538, 0.0
        %v1667 = vmax.f32 %v1539, 0.0
        %v1668 = vmax.f32 %v1540, 0.0
        %v1669 = vmax.f32 %v1541, 0.0
        %v1670 = vmax.f32 %v1542, 0.0
        %v1671 = vmax.f32 %v1543, 0.0
        %v1672 = vpack.c.bf16 %v1560, %v1544
        %v1673 = vpack.c.bf16 %v1561, %v1545
        %v1674 = vpack.c.bf16 %v1562, %v1546
        %v1675 = vpack.c.bf16 %v1563, %v1547
        %v1676 = vpack.c.bf16 %v1564, %v1548
        %v1677 = vpack.c.bf16 %v1565, %v1549
        %v1678 = vpack.c.bf16 %v1566, %v1550
        %v1679 = vpack.c.bf16 %v1567, %v1551
        %v1680 = vpack.c.bf16 %v1568, %v1552
        %v1681 = vpack.c.bf16 %v1569, %v1553
        %v1682 = vpack.c.bf16 %v1570, %v1554
        %v1683 = vpack.c.bf16 %v1571, %v1555
        %v1684 = vpack.c.bf16 %v1572, %v1556
        %v1685 = vpack.c.bf16 %v1573, %v1557
        %v1686 = vpack.c.bf16 %v1574, %v1558
        %v1687 = vpack.c.bf16 %v1575, %v1559
        %v1688 = vpack.c.bf16 %v1592, %v1576
        %v1689 = vpack.c.bf16 %v1593, %v1577
        %v1690 = vpack.c.bf16 %v1594, %v1578
        %v1691 = vpack.c.bf16 %v1595, %v1579
        %v1692 = vpack.c.bf16 %v1596, %v1580
        %v1693 = vpack.c.bf16 %v1597, %v1581
        %v1694 = vpack.c.bf16 %v1598, %v1582
        %v1695 = vpack.c.bf16 %v1599, %v1583
        %v1696 = vpack.c.bf16 %v1600, %v1584
        %v1697 = vpack.c.bf16 %v1601, %v1585
        %v1698 = vpack.c.bf16 %v1602, %v1586
        %v1699 = vpack.c.bf16 %v1603, %v1587
        %v1700 = vpack.c.bf16 %v1604, %v1588
        %v1701 = vpack.c.bf16 %v1605, %v1589
        %v1702 = vpack.c.bf16 %v1606, %v1590
        %v1703 = vpack.c.bf16 %v1607, %v1591
        %v1704 = vpack.c.bf16 %v1624, %v1608
        %v1705 = vpack.c.bf16 %v1625, %v1609
        %v1706 = vpack.c.bf16 %v1626, %v1610
        %v1707 = vpack.c.bf16 %v1627, %v1611
        %v1708 = vpack.c.bf16 %v1628, %v1612
        %v1709 = vpack.c.bf16 %v1629, %v1613
        %v1710 = vpack.c.bf16 %v1630, %v1614
        %v1711 = vpack.c.bf16 %v1631, %v1615
        %v1712 = vpack.c.bf16 %v1632, %v1616
        %v1713 = vpack.c.bf16 %v1633, %v1617
        %v1714 = vpack.c.bf16 %v1634, %v1618
        %v1715 = vpack.c.bf16 %v1635, %v1619
        %v1716 = vpack.c.bf16 %v1636, %v1620
        %v1717 = vpack.c.bf16 %v1637, %v1621
        %v1718 = vpack.c.bf16 %v1638, %v1622
        %v1719 = vpack.c.bf16 %v1639, %v1623
        %v1720 = vpack.c.bf16 %v1656, %v1640
        %v1721 = vpack.c.bf16 %v1657, %v1641
        %v1722 = vpack.c.bf16 %v1658, %v1642
        %v1723 = vpack.c.bf16 %v1659, %v1643
        %v1724 = vpack.c.bf16 %v1660, %v1644
        %v1725 = vpack.c.bf16 %v1661, %v1645
        %v1726 = vpack.c.bf16 %v1662, %v1646
        %v1727 = vpack.c.bf16 %v1663, %v1647
        %v1728 = vpack.c.bf16 %v1664, %v1648
        %v1729 = vpack.c.bf16 %v1665, %v1649
        %v1730 = vpack.c.bf16 %v1666, %v1650
        %v1731 = vpack.c.bf16 %v1667, %v1651
        %v1732 = vpack.c.bf16 %v1668, %v1652
        %v1733 = vpack.c.bf16 %v1669, %v1653
        %v1734 = vpack.c.bf16 %v1670, %v1654
        %v1735 = vpack.c.bf16 %v1671, %v1655
        %1737 = vset.pattern.permute.xlu0 0
        %1738 = vperm.xlu0 %1737, %v334
        %v1739 = vpop.permute.xlu0 %1738
        %1742 = vset.pattern.permute.xlu0 0
        %1743 = vperm.xlu0 %1742, %v335
        %v1744 = vpop.permute.xlu0 %1743
        %1747 = vset.pattern.permute.xlu0 0
        %1748 = vperm.xlu0 %1747, %v336
        %v1749 = vpop.permute.xlu0 %1748
        %1752 = vset.pattern.permute.xlu0 0
        %1753 = vperm.xlu0 %1752, %v337
        %v1754 = vpop.permute.xlu0 %1753
        %v1760 = vunpack.c.l.b16 %v303
        %v1761 = vunpack.c.l.b16 %v304
        %v1762 = vunpack.c.l.b16 %v305
        %v1763 = vunpack.c.l.b16 %v306
        %v1764 = vpack.c.b16 %v1761, %v1760
        %v1765 = vpack.c.b16 %v1763, %v1762
        %vm1766 = vcmask 523264
        %v1768 = vsel %vm1766, %v1764, 0
        %v1771 = vsel %vm1766, %v1765, 0
        %1773 = vmatpush.bf16.msra.mxu0 0
        %1774 = vmatpush.bf16.msra.mxu0 0
        %1775 = vmatpush.bf16.msra.mxu0 0
        %1776 = vmatpush.bf16.msra.mxu0 0
        %1777 = vmatpush.bf16.msra.mxu0 %v1720
        %1778 = vmatpush.bf16.msra.mxu0 %v1704
        %1779 = vmatpush.bf16.msra.mxu0 %v1688
        %1780 = vmatpush.bf16.msra.mxu0 %v1672
        %1781 = vmatmul.bf16.gmra.mxu0 %v1768
        %v1782 = vpop.f32.mrf.mxu0
        %v1783 = vadd.f32 %v1739, %v1782
        %v1784 = vpop.f32.mrf.mxu0
        %v1785 = vadd.f32 %v1744, %v1784
        %1786 = vmatmul.bf16.gmra.mxu0 %v1771
        %v1787 = vpop.f32.mrf.mxu0
        %v1788 = vadd.f32 %v1749, %v1787
        %v1789 = vpop.f32.mrf.mxu0
        %v1790 = vadd.f32 %v1754, %v1789
        %1791 = vdwg.mxu0
        %1792 = vmatpush.bf16.msra.mxu0 0
        %1793 = vmatpush.bf16.msra.mxu0 0
        %1794 = vmatpush.bf16.msra.mxu0 0
        %1795 = vmatpush.bf16.msra.mxu0 0
        %1796 = vmatpush.bf16.msra.mxu0 %v1721
        %1797 = vmatpush.bf16.msra.mxu0 %v1705
        %1798 = vmatpush.bf16.msra.mxu0 %v1689
        %1799 = vmatpush.bf16.msra.mxu0 %v1673
        %1800 = vmatmul.bf16.gmra.mxu0 %v1768
        %v1801 = vpop.f32.mrf.mxu0
        %v1802 = vadd.f32 %v1739, %v1801
        %v1803 = vpop.f32.mrf.mxu0
        %v1804 = vadd.f32 %v1744, %v1803
        %1805 = vmatmul.bf16.gmra.mxu0 %v1771
        %v1806 = vpop.f32.mrf.mxu0
        %v1807 = vadd.f32 %v1749, %v1806
        %v1808 = vpop.f32.mrf.mxu0
        %v1809 = vadd.f32 %v1754, %v1808
        %1810 = vdwg.mxu0
        %1811 = vmatpush.bf16.msra.mxu0 0
        %1812 = vmatpush.bf16.msra.mxu0 0
        %1813 = vmatpush.bf16.msra.mxu0 0
        %1814 = vmatpush.bf16.msra.mxu0 0
        %1815 = vmatpush.bf16.msra.mxu0 %v1722
        %1816 = vmatpush.bf16.msra.mxu0 %v1706
        %1817 = vmatpush.bf16.msra.mxu0 %v1690
        %1818 = vmatpush.bf16.msra.mxu0 %v1674
        %1819 = vmatmul.bf16.gmra.mxu0 %v1768
        %v1820 = vpop.f32.mrf.mxu0
        %v1821 = vadd.f32 %v1739, %v1820
        %v1822 = vpop.f32.mrf.mxu0
        %v1823 = vadd.f32 %v1744, %v1822
        %1824 = vmatmul.bf16.gmra.mxu0 %v1771
        %v1825 = vpop.f32.mrf.mxu0
        %v1826 = vadd.f32 %v1749, %v1825
        %v1827 = vpop.f32.mrf.mxu0
        %v1828 = vadd.f32 %v1754, %v1827
        %1829 = vdwg.mxu0
        %1830 = vmatpush.bf16.msra.mxu0 0
        %1831 = vmatpush.bf16.msra.mxu0 0
        %1832 = vmatpush.bf16.msra.mxu0 0
        %1833 = vmatpush.bf16.msra.mxu0 0
        %1834 = vmatpush.bf16.msra.mxu0 %v1723
        %1835 = vmatpush.bf16.msra.mxu0 %v1707
        %1836 = vmatpush.bf16.msra.mxu0 %v1691
        %1837 = vmatpush.bf16.msra.mxu0 %v1675
        %1838 = vmatmul.bf16.gmra.mxu0 %v1768
        %v1839 = vpop.f32.mrf.mxu0
        %v1840 = vadd.f32 %v1739, %v1839
        %v1841 = vpop.f32.mrf.mxu0
        %v1842 = vadd.f32 %v1744, %v1841
        %1843 = vmatmul.bf16.gmra.mxu0 %v1771
        %v1844 = vpop.f32.mrf.mxu0
        %v1845 = vadd.f32 %v1749, %v1844
        %v1846 = vpop.f32.mrf.mxu0
        %v1847 = vadd.f32 %v1754, %v1846
        %1848 = vdwg.mxu0
        %1849 = vmatpush.bf16.msra.mxu0 0
        %1850 = vmatpush.bf16.msra.mxu0 0
        %1851 = vmatpush.bf16.msra.mxu0 0
        %1852 = vmatpush.bf16.msra.mxu0 0
        %1853 = vmatpush.bf16.msra.mxu0 %v1724
        %1854 = vmatpush.bf16.msra.mxu0 %v1708
        %1855 = vmatpush.bf16.msra.mxu0 %v1692
        %1856 = vmatpush.bf16.msra.mxu0 %v1676
        %1857 = vmatmul.bf16.gmra.mxu0 %v1768
        %v1858 = vpop.f32.mrf.mxu0
        %v1859 = vadd.f32 %v1739, %v1858
        %v1860 = vpop.f32.mrf.mxu0
        %v1861 = vadd.f32 %v1744, %v1860
        %1862 = vmatmul.bf16.gmra.mxu0 %v1771
        %v1863 = vpop.f32.mrf.mxu0
        %v1864 = vadd.f32 %v1749, %v1863
        %v1865 = vpop.f32.mrf.mxu0
        %v1866 = vadd.f32 %v1754, %v1865
        %1867 = vdwg.mxu0
        %1868 = vmatpush.bf16.msra.mxu0 0
        %1869 = vmatpush.bf16.msra.mxu0 0
        %1870 = vmatpush.bf16.msra.mxu0 0
        %1871 = vmatpush.bf16.msra.mxu0 0
        %1872 = vmatpush.bf16.msra.mxu0 %v1725
        %1873 = vmatpush.bf16.msra.mxu0 %v1709
        %1874 = vmatpush.bf16.msra.mxu0 %v1693
        %1875 = vmatpush.bf16.msra.mxu0 %v1677
        %1876 = vmatmul.bf16.gmra.mxu0 %v1768
        %v1877 = vpop.f32.mrf.mxu0
        %v1878 = vadd.f32 %v1739, %v1877
        %v1879 = vpop.f32.mrf.mxu0
        %v1880 = vadd.f32 %v1744, %v1879
        %1881 = vmatmul.bf16.gmra.mxu0 %v1771
        %v1882 = vpop.f32.mrf.mxu0
        %v1883 = vadd.f32 %v1749, %v1882
        %v1884 = vpop.f32.mrf.mxu0
        %v1885 = vadd.f32 %v1754, %v1884
        %1886 = vdwg.mxu0
        %1887 = vmatpush.bf16.msra.mxu0 0
        %1888 = vmatpush.bf16.msra.mxu0 0
        %1889 = vmatpush.bf16.msra.mxu0 0
        %1890 = vmatpush.bf16.msra.mxu0 0
        %1891 = vmatpush.bf16.msra.mxu0 %v1726
        %1892 = vmatpush.bf16.msra.mxu0 %v1710
        %1893 = vmatpush.bf16.msra.mxu0 %v1694
        %1894 = vmatpush.bf16.msra.mxu0 %v1678
        %1895 = vmatmul.bf16.gmra.mxu0 %v1768
        %v1896 = vpop.f32.mrf.mxu0
        %v1897 = vadd.f32 %v1739, %v1896
        %v1898 = vpop.f32.mrf.mxu0
        %v1899 = vadd.f32 %v1744, %v1898
        %1900 = vmatmul.bf16.gmra.mxu0 %v1771
        %v1901 = vpop.f32.mrf.mxu0
        %v1902 = vadd.f32 %v1749, %v1901
        %v1903 = vpop.f32.mrf.mxu0
        %v1904 = vadd.f32 %v1754, %v1903
        %1905 = vdwg.mxu0
        %1906 = vmatpush.bf16.msra.mxu0 0
        %1907 = vmatpush.bf16.msra.mxu0 0
        %1908 = vmatpush.bf16.msra.mxu0 0
        %1909 = vmatpush.bf16.msra.mxu0 0
        %1910 = vmatpush.bf16.msra.mxu0 %v1727
        %1911 = vmatpush.bf16.msra.mxu0 %v1711
        %1912 = vmatpush.bf16.msra.mxu0 %v1695
        %1913 = vmatpush.bf16.msra.mxu0 %v1679
        %1914 = vmatmul.bf16.gmra.mxu0 %v1768
        %v1915 = vpop.f32.mrf.mxu0
        %v1916 = vadd.f32 %v1739, %v1915
        %v1917 = vpop.f32.mrf.mxu0
        %v1918 = vadd.f32 %v1744, %v1917
        %1919 = vmatmul.bf16.gmra.mxu0 %v1771
        %v1920 = vpop.f32.mrf.mxu0
        %v1921 = vadd.f32 %v1749, %v1920
        %v1922 = vpop.f32.mrf.mxu0
        %v1923 = vadd.f32 %v1754, %v1922
        %1924 = vdwg.mxu0
        %1925 = vmatpush.bf16.msra.mxu0 0
        %1926 = vmatpush.bf16.msra.mxu0 0
        %1927 = vmatpush.bf16.msra.mxu0 0
        %1928 = vmatpush.bf16.msra.mxu0 0
        %1929 = vmatpush.bf16.msra.mxu0 %v1728
        %1930 = vmatpush.bf16.msra.mxu0 %v1712
        %1931 = vmatpush.bf16.msra.mxu0 %v1696
        %1932 = vmatpush.bf16.msra.mxu0 %v1680
        %1933 = vmatmul.bf16.gmra.mxu0 %v1768
        %v1934 = vpop.f32.mrf.mxu0
        %v1935 = vadd.f32 %v1739, %v1934
        %v1936 = vpop.f32.mrf.mxu0
        %v1937 = vadd.f32 %v1744, %v1936
        %1938 = vmatmul.bf16.gmra.mxu0 %v1771
        %v1939 = vpop.f32.mrf.mxu0
        %v1940 = vadd.f32 %v1749, %v1939
        %v1941 = vpop.f32.mrf.mxu0
        %v1942 = vadd.f32 %v1754, %v1941
        %1943 = vdwg.mxu0
        %1944 = vmatpush.bf16.msra.mxu0 0
        %1945 = vmatpush.bf16.msra.mxu0 0
        %1946 = vmatpush.bf16.msra.mxu0 0
        %1947 = vmatpush.bf16.msra.mxu0 0
        %1948 = vmatpush.bf16.msra.mxu0 %v1729
        %1949 = vmatpush.bf16.msra.mxu0 %v1713
        %1950 = vmatpush.bf16.msra.mxu0 %v1697
        %1951 = vmatpush.bf16.msra.mxu0 %v1681
        %1952 = vmatmul.bf16.gmra.mxu0 %v1768
        %v1953 = vpop.f32.mrf.mxu0
        %v1954 = vadd.f32 %v1739, %v1953
        %v1955 = vpop.f32.mrf.mxu0
        %v1956 = vadd.f32 %v1744, %v1955
        %1957 = vmatmul.bf16.gmra.mxu0 %v1771
        %v1958 = vpop.f32.mrf.mxu0
        %v1959 = vadd.f32 %v1749, %v1958
        %v1960 = vpop.f32.mrf.mxu0
        %v1961 = vadd.f32 %v1754, %v1960
        %1962 = vdwg.mxu0
        %1963 = vmatpush.bf16.msra.mxu0 0
        %1964 = vmatpush.bf16.msra.mxu0 0
        %1965 = vmatpush.bf16.msra.mxu0 0
        %1966 = vmatpush.bf16.msra.mxu0 0
        %1967 = vmatpush.bf16.msra.mxu0 %v1730
        %1968 = vmatpush.bf16.msra.mxu0 %v1714
        %1969 = vmatpush.bf16.msra.mxu0 %v1698
        %1970 = vmatpush.bf16.msra.mxu0 %v1682
        %1971 = vmatmul.bf16.gmra.mxu0 %v1768
        %v1972 = vpop.f32.mrf.mxu0
        %v1973 = vadd.f32 %v1739, %v1972
        %v1974 = vpop.f32.mrf.mxu0
        %v1975 = vadd.f32 %v1744, %v1974
        %1976 = vmatmul.bf16.gmra.mxu0 %v1771
        %v1977 = vpop.f32.mrf.mxu0
        %v1978 = vadd.f32 %v1749, %v1977
        %v1979 = vpop.f32.mrf.mxu0
        %v1980 = vadd.f32 %v1754, %v1979
        %1981 = vdwg.mxu0
        %1982 = vmatpush.bf16.msra.mxu0 0
        %1983 = vmatpush.bf16.msra.mxu0 0
        %1984 = vmatpush.bf16.msra.mxu0 0
        %1985 = vmatpush.bf16.msra.mxu0 0
        %1986 = vmatpush.bf16.msra.mxu0 %v1731
        %1987 = vmatpush.bf16.msra.mxu0 %v1715
        %1988 = vmatpush.bf16.msra.mxu0 %v1699
        %1989 = vmatpush.bf16.msra.mxu0 %v1683
        %1990 = vmatmul.bf16.gmra.mxu0 %v1768
        %v1991 = vpop.f32.mrf.mxu0
        %v1992 = vadd.f32 %v1739, %v1991
        %v1993 = vpop.f32.mrf.mxu0
        %v1994 = vadd.f32 %v1744, %v1993
        %1995 = vmatmul.bf16.gmra.mxu0 %v1771
        %v1996 = vpop.f32.mrf.mxu0
        %v1997 = vadd.f32 %v1749, %v1996
        %v1998 = vpop.f32.mrf.mxu0
        %v1999 = vadd.f32 %v1754, %v1998
        %2000 = vdwg.mxu0
        %2001 = vmatpush.bf16.msra.mxu0 0
        %2002 = vmatpush.bf16.msra.mxu0 0
        %2003 = vmatpush.bf16.msra.mxu0 0
        %2004 = vmatpush.bf16.msra.mxu0 0
        %2005 = vmatpush.bf16.msra.mxu0 %v1732
        %2006 = vmatpush.bf16.msra.mxu0 %v1716
        %2007 = vmatpush.bf16.msra.mxu0 %v1700
        %2008 = vmatpush.bf16.msra.mxu0 %v1684
        %2009 = vmatmul.bf16.gmra.mxu0 %v1768
        %v2010 = vpop.f32.mrf.mxu0
        %v2011 = vadd.f32 %v1739, %v2010
        %v2012 = vpop.f32.mrf.mxu0
        %v2013 = vadd.f32 %v1744, %v2012
        %2014 = vmatmul.bf16.gmra.mxu0 %v1771
        %v2015 = vpop.f32.mrf.mxu0
        %v2016 = vadd.f32 %v1749, %v2015
        %v2017 = vpop.f32.mrf.mxu0
        %v2018 = vadd.f32 %v1754, %v2017
        %2019 = vdwg.mxu0
        %2020 = vmatpush.bf16.msra.mxu0 0
        %2021 = vmatpush.bf16.msra.mxu0 0
        %2022 = vmatpush.bf16.msra.mxu0 0
        %2023 = vmatpush.bf16.msra.mxu0 0
        %2024 = vmatpush.bf16.msra.mxu0 %v1733
        %2025 = vmatpush.bf16.msra.mxu0 %v1717
        %2026 = vmatpush.bf16.msra.mxu0 %v1701
        %2027 = vmatpush.bf16.msra.mxu0 %v1685
        %2028 = vmatmul.bf16.gmra.mxu0 %v1768
        %v2029 = vpop.f32.mrf.mxu0
        %v2030 = vadd.f32 %v1739, %v2029
        %v2031 = vpop.f32.mrf.mxu0
        %v2032 = vadd.f32 %v1744, %v2031
        %2033 = vmatmul.bf16.gmra.mxu0 %v1771
        %v2034 = vpop.f32.mrf.mxu0
        %v2035 = vadd.f32 %v1749, %v2034
        %v2036 = vpop.f32.mrf.mxu0
        %v2037 = vadd.f32 %v1754, %v2036
        %2038 = vdwg.mxu0
        %2039 = vmatpush.bf16.msra.mxu0 0
        %2040 = vmatpush.bf16.msra.mxu0 0
        %2041 = vmatpush.bf16.msra.mxu0 0
        %2042 = vmatpush.bf16.msra.mxu0 0
        %2043 = vmatpush.bf16.msra.mxu0 %v1734
        %2044 = vmatpush.bf16.msra.mxu0 %v1718
        %2045 = vmatpush.bf16.msra.mxu0 %v1702
        %2046 = vmatpush.bf16.msra.mxu0 %v1686
        %2047 = vmatmul.bf16.gmra.mxu0 %v1768
        %v2048 = vpop.f32.mrf.mxu0
        %v2049 = vadd.f32 %v1739, %v2048
        %v2050 = vpop.f32.mrf.mxu0
        %v2051 = vadd.f32 %v1744, %v2050
        %2052 = vmatmul.bf16.gmra.mxu0 %v1771
        %v2053 = vpop.f32.mrf.mxu0
        %v2054 = vadd.f32 %v1749, %v2053
        %v2055 = vpop.f32.mrf.mxu0
        %v2056 = vadd.f32 %v1754, %v2055
        %2057 = vdwg.mxu0
        %2058 = vmatpush.bf16.msra.mxu0 0
        %2059 = vmatpush.bf16.msra.mxu0 0
        %2060 = vmatpush.bf16.msra.mxu0 0
        %2061 = vmatpush.bf16.msra.mxu0 0
        %2062 = vmatpush.bf16.msra.mxu0 %v1735
        %2063 = vmatpush.bf16.msra.mxu0 %v1719
        %2064 = vmatpush.bf16.msra.mxu0 %v1703
        %2065 = vmatpush.bf16.msra.mxu0 %v1687
        %2066 = vmatmul.bf16.gmra.mxu0 %v1768
        %v2067 = vpop.f32.mrf.mxu0
        %v2068 = vadd.f32 %v1739, %v2067
        %v2069 = vpop.f32.mrf.mxu0
        %v2070 = vadd.f32 %v1744, %v2069
        %2071 = vmatmul.bf16.gmra.mxu0 %v1771
        %v2072 = vpop.f32.mrf.mxu0
        %v2073 = vadd.f32 %v1749, %v2072
        %v2074 = vpop.f32.mrf.mxu0
        %v2075 = vadd.f32 %v1754, %v2074
        %2076 = vdwg.mxu0
        %v2077 = vmax.f32 %v1783, 0.0
        %v2078 = vmax.f32 %v1802, 0.0
        %v2079 = vmax.f32 %v1821, 0.0
        %v2080 = vmax.f32 %v1840, 0.0
        %v2081 = vmax.f32 %v1859, 0.0
        %v2082 = vmax.f32 %v1878, 0.0
        %v2083 = vmax.f32 %v1897, 0.0
        %v2084 = vmax.f32 %v1916, 0.0
        %v2085 = vmax.f32 %v1935, 0.0
        %v2086 = vmax.f32 %v1954, 0.0
        %v2087 = vmax.f32 %v1973, 0.0
        %v2088 = vmax.f32 %v1992, 0.0
        %v2089 = vmax.f32 %v2011, 0.0
        %v2090 = vmax.f32 %v2030, 0.0
        %v2091 = vmax.f32 %v2049, 0.0
        %v2092 = vmax.f32 %v2068, 0.0
        %v2093 = vmax.f32 %v1785, 0.0
        %v2094 = vmax.f32 %v1804, 0.0
        %v2095 = vmax.f32 %v1823, 0.0
        %v2096 = vmax.f32 %v1842, 0.0
        %v2097 = vmax.f32 %v1861, 0.0
        %v2098 = vmax.f32 %v1880, 0.0
        %v2099 = vmax.f32 %v1899, 0.0
        %v2100 = vmax.f32 %v1918, 0.0
        %v2101 = vmax.f32 %v1937, 0.0
        %v2102 = vmax.f32 %v1956, 0.0
        %v2103 = vmax.f32 %v1975, 0.0
        %v2104 = vmax.f32 %v1994, 0.0
        %v2105 = vmax.f32 %v2013, 0.0
        %v2106 = vmax.f32 %v2032, 0.0
        %v2107 = vmax.f32 %v2051, 0.0
        %v2108 = vmax.f32 %v2070, 0.0
        %v2109 = vmax.f32 %v1788, 0.0
        %v2110 = vmax.f32 %v1807, 0.0
        %v2111 = vmax.f32 %v1826, 0.0
        %v2112 = vmax.f32 %v1845, 0.0
        %v2113 = vmax.f32 %v1864, 0.0
        %v2114 = vmax.f32 %v1883, 0.0
        %v2115 = vmax.f32 %v1902, 0.0
        %v2116 = vmax.f32 %v1921, 0.0
        %v2117 = vmax.f32 %v1940, 0.0
        %v2118 = vmax.f32 %v1959, 0.0
        %v2119 = vmax.f32 %v1978, 0.0
        %v2120 = vmax.f32 %v1997, 0.0
        %v2121 = vmax.f32 %v2016, 0.0
        %v2122 = vmax.f32 %v2035, 0.0
        %v2123 = vmax.f32 %v2054, 0.0
        %v2124 = vmax.f32 %v2073, 0.0
        %v2125 = vmax.f32 %v1790, 0.0
        %v2126 = vmax.f32 %v1809, 0.0
        %v2127 = vmax.f32 %v1828, 0.0
        %v2128 = vmax.f32 %v1847, 0.0
        %v2129 = vmax.f32 %v1866, 0.0
        %v2130 = vmax.f32 %v1885, 0.0
        %v2131 = vmax.f32 %v1904, 0.0
        %v2132 = vmax.f32 %v1923, 0.0
        %v2133 = vmax.f32 %v1942, 0.0
        %v2134 = vmax.f32 %v1961, 0.0
        %v2135 = vmax.f32 %v1980, 0.0
        %v2136 = vmax.f32 %v1999, 0.0
        %v2137 = vmax.f32 %v2018, 0.0
        %v2138 = vmax.f32 %v2037, 0.0
        %v2139 = vmax.f32 %v2056, 0.0
        %v2140 = vmax.f32 %v2075, 0.0
        %v2141 = vpack.c.bf16 %v2093, %v2077
        %v2142 = vpack.c.bf16 %v2094, %v2078
        %v2143 = vpack.c.bf16 %v2095, %v2079
        %v2144 = vpack.c.bf16 %v2096, %v2080
        %v2145 = vpack.c.bf16 %v2097, %v2081
        %v2146 = vpack.c.bf16 %v2098, %v2082
        %v2147 = vpack.c.bf16 %v2099, %v2083
        %v2148 = vpack.c.bf16 %v2100, %v2084
        %v2149 = vpack.c.bf16 %v2101, %v2085
        %v2150 = vpack.c.bf16 %v2102, %v2086
        %v2151 = vpack.c.bf16 %v2103, %v2087
        %v2152 = vpack.c.bf16 %v2104, %v2088
        %v2153 = vpack.c.bf16 %v2105, %v2089
        %v2154 = vpack.c.bf16 %v2106, %v2090
        %v2155 = vpack.c.bf16 %v2107, %v2091
        %v2156 = vpack.c.bf16 %v2108, %v2092
        %v2157 = vpack.c.bf16 %v2125, %v2109
        %v2158 = vpack.c.bf16 %v2126, %v2110
        %v2159 = vpack.c.bf16 %v2127, %v2111
        %v2160 = vpack.c.bf16 %v2128, %v2112
        %v2161 = vpack.c.bf16 %v2129, %v2113
        %v2162 = vpack.c.bf16 %v2130, %v2114
        %v2163 = vpack.c.bf16 %v2131, %v2115
        %v2164 = vpack.c.bf16 %v2132, %v2116
        %v2165 = vpack.c.bf16 %v2133, %v2117
        %v2166 = vpack.c.bf16 %v2134, %v2118
        %v2167 = vpack.c.bf16 %v2135, %v2119
        %v2168 = vpack.c.bf16 %v2136, %v2120
        %v2169 = vpack.c.bf16 %v2137, %v2121
        %v2170 = vpack.c.bf16 %v2138, %v2122
        %v2171 = vpack.c.bf16 %v2139, %v2123
        %v2172 = vpack.c.bf16 %v2140, %v2124
        %v2181 = vunpack.c.l.b16 %v308
        %v2182 = vunpack.c.l.b16 %v309
        %v2183 = vunpack.c.l.b16 %v310
        %v2184 = vunpack.c.l.b16 %v311
        %v2185 = vunpack.c.l.b16 %v312
        %v2186 = vunpack.c.l.b16 %v313
        %v2187 = vunpack.c.l.b16 %v314
        %v2188 = vunpack.c.l.b16 %v315
        %v2189 = vpack.c.b16 %v2182, %v2181
        %v2190 = vpack.c.b16 %v2184, %v2183
        %v2191 = vpack.c.b16 %v2186, %v2185
        %v2192 = vpack.c.b16 %v2188, %v2187
        %v2194 = vsel %vm567, %v2189, 0
        %v2197 = vsel %vm567, %v2190, 0
        %v2200 = vsel %vm567, %v2191, 0
        %v2203 = vsel %vm567, %v2192, 0
        %2205 = vmatpush.bf16.msra.mxu0 0
        %2206 = vmatpush.bf16.msra.mxu0 0
        %2207 = vmatpush.bf16.msra.mxu0 0
        %2208 = vmatpush.bf16.msra.mxu0 0
        %2209 = vmatpush.bf16.msra.mxu0 0
        %2210 = vmatpush.bf16.msra.mxu0 0
        %2211 = vmatpush.bf16.msra.mxu0 %v2157
        %2212 = vmatpush.bf16.msra.mxu0 %v2141
        %2213 = vmatmul.bf16.gmra.mxu0 %v2194
        %v2214 = vpop.f32.mrf.mxu0
        %v2215 = vadd.f32 %v622, %v2214
        %v2216 = vpop.f32.mrf.mxu0
        %v2217 = vadd.f32 %v624, %v2216
        %2218 = vmatmul.bf16.gmra.mxu0 %v2197
        %v2219 = vpop.f32.mrf.mxu0
        %v2220 = vadd.f32 %v627, %v2219
        %v2221 = vpop.f32.mrf.mxu0
        %v2222 = vadd.f32 %v629, %v2221
        %2223 = vmatmul.bf16.gmra.mxu0 %v2200
        %v2224 = vpop.f32.mrf.mxu0
        %v2225 = vadd.f32 %v632, %v2224
        %v2226 = vpop.f32.mrf.mxu0
        %v2227 = vadd.f32 %v634, %v2226
        %2228 = vmatmul.bf16.gmra.mxu0 %v2203
        %v2229 = vpop.f32.mrf.mxu0
        %v2230 = vadd.f32 %v637, %v2229
        %v2231 = vpop.f32.mrf.mxu0
        %v2232 = vadd.f32 %v639, %v2231
        %2233 = vdwg.mxu0
        %2234 = vmatpush.bf16.msra.mxu0 0
        %2235 = vmatpush.bf16.msra.mxu0 0
        %2236 = vmatpush.bf16.msra.mxu0 0
        %2237 = vmatpush.bf16.msra.mxu0 0
        %2238 = vmatpush.bf16.msra.mxu0 0
        %2239 = vmatpush.bf16.msra.mxu0 0
        %2240 = vmatpush.bf16.msra.mxu0 %v2158
        %2241 = vmatpush.bf16.msra.mxu0 %v2142
        %2242 = vmatmul.bf16.gmra.mxu0 %v2194
        %v2243 = vpop.f32.mrf.mxu0
        %v2244 = vadd.f32 %v671, %v2243
        %v2245 = vpop.f32.mrf.mxu0
        %v2246 = vadd.f32 %v673, %v2245
        %2247 = vmatmul.bf16.gmra.mxu0 %v2197
        %v2248 = vpop.f32.mrf.mxu0
        %v2249 = vadd.f32 %v676, %v2248
        %v2250 = vpop.f32.mrf.mxu0
        %v2251 = vadd.f32 %v678, %v2250
        %2252 = vmatmul.bf16.gmra.mxu0 %v2200
        %v2253 = vpop.f32.mrf.mxu0
        %v2254 = vadd.f32 %v681, %v2253
        %v2255 = vpop.f32.mrf.mxu0
        %v2256 = vadd.f32 %v683, %v2255
        %2257 = vmatmul.bf16.gmra.mxu0 %v2203
        %v2258 = vpop.f32.mrf.mxu0
        %v2259 = vadd.f32 %v686, %v2258
        %v2260 = vpop.f32.mrf.mxu0
        %v2261 = vadd.f32 %v688, %v2260
        %2262 = vdwg.mxu0
        %2263 = vmatpush.bf16.msra.mxu0 0
        %2264 = vmatpush.bf16.msra.mxu0 0
        %2265 = vmatpush.bf16.msra.mxu0 0
        %2266 = vmatpush.bf16.msra.mxu0 0
        %2267 = vmatpush.bf16.msra.mxu0 0
        %2268 = vmatpush.bf16.msra.mxu0 0
        %2269 = vmatpush.bf16.msra.mxu0 %v2159
        %2270 = vmatpush.bf16.msra.mxu0 %v2143
        %2271 = vmatmul.bf16.gmra.mxu0 %v2194
        %v2272 = vpop.f32.mrf.mxu0
        %v2273 = vadd.f32 %v720, %v2272
        %v2274 = vpop.f32.mrf.mxu0
        %v2275 = vadd.f32 %v722, %v2274
        %2276 = vmatmul.bf16.gmra.mxu0 %v2197
        %v2277 = vpop.f32.mrf.mxu0
        %v2278 = vadd.f32 %v725, %v2277
        %v2279 = vpop.f32.mrf.mxu0
        %v2280 = vadd.f32 %v727, %v2279
        %2281 = vmatmul.bf16.gmra.mxu0 %v2200
        %v2282 = vpop.f32.mrf.mxu0
        %v2283 = vadd.f32 %v730, %v2282
        %v2284 = vpop.f32.mrf.mxu0
        %v2285 = vadd.f32 %v732, %v2284
        %2286 = vmatmul.bf16.gmra.mxu0 %v2203
        %v2287 = vpop.f32.mrf.mxu0
        %v2288 = vadd.f32 %v735, %v2287
        %v2289 = vpop.f32.mrf.mxu0
        %v2290 = vadd.f32 %v737, %v2289
        %2291 = vdwg.mxu0
        %2292 = vmatpush.bf16.msra.mxu0 0
        %2293 = vmatpush.bf16.msra.mxu0 0
        %2294 = vmatpush.bf16.msra.mxu0 0
        %2295 = vmatpush.bf16.msra.mxu0 0
        %2296 = vmatpush.bf16.msra.mxu0 0
        %2297 = vmatpush.bf16.msra.mxu0 0
        %2298 = vmatpush.bf16.msra.mxu0 %v2160
        %2299 = vmatpush.bf16.msra.mxu0 %v2144
        %2300 = vmatmul.bf16.gmra.mxu0 %v2194
        %v2301 = vpop.f32.mrf.mxu0
        %v2302 = vadd.f32 %v769, %v2301
        %v2303 = vpop.f32.mrf.mxu0
        %v2304 = vadd.f32 %v771, %v2303
        %2305 = vmatmul.bf16.gmra.mxu0 %v2197
        %v2306 = vpop.f32.mrf.mxu0
        %v2307 = vadd.f32 %v774, %v2306
        %v2308 = vpop.f32.mrf.mxu0
        %v2309 = vadd.f32 %v776, %v2308
        %2310 = vmatmul.bf16.gmra.mxu0 %v2200
        %v2311 = vpop.f32.mrf.mxu0
        %v2312 = vadd.f32 %v779, %v2311
        %v2313 = vpop.f32.mrf.mxu0
        %v2314 = vadd.f32 %v781, %v2313
        %2315 = vmatmul.bf16.gmra.mxu0 %v2203
        %v2316 = vpop.f32.mrf.mxu0
        %v2317 = vadd.f32 %v784, %v2316
        %v2318 = vpop.f32.mrf.mxu0
        %v2319 = vadd.f32 %v786, %v2318
        %2320 = vdwg.mxu0
        %2321 = vmatpush.bf16.msra.mxu0 0
        %2322 = vmatpush.bf16.msra.mxu0 0
        %2323 = vmatpush.bf16.msra.mxu0 0
        %2324 = vmatpush.bf16.msra.mxu0 0
        %2325 = vmatpush.bf16.msra.mxu0 0
        %2326 = vmatpush.bf16.msra.mxu0 0
        %2327 = vmatpush.bf16.msra.mxu0 %v2161
        %2328 = vmatpush.bf16.msra.mxu0 %v2145
        %2329 = vmatmul.bf16.gmra.mxu0 %v2194
        %v2330 = vpop.f32.mrf.mxu0
        %v2331 = vadd.f32 %v818, %v2330
        %v2332 = vpop.f32.mrf.mxu0
        %v2333 = vadd.f32 %v820, %v2332
        %2334 = vmatmul.bf16.gmra.mxu0 %v2197
        %v2335 = vpop.f32.mrf.mxu0
        %v2336 = vadd.f32 %v823, %v2335
        %v2337 = vpop.f32.mrf.mxu0
        %v2338 = vadd.f32 %v825, %v2337
        %2339 = vmatmul.bf16.gmra.mxu0 %v2200
        %v2340 = vpop.f32.mrf.mxu0
        %v2341 = vadd.f32 %v828, %v2340
        %v2342 = vpop.f32.mrf.mxu0
        %v2343 = vadd.f32 %v830, %v2342
        %2344 = vmatmul.bf16.gmra.mxu0 %v2203
        %v2345 = vpop.f32.mrf.mxu0
        %v2346 = vadd.f32 %v833, %v2345
        %v2347 = vpop.f32.mrf.mxu0
        %v2348 = vadd.f32 %v835, %v2347
        %2349 = vdwg.mxu0
        %2350 = vmatpush.bf16.msra.mxu0 0
        %2351 = vmatpush.bf16.msra.mxu0 0
        %2352 = vmatpush.bf16.msra.mxu0 0
        %2353 = vmatpush.bf16.msra.mxu0 0
        %2354 = vmatpush.bf16.msra.mxu0 0
        %2355 = vmatpush.bf16.msra.mxu0 0
        %2356 = vmatpush.bf16.msra.mxu0 %v2162
        %2357 = vmatpush.bf16.msra.mxu0 %v2146
        %2358 = vmatmul.bf16.gmra.mxu0 %v2194
        %v2359 = vpop.f32.mrf.mxu0
        %v2360 = vadd.f32 %v867, %v2359
        %v2361 = vpop.f32.mrf.mxu0
        %v2362 = vadd.f32 %v869, %v2361
        %2363 = vmatmul.bf16.gmra.mxu0 %v2197
        %v2364 = vpop.f32.mrf.mxu0
        %v2365 = vadd.f32 %v872, %v2364
        %v2366 = vpop.f32.mrf.mxu0
        %v2367 = vadd.f32 %v874, %v2366
        %2368 = vmatmul.bf16.gmra.mxu0 %v2200
        %v2369 = vpop.f32.mrf.mxu0
        %v2370 = vadd.f32 %v877, %v2369
        %v2371 = vpop.f32.mrf.mxu0
        %v2372 = vadd.f32 %v879, %v2371
        %2373 = vmatmul.bf16.gmra.mxu0 %v2203
        %v2374 = vpop.f32.mrf.mxu0
        %v2375 = vadd.f32 %v882, %v2374
        %v2376 = vpop.f32.mrf.mxu0
        %v2377 = vadd.f32 %v884, %v2376
        %2378 = vdwg.mxu0
        %2379 = vmatpush.bf16.msra.mxu0 0
        %2380 = vmatpush.bf16.msra.mxu0 0
        %2381 = vmatpush.bf16.msra.mxu0 0
        %2382 = vmatpush.bf16.msra.mxu0 0
        %2383 = vmatpush.bf16.msra.mxu0 0
        %2384 = vmatpush.bf16.msra.mxu0 0
        %2385 = vmatpush.bf16.msra.mxu0 %v2163
        %2386 = vmatpush.bf16.msra.mxu0 %v2147
        %2387 = vmatmul.bf16.gmra.mxu0 %v2194
        %v2388 = vpop.f32.mrf.mxu0
        %v2389 = vadd.f32 %v916, %v2388
        %v2390 = vpop.f32.mrf.mxu0
        %v2391 = vadd.f32 %v918, %v2390
        %2392 = vmatmul.bf16.gmra.mxu0 %v2197
        %v2393 = vpop.f32.mrf.mxu0
        %v2394 = vadd.f32 %v921, %v2393
        %v2395 = vpop.f32.mrf.mxu0
        %v2396 = vadd.f32 %v923, %v2395
        %2397 = vmatmul.bf16.gmra.mxu0 %v2200
        %v2398 = vpop.f32.mrf.mxu0
        %v2399 = vadd.f32 %v926, %v2398
        %v2400 = vpop.f32.mrf.mxu0
        %v2401 = vadd.f32 %v928, %v2400
        %2402 = vmatmul.bf16.gmra.mxu0 %v2203
        %v2403 = vpop.f32.mrf.mxu0
        %v2404 = vadd.f32 %v931, %v2403
        %v2405 = vpop.f32.mrf.mxu0
        %v2406 = vadd.f32 %v933, %v2405
        %2407 = vdwg.mxu0
        %2408 = vmatpush.bf16.msra.mxu0 0
        %2409 = vmatpush.bf16.msra.mxu0 0
        %2410 = vmatpush.bf16.msra.mxu0 0
        %2411 = vmatpush.bf16.msra.mxu0 0
        %2412 = vmatpush.bf16.msra.mxu0 0
        %2413 = vmatpush.bf16.msra.mxu0 0
        %2414 = vmatpush.bf16.msra.mxu0 %v2164
        %2415 = vmatpush.bf16.msra.mxu0 %v2148
        %2416 = vmatmul.bf16.gmra.mxu0 %v2194
        %v2417 = vpop.f32.mrf.mxu0
        %v2418 = vadd.f32 %v965, %v2417
        %v2419 = vpop.f32.mrf.mxu0
        %v2420 = vadd.f32 %v967, %v2419
        %2421 = vmatmul.bf16.gmra.mxu0 %v2197
        %v2422 = vpop.f32.mrf.mxu0
        %v2423 = vadd.f32 %v970, %v2422
        %v2424 = vpop.f32.mrf.mxu0
        %v2425 = vadd.f32 %v972, %v2424
        %2426 = vmatmul.bf16.gmra.mxu0 %v2200
        %v2427 = vpop.f32.mrf.mxu0
        %v2428 = vadd.f32 %v975, %v2427
        %v2429 = vpop.f32.mrf.mxu0
        %v2430 = vadd.f32 %v977, %v2429
        %2431 = vmatmul.bf16.gmra.mxu0 %v2203
        %v2432 = vpop.f32.mrf.mxu0
        %v2433 = vadd.f32 %v980, %v2432
        %v2434 = vpop.f32.mrf.mxu0
        %v2435 = vadd.f32 %v982, %v2434
        %2436 = vdwg.mxu0
        %2437 = vmatpush.bf16.msra.mxu0 0
        %2438 = vmatpush.bf16.msra.mxu0 0
        %2439 = vmatpush.bf16.msra.mxu0 0
        %2440 = vmatpush.bf16.msra.mxu0 0
        %2441 = vmatpush.bf16.msra.mxu0 0
        %2442 = vmatpush.bf16.msra.mxu0 0
        %2443 = vmatpush.bf16.msra.mxu0 %v2165
        %2444 = vmatpush.bf16.msra.mxu0 %v2149
        %2445 = vmatmul.bf16.gmra.mxu0 %v2194
        %v2446 = vpop.f32.mrf.mxu0
        %v2447 = vadd.f32 %v1014, %v2446
        %v2448 = vpop.f32.mrf.mxu0
        %v2449 = vadd.f32 %v1016, %v2448
        %2450 = vmatmul.bf16.gmra.mxu0 %v2197
        %v2451 = vpop.f32.mrf.mxu0
        %v2452 = vadd.f32 %v1019, %v2451
        %v2453 = vpop.f32.mrf.mxu0
        %v2454 = vadd.f32 %v1021, %v2453
        %2455 = vmatmul.bf16.gmra.mxu0 %v2200
        %v2456 = vpop.f32.mrf.mxu0
        %v2457 = vadd.f32 %v1024, %v2456
        %v2458 = vpop.f32.mrf.mxu0
        %v2459 = vadd.f32 %v1026, %v2458
        %2460 = vmatmul.bf16.gmra.mxu0 %v2203
        %v2461 = vpop.f32.mrf.mxu0
        %v2462 = vadd.f32 %v1029, %v2461
        %v2463 = vpop.f32.mrf.mxu0
        %v2464 = vadd.f32 %v1031, %v2463
        %2465 = vdwg.mxu0
        %2466 = vmatpush.bf16.msra.mxu0 0
        %2467 = vmatpush.bf16.msra.mxu0 0
        %2468 = vmatpush.bf16.msra.mxu0 0
        %2469 = vmatpush.bf16.msra.mxu0 0
        %2470 = vmatpush.bf16.msra.mxu0 0
        %2471 = vmatpush.bf16.msra.mxu0 0
        %2472 = vmatpush.bf16.msra.mxu0 %v2166
        %2473 = vmatpush.bf16.msra.mxu0 %v2150
        %2474 = vmatmul.bf16.gmra.mxu0 %v2194
        %v2475 = vpop.f32.mrf.mxu0
        %v2476 = vadd.f32 %v1063, %v2475
        %v2477 = vpop.f32.mrf.mxu0
        %v2478 = vadd.f32 %v1065, %v2477
        %2479 = vmatmul.bf16.gmra.mxu0 %v2197
        %v2480 = vpop.f32.mrf.mxu0
        %v2481 = vadd.f32 %v1068, %v2480
        %v2482 = vpop.f32.mrf.mxu0
        %v2483 = vadd.f32 %v1070, %v2482
        %2484 = vmatmul.bf16.gmra.mxu0 %v2200
        %v2485 = vpop.f32.mrf.mxu0
        %v2486 = vadd.f32 %v1073, %v2485
        %v2487 = vpop.f32.mrf.mxu0
        %v2488 = vadd.f32 %v1075, %v2487
        %2489 = vmatmul.bf16.gmra.mxu0 %v2203
        %v2490 = vpop.f32.mrf.mxu0
        %v2491 = vadd.f32 %v1078, %v2490
        %v2492 = vpop.f32.mrf.mxu0
        %v2493 = vadd.f32 %v1080, %v2492
        %2494 = vdwg.mxu0
        %2495 = vmatpush.bf16.msra.mxu0 0
        %2496 = vmatpush.bf16.msra.mxu0 0
        %2497 = vmatpush.bf16.msra.mxu0 0
        %2498 = vmatpush.bf16.msra.mxu0 0
        %2499 = vmatpush.bf16.msra.mxu0 0
        %2500 = vmatpush.bf16.msra.mxu0 0
        %2501 = vmatpush.bf16.msra.mxu0 %v2167
        %2502 = vmatpush.bf16.msra.mxu0 %v2151
        %2503 = vmatmul.bf16.gmra.mxu0 %v2194
        %v2504 = vpop.f32.mrf.mxu0
        %v2505 = vadd.f32 %v1112, %v2504
        %v2506 = vpop.f32.mrf.mxu0
        %v2507 = vadd.f32 %v1114, %v2506
        %2508 = vmatmul.bf16.gmra.mxu0 %v2197
        %v2509 = vpop.f32.mrf.mxu0
        %v2510 = vadd.f32 %v1117, %v2509
        %v2511 = vpop.f32.mrf.mxu0
        %v2512 = vadd.f32 %v1119, %v2511
        %2513 = vmatmul.bf16.gmra.mxu0 %v2200
        %v2514 = vpop.f32.mrf.mxu0
        %v2515 = vadd.f32 %v1122, %v2514
        %v2516 = vpop.f32.mrf.mxu0
        %v2517 = vadd.f32 %v1124, %v2516
        %2518 = vmatmul.bf16.gmra.mxu0 %v2203
        %v2519 = vpop.f32.mrf.mxu0
        %v2520 = vadd.f32 %v1127, %v2519
        %v2521 = vpop.f32.mrf.mxu0
        %v2522 = vadd.f32 %v1129, %v2521
        %2523 = vdwg.mxu0
        %2524 = vmatpush.bf16.msra.mxu0 0
        %2525 = vmatpush.bf16.msra.mxu0 0
        %2526 = vmatpush.bf16.msra.mxu0 0
        %2527 = vmatpush.bf16.msra.mxu0 0
        %2528 = vmatpush.bf16.msra.mxu0 0
        %2529 = vmatpush.bf16.msra.mxu0 0
        %2530 = vmatpush.bf16.msra.mxu0 %v2168
        %2531 = vmatpush.bf16.msra.mxu0 %v2152
        %2532 = vmatmul.bf16.gmra.mxu0 %v2194
        %v2533 = vpop.f32.mrf.mxu0
        %v2534 = vadd.f32 %v1161, %v2533
        %v2535 = vpop.f32.mrf.mxu0
        %v2536 = vadd.f32 %v1163, %v2535
        %2537 = vmatmul.bf16.gmra.mxu0 %v2197
        %v2538 = vpop.f32.mrf.mxu0
        %v2539 = vadd.f32 %v1166, %v2538
        %v2540 = vpop.f32.mrf.mxu0
        %v2541 = vadd.f32 %v1168, %v2540
        %2542 = vmatmul.bf16.gmra.mxu0 %v2200
        %v2543 = vpop.f32.mrf.mxu0
        %v2544 = vadd.f32 %v1171, %v2543
        %v2545 = vpop.f32.mrf.mxu0
        %v2546 = vadd.f32 %v1173, %v2545
        %2547 = vmatmul.bf16.gmra.mxu0 %v2203
        %v2548 = vpop.f32.mrf.mxu0
        %v2549 = vadd.f32 %v1176, %v2548
        %v2550 = vpop.f32.mrf.mxu0
        %v2551 = vadd.f32 %v1178, %v2550
        %2552 = vdwg.mxu0
        %2553 = vmatpush.bf16.msra.mxu0 0
        %2554 = vmatpush.bf16.msra.mxu0 0
        %2555 = vmatpush.bf16.msra.mxu0 0
        %2556 = vmatpush.bf16.msra.mxu0 0
        %2557 = vmatpush.bf16.msra.mxu0 0
        %2558 = vmatpush.bf16.msra.mxu0 0
        %2559 = vmatpush.bf16.msra.mxu0 %v2169
        %2560 = vmatpush.bf16.msra.mxu0 %v2153
        %2561 = vmatmul.bf16.gmra.mxu0 %v2194
        %v2562 = vpop.f32.mrf.mxu0
        %v2563 = vadd.f32 %v1210, %v2562
        %v2564 = vpop.f32.mrf.mxu0
        %v2565 = vadd.f32 %v1212, %v2564
        %2566 = vmatmul.bf16.gmra.mxu0 %v2197
        %v2567 = vpop.f32.mrf.mxu0
        %v2568 = vadd.f32 %v1215, %v2567
        %v2569 = vpop.f32.mrf.mxu0
        %v2570 = vadd.f32 %v1217, %v2569
        %2571 = vmatmul.bf16.gmra.mxu0 %v2200
        %v2572 = vpop.f32.mrf.mxu0
        %v2573 = vadd.f32 %v1220, %v2572
        %v2574 = vpop.f32.mrf.mxu0
        %v2575 = vadd.f32 %v1222, %v2574
        %2576 = vmatmul.bf16.gmra.mxu0 %v2203
        %v2577 = vpop.f32.mrf.mxu0
        %v2578 = vadd.f32 %v1225, %v2577
        %v2579 = vpop.f32.mrf.mxu0
        %v2580 = vadd.f32 %v1227, %v2579
        %2581 = vdwg.mxu0
        %2582 = vmatpush.bf16.msra.mxu0 0
        %2583 = vmatpush.bf16.msra.mxu0 0
        %2584 = vmatpush.bf16.msra.mxu0 0
        %2585 = vmatpush.bf16.msra.mxu0 0
        %2586 = vmatpush.bf16.msra.mxu0 0
        %2587 = vmatpush.bf16.msra.mxu0 0
        %2588 = vmatpush.bf16.msra.mxu0 %v2170
        %2589 = vmatpush.bf16.msra.mxu0 %v2154
        %2590 = vmatmul.bf16.gmra.mxu0 %v2194
        %v2591 = vpop.f32.mrf.mxu0
        %v2592 = vadd.f32 %v1259, %v2591
        %v2593 = vpop.f32.mrf.mxu0
        %v2594 = vadd.f32 %v1261, %v2593
        %2595 = vmatmul.bf16.gmra.mxu0 %v2197
        %v2596 = vpop.f32.mrf.mxu0
        %v2597 = vadd.f32 %v1264, %v2596
        %v2598 = vpop.f32.mrf.mxu0
        %v2599 = vadd.f32 %v1266, %v2598
        %2600 = vmatmul.bf16.gmra.mxu0 %v2200
        %v2601 = vpop.f32.mrf.mxu0
        %v2602 = vadd.f32 %v1269, %v2601
        %v2603 = vpop.f32.mrf.mxu0
        %v2604 = vadd.f32 %v1271, %v2603
        %2605 = vmatmul.bf16.gmra.mxu0 %v2203
        %v2606 = vpop.f32.mrf.mxu0
        %v2607 = vadd.f32 %v1274, %v2606
        %v2608 = vpop.f32.mrf.mxu0
        %v2609 = vadd.f32 %v1276, %v2608
        %2610 = vdwg.mxu0
        %2611 = vmatpush.bf16.msra.mxu0 0
        %2612 = vmatpush.bf16.msra.mxu0 0
        %2613 = vmatpush.bf16.msra.mxu0 0
        %2614 = vmatpush.bf16.msra.mxu0 0
        %2615 = vmatpush.bf16.msra.mxu0 0
        %2616 = vmatpush.bf16.msra.mxu0 0
        %2617 = vmatpush.bf16.msra.mxu0 %v2171
        %2618 = vmatpush.bf16.msra.mxu0 %v2155
        %2619 = vmatmul.bf16.gmra.mxu0 %v2194
        %v2620 = vpop.f32.mrf.mxu0
        %v2621 = vadd.f32 %v1308, %v2620
        %v2622 = vpop.f32.mrf.mxu0
        %v2623 = vadd.f32 %v1310, %v2622
        %2624 = vmatmul.bf16.gmra.mxu0 %v2197
        %v2625 = vpop.f32.mrf.mxu0
        %v2626 = vadd.f32 %v1313, %v2625
        %v2627 = vpop.f32.mrf.mxu0
        %v2628 = vadd.f32 %v1315, %v2627
        %2629 = vmatmul.bf16.gmra.mxu0 %v2200
        %v2630 = vpop.f32.mrf.mxu0
        %v2631 = vadd.f32 %v1318, %v2630
        %v2632 = vpop.f32.mrf.mxu0
        %v2633 = vadd.f32 %v1320, %v2632
        %2634 = vmatmul.bf16.gmra.mxu0 %v2203
        %v2635 = vpop.f32.mrf.mxu0
        %v2636 = vadd.f32 %v1323, %v2635
        %v2637 = vpop.f32.mrf.mxu0
        %v2638 = vadd.f32 %v1325, %v2637
        %2639 = vdwg.mxu0
        %2640 = vmatpush.bf16.msra.mxu0 0
        %2641 = vmatpush.bf16.msra.mxu0 0
        %2642 = vmatpush.bf16.msra.mxu0 0
        %2643 = vmatpush.bf16.msra.mxu0 0
        %2644 = vmatpush.bf16.msra.mxu0 0
        %2645 = vmatpush.bf16.msra.mxu0 0
        %2646 = vmatpush.bf16.msra.mxu0 %v2172
        %2647 = vmatpush.bf16.msra.mxu0 %v2156
        %2648 = vmatmul.bf16.gmra.mxu0 %v2194
        %v2649 = vpop.f32.mrf.mxu0
        %v2650 = vadd.f32 %v1357, %v2649
        %v2651 = vpop.f32.mrf.mxu0
        %v2652 = vadd.f32 %v1359, %v2651
        %2653 = vmatmul.bf16.gmra.mxu0 %v2197
        %v2654 = vpop.f32.mrf.mxu0
        %v2655 = vadd.f32 %v1362, %v2654
        %v2656 = vpop.f32.mrf.mxu0
        %v2657 = vadd.f32 %v1364, %v2656
        %2658 = vmatmul.bf16.gmra.mxu0 %v2200
        %v2659 = vpop.f32.mrf.mxu0
        %v2660 = vadd.f32 %v1367, %v2659
        %v2661 = vpop.f32.mrf.mxu0
        %v2662 = vadd.f32 %v1369, %v2661
        %2663 = vmatmul.bf16.gmra.mxu0 %v2203
        %v2664 = vpop.f32.mrf.mxu0
        %v2665 = vadd.f32 %v1372, %v2664
        %v2666 = vpop.f32.mrf.mxu0
        %v2667 = vadd.f32 %v1374, %v2666
        %2668 = vdwg.mxu0
        %2670 = vset.pattern.permute.xlu0 0
        %2671 = vperm.xlu0 %2670, %v339
        %v2672 = vpop.permute.xlu0 %2671
        %2675 = vset.pattern.permute.xlu0 0
        %2676 = vperm.xlu0 %2675, %v340
        %v2677 = vpop.permute.xlu0 %2676
        %2680 = vset.pattern.permute.xlu0 0
        %2681 = vperm.xlu0 %2680, %v341
        %v2682 = vpop.permute.xlu0 %2681
        %2685 = vset.pattern.permute.xlu0 0
        %2686 = vperm.xlu0 %2685, %v342
        %v2687 = vpop.permute.xlu0 %2686
        %2690 = vset.pattern.permute.xlu0 0
        %2691 = vperm.xlu0 %2690, %v343
        %v2692 = vpop.permute.xlu0 %2691
        %2695 = vset.pattern.permute.xlu0 0
        %2696 = vperm.xlu0 %2695, %v344
        %v2697 = vpop.permute.xlu0 %2696
        %2700 = vset.pattern.permute.xlu0 0
        %2701 = vperm.xlu0 %2700, %v345
        %v2702 = vpop.permute.xlu0 %2701
        %2705 = vset.pattern.permute.xlu0 0
        %2706 = vperm.xlu0 %2705, %v346
        %v2707 = vpop.permute.xlu0 %2706
        %v2709 = vadd.f32 %v2215, %v2672
        %v2710 = vadd.f32 %v2244, %v2672
        %v2711 = vadd.f32 %v2273, %v2672
        %v2712 = vadd.f32 %v2302, %v2672
        %v2713 = vadd.f32 %v2331, %v2672
        %v2714 = vadd.f32 %v2360, %v2672
        %v2715 = vadd.f32 %v2389, %v2672
        %v2716 = vadd.f32 %v2418, %v2672
        %v2717 = vadd.f32 %v2447, %v2672
        %v2718 = vadd.f32 %v2476, %v2672
        %v2719 = vadd.f32 %v2505, %v2672
        %v2720 = vadd.f32 %v2534, %v2672
        %v2721 = vadd.f32 %v2563, %v2672
        %v2722 = vadd.f32 %v2592, %v2672
        %v2723 = vadd.f32 %v2621, %v2672
        %v2724 = vadd.f32 %v2650, %v2672
        %v2725 = vadd.f32 %v2217, %v2677
        %v2726 = vadd.f32 %v2246, %v2677
        %v2727 = vadd.f32 %v2275, %v2677
        %v2728 = vadd.f32 %v2304, %v2677
        %v2729 = vadd.f32 %v2333, %v2677
        %v2730 = vadd.f32 %v2362, %v2677
        %v2731 = vadd.f32 %v2391, %v2677
        %v2732 = vadd.f32 %v2420, %v2677
        %v2733 = vadd.f32 %v2449, %v2677
        %v2734 = vadd.f32 %v2478, %v2677
        %v2735 = vadd.f32 %v2507, %v2677
        %v2736 = vadd.f32 %v2536, %v2677
        %v2737 = vadd.f32 %v2565, %v2677
        %v2738 = vadd.f32 %v2594, %v2677
        %v2739 = vadd.f32 %v2623, %v2677
        %v2740 = vadd.f32 %v2652, %v2677
        %v2741 = vadd.f32 %v2220, %v2682
        %v2742 = vadd.f32 %v2249, %v2682
        %v2743 = vadd.f32 %v2278, %v2682
        %v2744 = vadd.f32 %v2307, %v2682
        %v2745 = vadd.f32 %v2336, %v2682
        %v2746 = vadd.f32 %v2365, %v2682
        %v2747 = vadd.f32 %v2394, %v2682
        %v2748 = vadd.f32 %v2423, %v2682
        %v2749 = vadd.f32 %v2452, %v2682
        %v2750 = vadd.f32 %v2481, %v2682
        %v2751 = vadd.f32 %v2510, %v2682
        %v2752 = vadd.f32 %v2539, %v2682
        %v2753 = vadd.f32 %v2568, %v2682
        %v2754 = vadd.f32 %v2597, %v2682
        %v2755 = vadd.f32 %v2626, %v2682
        %v2756 = vadd.f32 %v2655, %v2682
        %v2757 = vadd.f32 %v2222, %v2687
        %v2758 = vadd.f32 %v2251, %v2687
        %v2759 = vadd.f32 %v2280, %v2687
        %v2760 = vadd.f32 %v2309, %v2687
        %v2761 = vadd.f32 %v2338, %v2687
        %v2762 = vadd.f32 %v2367, %v2687
        %v2763 = vadd.f32 %v2396, %v2687
        %v2764 = vadd.f32 %v2425, %v2687
        %v2765 = vadd.f32 %v2454, %v2687
        %v2766 = vadd.f32 %v2483, %v2687
        %v2767 = vadd.f32 %v2512, %v2687
        %v2768 = vadd.f32 %v2541, %v2687
        %v2769 = vadd.f32 %v2570, %v2687
        %v2770 = vadd.f32 %v2599, %v2687
        %v2771 = vadd.f32 %v2628, %v2687
        %v2772 = vadd.f32 %v2657, %v2687
        %v2773 = vadd.f32 %v2225, %v2692
        %v2774 = vadd.f32 %v2254, %v2692
        %v2775 = vadd.f32 %v2283, %v2692
        %v2776 = vadd.f32 %v2312, %v2692
        %v2777 = vadd.f32 %v2341, %v2692
        %v2778 = vadd.f32 %v2370, %v2692
        %v2779 = vadd.f32 %v2399, %v2692
        %v2780 = vadd.f32 %v2428, %v2692
        %v2781 = vadd.f32 %v2457, %v2692
        %v2782 = vadd.f32 %v2486, %v2692
        %v2783 = vadd.f32 %v2515, %v2692
        %v2784 = vadd.f32 %v2544, %v2692
        %v2785 = vadd.f32 %v2573, %v2692
        %v2786 = vadd.f32 %v2602, %v2692
        %v2787 = vadd.f32 %v2631, %v2692
        %v2788 = vadd.f32 %v2660, %v2692
        %v2789 = vadd.f32 %v2227, %v2697
        %v2790 = vadd.f32 %v2256, %v2697
        %v2791 = vadd.f32 %v2285, %v2697
        %v2792 = vadd.f32 %v2314, %v2697
        %v2793 = vadd.f32 %v2343, %v2697
        %v2794 = vadd.f32 %v2372, %v2697
        %v2795 = vadd.f32 %v2401, %v2697
        %v2796 = vadd.f32 %v2430, %v2697
        %v2797 = vadd.f32 %v2459, %v2697
        %v2798 = vadd.f32 %v2488, %v2697
        %v2799 = vadd.f32 %v2517, %v2697
        %v2800 = vadd.f32 %v2546, %v2697
        %v2801 = vadd.f32 %v2575, %v2697
        %v2802 = vadd.f32 %v2604, %v2697
        %v2803 = vadd.f32 %v2633, %v2697
        %v2804 = vadd.f32 %v2662, %v2697
        %v2805 = vadd.f32 %v2230, %v2702
        %v2806 = vadd.f32 %v2259, %v2702
        %v2807 = vadd.f32 %v2288, %v2702
        %v2808 = vadd.f32 %v2317, %v2702
        %v2809 = vadd.f32 %v2346, %v2702
        %v2810 = vadd.f32 %v2375, %v2702
        %v2811 = vadd.f32 %v2404, %v2702
        %v2812 = vadd.f32 %v2433, %v2702
        %v2813 = vadd.f32 %v2462, %v2702
        %v2814 = vadd.f32 %v2491, %v2702
        %v2815 = vadd.f32 %v2520, %v2702
        %v2816 = vadd.f32 %v2549, %v2702
        %v2817 = vadd.f32 %v2578, %v2702
        %v2818 = vadd.f32 %v2607, %v2702
        %v2819 = vadd.f32 %v2636, %v2702
        %v2820 = vadd.f32 %v2665, %v2702
        %v2821 = vadd.f32 %v2232, %v2707
        %v2822 = vadd.f32 %v2261, %v2707
        %v2823 = vadd.f32 %v2290, %v2707
        %v2824 = vadd.f32 %v2319, %v2707
        %v2825 = vadd.f32 %v2348, %v2707
        %v2826 = vadd.f32 %v2377, %v2707
        %v2827 = vadd.f32 %v2406, %v2707
        %v2828 = vadd.f32 %v2435, %v2707
        %v2829 = vadd.f32 %v2464, %v2707
        %v2830 = vadd.f32 %v2493, %v2707
        %v2831 = vadd.f32 %v2522, %v2707
        %v2832 = vadd.f32 %v2551, %v2707
        %v2833 = vadd.f32 %v2580, %v2707
        %v2834 = vadd.f32 %v2609, %v2707
        %v2835 = vadd.f32 %v2638, %v2707
        %v2836 = vadd.f32 %v2667, %v2707
        %v2837 = vmax.f32 %v2709, 0.0
        %v2838 = vmax.f32 %v2710, 0.0
        %v2839 = vmax.f32 %v2711, 0.0
        %v2840 = vmax.f32 %v2712, 0.0
        %v2841 = vmax.f32 %v2713, 0.0
        %v2842 = vmax.f32 %v2714, 0.0
        %v2843 = vmax.f32 %v2715, 0.0
        %v2844 = vmax.f32 %v2716, 0.0
        %v2845 = vmax.f32 %v2717, 0.0
        %v2846 = vmax.f32 %v2718, 0.0
        %v2847 = vmax.f32 %v2719, 0.0
        %v2848 = vmax.f32 %v2720, 0.0
        %v2849 = vmax.f32 %v2721, 0.0
        %v2850 = vmax.f32 %v2722, 0.0
        %v2851 = vmax.f32 %v2723, 0.0
        %v2852 = vmax.f32 %v2724, 0.0
        %v2853 = vmax.f32 %v2725, 0.0
        %v2854 = vmax.f32 %v2726, 0.0
        %v2855 = vmax.f32 %v2727, 0.0
        %v2856 = vmax.f32 %v2728, 0.0
        %v2857 = vmax.f32 %v2729, 0.0
        %v2858 = vmax.f32 %v2730, 0.0
        %v2859 = vmax.f32 %v2731, 0.0
        %v2860 = vmax.f32 %v2732, 0.0
        %v2861 = vmax.f32 %v2733, 0.0
        %v2862 = vmax.f32 %v2734, 0.0
        %v2863 = vmax.f32 %v2735, 0.0
        %v2864 = vmax.f32 %v2736, 0.0
        %v2865 = vmax.f32 %v2737, 0.0
        %v2866 = vmax.f32 %v2738, 0.0
        %v2867 = vmax.f32 %v2739, 0.0
        %v2868 = vmax.f32 %v2740, 0.0
        %v2869 = vmax.f32 %v2741, 0.0
        %v2870 = vmax.f32 %v2742, 0.0
        %v2871 = vmax.f32 %v2743, 0.0
        %v2872 = vmax.f32 %v2744, 0.0
        %v2873 = vmax.f32 %v2745, 0.0
        %v2874 = vmax.f32 %v2746, 0.0
        %v2875 = vmax.f32 %v2747, 0.0
        %v2876 = vmax.f32 %v2748, 0.0
        %v2877 = vmax.f32 %v2749, 0.0
        %v2878 = vmax.f32 %v2750, 0.0
        %v2879 = vmax.f32 %v2751, 0.0
        %v2880 = vmax.f32 %v2752, 0.0
        %v2881 = vmax.f32 %v2753, 0.0
        %v2882 = vmax.f32 %v2754, 0.0
        %v2883 = vmax.f32 %v2755, 0.0
        %v2884 = vmax.f32 %v2756, 0.0
        %v2885 = vmax.f32 %v2757, 0.0
        %v2886 = vmax.f32 %v2758, 0.0
        %v2887 = vmax.f32 %v2759, 0.0
        %v2888 = vmax.f32 %v2760, 0.0
        %v2889 = vmax.f32 %v2761, 0.0
        %v2890 = vmax.f32 %v2762, 0.0
        %v2891 = vmax.f32 %v2763, 0.0
        %v2892 = vmax.f32 %v2764, 0.0
        %v2893 = vmax.f32 %v2765, 0.0
        %v2894 = vmax.f32 %v2766, 0.0
        %v2895 = vmax.f32 %v2767, 0.0
        %v2896 = vmax.f32 %v2768, 0.0
        %v2897 = vmax.f32 %v2769, 0.0
        %v2898 = vmax.f32 %v2770, 0.0
        %v2899 = vmax.f32 %v2771, 0.0
        %v2900 = vmax.f32 %v2772, 0.0
        %v2901 = vmax.f32 %v2773, 0.0
        %v2902 = vmax.f32 %v2774, 0.0
        %v2903 = vmax.f32 %v2775, 0.0
        %v2904 = vmax.f32 %v2776, 0.0
        %v2905 = vmax.f32 %v2777, 0.0
        %v2906 = vmax.f32 %v2778, 0.0
        %v2907 = vmax.f32 %v2779, 0.0
        %v2908 = vmax.f32 %v2780, 0.0
        %v2909 = vmax.f32 %v2781, 0.0
        %v2910 = vmax.f32 %v2782, 0.0
        %v2911 = vmax.f32 %v2783, 0.0
        %v2912 = vmax.f32 %v2784, 0.0
        %v2913 = vmax.f32 %v2785, 0.0
        %v2914 = vmax.f32 %v2786, 0.0
        %v2915 = vmax.f32 %v2787, 0.0
        %v2916 = vmax.f32 %v2788, 0.0
        %v2917 = vmax.f32 %v2789, 0.0
        %v2918 = vmax.f32 %v2790, 0.0
        %v2919 = vmax.f32 %v2791, 0.0
        %v2920 = vmax.f32 %v2792, 0.0
        %v2921 = vmax.f32 %v2793, 0.0
        %v2922 = vmax.f32 %v2794, 0.0
        %v2923 = vmax.f32 %v2795, 0.0
        %v2924 = vmax.f32 %v2796, 0.0
        %v2925 = vmax.f32 %v2797, 0.0
        %v2926 = vmax.f32 %v2798, 0.0
        %v2927 = vmax.f32 %v2799, 0.0
        %v2928 = vmax.f32 %v2800, 0.0
        %v2929 = vmax.f32 %v2801, 0.0
        %v2930 = vmax.f32 %v2802, 0.0
        %v2931 = vmax.f32 %v2803, 0.0
        %v2932 = vmax.f32 %v2804, 0.0
        %v2933 = vmax.f32 %v2805, 0.0
        %v2934 = vmax.f32 %v2806, 0.0
        %v2935 = vmax.f32 %v2807, 0.0
        %v2936 = vmax.f32 %v2808, 0.0
        %v2937 = vmax.f32 %v2809, 0.0
        %v2938 = vmax.f32 %v2810, 0.0
        %v2939 = vmax.f32 %v2811, 0.0
        %v2940 = vmax.f32 %v2812, 0.0
        %v2941 = vmax.f32 %v2813, 0.0
        %v2942 = vmax.f32 %v2814, 0.0
        %v2943 = vmax.f32 %v2815, 0.0
        %v2944 = vmax.f32 %v2816, 0.0
        %v2945 = vmax.f32 %v2817, 0.0
        %v2946 = vmax.f32 %v2818, 0.0
        %v2947 = vmax.f32 %v2819, 0.0
        %v2948 = vmax.f32 %v2820, 0.0
        %v2949 = vmax.f32 %v2821, 0.0
        %v2950 = vmax.f32 %v2822, 0.0
        %v2951 = vmax.f32 %v2823, 0.0
        %v2952 = vmax.f32 %v2824, 0.0
        %v2953 = vmax.f32 %v2825, 0.0
        %v2954 = vmax.f32 %v2826, 0.0
        %v2955 = vmax.f32 %v2827, 0.0
        %v2956 = vmax.f32 %v2828, 0.0
        %v2957 = vmax.f32 %v2829, 0.0
        %v2958 = vmax.f32 %v2830, 0.0
        %v2959 = vmax.f32 %v2831, 0.0
        %v2960 = vmax.f32 %v2832, 0.0
        %v2961 = vmax.f32 %v2833, 0.0
        %v2962 = vmax.f32 %v2834, 0.0
        %v2963 = vmax.f32 %v2835, 0.0
        %v2964 = vmax.f32 %v2836, 0.0
        %v2965 = vpack.c.bf16 %v2853, %v2837
        %v2966 = vpack.c.bf16 %v2854, %v2838
        %v2967 = vpack.c.bf16 %v2855, %v2839
        %v2968 = vpack.c.bf16 %v2856, %v2840
        %v2969 = vpack.c.bf16 %v2857, %v2841
        %v2970 = vpack.c.bf16 %v2858, %v2842
        %v2971 = vpack.c.bf16 %v2859, %v2843
        %v2972 = vpack.c.bf16 %v2860, %v2844
        %v2973 = vpack.c.bf16 %v2861, %v2845
        %v2974 = vpack.c.bf16 %v2862, %v2846
        %v2975 = vpack.c.bf16 %v2863, %v2847
        %v2976 = vpack.c.bf16 %v2864, %v2848
        %v2977 = vpack.c.bf16 %v2865, %v2849
        %v2978 = vpack.c.bf16 %v2866, %v2850
        %v2979 = vpack.c.bf16 %v2867, %v2851
        %v2980 = vpack.c.bf16 %v2868, %v2852
        %v2981 = vpack.c.bf16 %v2885, %v2869
        %v2982 = vpack.c.bf16 %v2886, %v2870
        %v2983 = vpack.c.bf16 %v2887, %v2871
        %v2984 = vpack.c.bf16 %v2888, %v2872
        %v2985 = vpack.c.bf16 %v2889, %v2873
        %v2986 = vpack.c.bf16 %v2890, %v2874
        %v2987 = vpack.c.bf16 %v2891, %v2875
        %v2988 = vpack.c.bf16 %v2892, %v2876
        %v2989 = vpack.c.bf16 %v2893, %v2877
        %v2990 = vpack.c.bf16 %v2894, %v2878
        %v2991 = vpack.c.bf16 %v2895, %v2879
        %v2992 = vpack.c.bf16 %v2896, %v2880
        %v2993 = vpack.c.bf16 %v2897, %v2881
        %v2994 = vpack.c.bf16 %v2898, %v2882
        %v2995 = vpack.c.bf16 %v2899, %v2883
        %v2996 = vpack.c.bf16 %v2900, %v2884
        %v2997 = vpack.c.bf16 %v2917, %v2901
        %v2998 = vpack.c.bf16 %v2918, %v2902
        %v2999 = vpack.c.bf16 %v2919, %v2903
        %v3000 = vpack.c.bf16 %v2920, %v2904
        %v3001 = vpack.c.bf16 %v2921, %v2905
        %v3002 = vpack.c.bf16 %v2922, %v2906
        %v3003 = vpack.c.bf16 %v2923, %v2907
        %v3004 = vpack.c.bf16 %v2924, %v2908
        %v3005 = vpack.c.bf16 %v2925, %v2909
        %v3006 = vpack.c.bf16 %v2926, %v2910
        %v3007 = vpack.c.bf16 %v2927, %v2911
        %v3008 = vpack.c.bf16 %v2928, %v2912
        %v3009 = vpack.c.bf16 %v2929, %v2913
        %v3010 = vpack.c.bf16 %v2930, %v2914
        %v3011 = vpack.c.bf16 %v2931, %v2915
        %v3012 = vpack.c.bf16 %v2932, %v2916
        %v3013 = vpack.c.bf16 %v2949, %v2933
        %v3014 = vpack.c.bf16 %v2950, %v2934
        %v3015 = vpack.c.bf16 %v2951, %v2935
        %v3016 = vpack.c.bf16 %v2952, %v2936
        %v3017 = vpack.c.bf16 %v2953, %v2937
        %v3018 = vpack.c.bf16 %v2954, %v2938
        %v3019 = vpack.c.bf16 %v2955, %v2939
        %v3020 = vpack.c.bf16 %v2956, %v2940
        %v3021 = vpack.c.bf16 %v2957, %v2941
        %v3022 = vpack.c.bf16 %v2958, %v2942
        %v3023 = vpack.c.bf16 %v2959, %v2943
        %v3024 = vpack.c.bf16 %v2960, %v2944
        %v3025 = vpack.c.bf16 %v2961, %v2945
        %v3026 = vpack.c.bf16 %v2962, %v2946
        %v3027 = vpack.c.bf16 %v2963, %v2947
        %v3028 = vpack.c.bf16 %v2964, %v2948
        %3030 = vset.pattern.permute.xlu0 0
        %3031 = vperm.xlu0 %3030, %v348
        %v3032 = vpop.permute.xlu0 %3031
        %3035 = vset.pattern.permute.xlu0 0
        %3036 = vperm.xlu0 %3035, %v349
        %v3037 = vpop.permute.xlu0 %3036
        %3040 = vset.pattern.permute.xlu0 0
        %3041 = vperm.xlu0 %3040, %v350
        %v3042 = vpop.permute.xlu0 %3041
        %3045 = vset.pattern.permute.xlu0 0
        %3046 = vperm.xlu0 %3045, %v351
        %v3047 = vpop.permute.xlu0 %3046
        %3050 = vset.pattern.permute.xlu0 0
        %3051 = vperm.xlu0 %3050, %v352
        %v3052 = vpop.permute.xlu0 %3051
        %3055 = vset.pattern.permute.xlu0 0
        %3056 = vperm.xlu0 %3055, %v353
        %v3057 = vpop.permute.xlu0 %3056
        %3060 = vset.pattern.permute.xlu0 0
        %3061 = vperm.xlu0 %3060, %v354
        %v3062 = vpop.permute.xlu0 %3061
        %3065 = vset.pattern.permute.xlu0 0
        %3066 = vperm.xlu0 %3065, %v355
        %v3067 = vpop.permute.xlu0 %3066
        %v3077 = vunpack.c.l.b16 %v317
        %v3078 = vunpack.c.l.b16 %v318
        %v3079 = vunpack.c.l.b16 %v319
        %v3080 = vunpack.c.l.b16 %v320
        %v3081 = vunpack.c.l.b16 %v321
        %v3082 = vunpack.c.l.b16 %v322
        %v3083 = vunpack.c.l.b16 %v323
        %v3084 = vunpack.c.l.b16 %v324
        %v3085 = vpack.c.b16 %v3078, %v3077
        %v3086 = vpack.c.b16 %v3080, %v3079
        %v3087 = vpack.c.b16 %v3082, %v3081
        %v3088 = vpack.c.b16 %v3084, %v3083
        %v3090 = vsel %vm1766, %v3085, 0
        %v3093 = vsel %vm1766, %v3086, 0
        %v3096 = vsel %vm1766, %v3087, 0
        %v3099 = vsel %vm1766, %v3088, 0
        %3101 = vmatpush.bf16.msra.mxu0 0
        %3102 = vmatpush.bf16.msra.mxu0 0
        %3103 = vmatpush.bf16.msra.mxu0 0
        %3104 = vmatpush.bf16.msra.mxu0 0
        %3105 = vmatpush.bf16.msra.mxu0 %v3013
        %3106 = vmatpush.bf16.msra.mxu0 %v2997
        %3107 = vmatpush.bf16.msra.mxu0 %v2981
        %3108 = vmatpush.bf16.msra.mxu0 %v2965
        %3109 = vmatmul.bf16.gmra.mxu0 %v3090
        %v3110 = vpop.f32.mrf.mxu0
        %v3111 = vadd.f32 %v3032, %v3110
        %v3112 = vpop.f32.mrf.mxu0
        %v3113 = vadd.f32 %v3037, %v3112
        %3114 = vmatmul.bf16.gmra.mxu0 %v3093
        %v3115 = vpop.f32.mrf.mxu0
        %v3116 = vadd.f32 %v3042, %v3115
        %v3117 = vpop.f32.mrf.mxu0
        %v3118 = vadd.f32 %v3047, %v3117
        %3119 = vmatmul.bf16.gmra.mxu0 %v3096
        %v3120 = vpop.f32.mrf.mxu0
        %v3121 = vadd.f32 %v3052, %v3120
        %v3122 = vpop.f32.mrf.mxu0
        %v3123 = vadd.f32 %v3057, %v3122
        %3124 = vmatmul.bf16.gmra.mxu0 %v3099
        %v3125 = vpop.f32.mrf.mxu0
        %v3126 = vadd.f32 %v3062, %v3125
        %v3127 = vpop.f32.mrf.mxu0
        %v3128 = vadd.f32 %v3067, %v3127
        %3129 = vdwg.mxu0
        %3130 = vmatpush.bf16.msra.mxu0 0
        %3131 = vmatpush.bf16.msra.mxu0 0
        %3132 = vmatpush.bf16.msra.mxu0 0
        %3133 = vmatpush.bf16.msra.mxu0 0
        %3134 = vmatpush.bf16.msra.mxu0 %v3014
        %3135 = vmatpush.bf16.msra.mxu0 %v2998
        %3136 = vmatpush.bf16.msra.mxu0 %v2982
        %3137 = vmatpush.bf16.msra.mxu0 %v2966
        %3138 = vmatmul.bf16.gmra.mxu0 %v3090
        %v3139 = vpop.f32.mrf.mxu0
        %v3140 = vadd.f32 %v3032, %v3139
        %v3141 = vpop.f32.mrf.mxu0
        %v3142 = vadd.f32 %v3037, %v3141
        %3143 = vmatmul.bf16.gmra.mxu0 %v3093
        %v3144 = vpop.f32.mrf.mxu0
        %v3145 = vadd.f32 %v3042, %v3144
        %v3146 = vpop.f32.mrf.mxu0
        %v3147 = vadd.f32 %v3047, %v3146
        %3148 = vmatmul.bf16.gmra.mxu0 %v3096
        %v3149 = vpop.f32.mrf.mxu0
        %v3150 = vadd.f32 %v3052, %v3149
        %v3151 = vpop.f32.mrf.mxu0
        %v3152 = vadd.f32 %v3057, %v3151
        %3153 = vmatmul.bf16.gmra.mxu0 %v3099
        %v3154 = vpop.f32.mrf.mxu0
        %v3155 = vadd.f32 %v3062, %v3154
        %v3156 = vpop.f32.mrf.mxu0
        %v3157 = vadd.f32 %v3067, %v3156
        %3158 = vdwg.mxu0
        %3159 = vmatpush.bf16.msra.mxu0 0
        %3160 = vmatpush.bf16.msra.mxu0 0
        %3161 = vmatpush.bf16.msra.mxu0 0
        %3162 = vmatpush.bf16.msra.mxu0 0
        %3163 = vmatpush.bf16.msra.mxu0 %v3015
        %3164 = vmatpush.bf16.msra.mxu0 %v2999
        %3165 = vmatpush.bf16.msra.mxu0 %v2983
        %3166 = vmatpush.bf16.msra.mxu0 %v2967
        %3167 = vmatmul.bf16.gmra.mxu0 %v3090
        %v3168 = vpop.f32.mrf.mxu0
        %v3169 = vadd.f32 %v3032, %v3168
        %v3170 = vpop.f32.mrf.mxu0
        %v3171 = vadd.f32 %v3037, %v3170
        %3172 = vmatmul.bf16.gmra.mxu0 %v3093
        %v3173 = vpop.f32.mrf.mxu0
        %v3174 = vadd.f32 %v3042, %v3173
        %v3175 = vpop.f32.mrf.mxu0
        %v3176 = vadd.f32 %v3047, %v3175
        %3177 = vmatmul.bf16.gmra.mxu0 %v3096
        %v3178 = vpop.f32.mrf.mxu0
        %v3179 = vadd.f32 %v3052, %v3178
        %v3180 = vpop.f32.mrf.mxu0
        %v3181 = vadd.f32 %v3057, %v3180
        %3182 = vmatmul.bf16.gmra.mxu0 %v3099
        %v3183 = vpop.f32.mrf.mxu0
        %v3184 = vadd.f32 %v3062, %v3183
        %v3185 = vpop.f32.mrf.mxu0
        %v3186 = vadd.f32 %v3067, %v3185
        %3187 = vdwg.mxu0
        %3188 = vmatpush.bf16.msra.mxu0 0
        %3189 = vmatpush.bf16.msra.mxu0 0
        %3190 = vmatpush.bf16.msra.mxu0 0
        %3191 = vmatpush.bf16.msra.mxu0 0
        %3192 = vmatpush.bf16.msra.mxu0 %v3016
        %3193 = vmatpush.bf16.msra.mxu0 %v3000
        %3194 = vmatpush.bf16.msra.mxu0 %v2984
        %3195 = vmatpush.bf16.msra.mxu0 %v2968
        %3196 = vmatmul.bf16.gmra.mxu0 %v3090
        %v3197 = vpop.f32.mrf.mxu0
        %v3198 = vadd.f32 %v3032, %v3197
        %v3199 = vpop.f32.mrf.mxu0
        %v3200 = vadd.f32 %v3037, %v3199
        %3201 = vmatmul.bf16.gmra.mxu0 %v3093
        %v3202 = vpop.f32.mrf.mxu0
        %v3203 = vadd.f32 %v3042, %v3202
        %v3204 = vpop.f32.mrf.mxu0
        %v3205 = vadd.f32 %v3047, %v3204
        %3206 = vmatmul.bf16.gmra.mxu0 %v3096
        %v3207 = vpop.f32.mrf.mxu0
        %v3208 = vadd.f32 %v3052, %v3207
        %v3209 = vpop.f32.mrf.mxu0
        %v3210 = vadd.f32 %v3057, %v3209
        %3211 = vmatmul.bf16.gmra.mxu0 %v3099
        %v3212 = vpop.f32.mrf.mxu0
        %v3213 = vadd.f32 %v3062, %v3212
        %v3214 = vpop.f32.mrf.mxu0
        %v3215 = vadd.f32 %v3067, %v3214
        %3216 = vdwg.mxu0
        %3217 = vmatpush.bf16.msra.mxu0 0
        %3218 = vmatpush.bf16.msra.mxu0 0
        %3219 = vmatpush.bf16.msra.mxu0 0
        %3220 = vmatpush.bf16.msra.mxu0 0
        %3221 = vmatpush.bf16.msra.mxu0 %v3017
        %3222 = vmatpush.bf16.msra.mxu0 %v3001
        %3223 = vmatpush.bf16.msra.mxu0 %v2985
        %3224 = vmatpush.bf16.msra.mxu0 %v2969
        %3225 = vmatmul.bf16.gmra.mxu0 %v3090
        %v3226 = vpop.f32.mrf.mxu0
        %v3227 = vadd.f32 %v3032, %v3226
        %v3228 = vpop.f32.mrf.mxu0
        %v3229 = vadd.f32 %v3037, %v3228
        %3230 = vmatmul.bf16.gmra.mxu0 %v3093
        %v3231 = vpop.f32.mrf.mxu0
        %v3232 = vadd.f32 %v3042, %v3231
        %v3233 = vpop.f32.mrf.mxu0
        %v3234 = vadd.f32 %v3047, %v3233
        %3235 = vmatmul.bf16.gmra.mxu0 %v3096
        %v3236 = vpop.f32.mrf.mxu0
        %v3237 = vadd.f32 %v3052, %v3236
        %v3238 = vpop.f32.mrf.mxu0
        %v3239 = vadd.f32 %v3057, %v3238
        %3240 = vmatmul.bf16.gmra.mxu0 %v3099
        %v3241 = vpop.f32.mrf.mxu0
        %v3242 = vadd.f32 %v3062, %v3241
        %v3243 = vpop.f32.mrf.mxu0
        %v3244 = vadd.f32 %v3067, %v3243
        %3245 = vdwg.mxu0
        %3246 = vmatpush.bf16.msra.mxu0 0
        %3247 = vmatpush.bf16.msra.mxu0 0
        %3248 = vmatpush.bf16.msra.mxu0 0
        %3249 = vmatpush.bf16.msra.mxu0 0
        %3250 = vmatpush.bf16.msra.mxu0 %v3018
        %3251 = vmatpush.bf16.msra.mxu0 %v3002
        %3252 = vmatpush.bf16.msra.mxu0 %v2986
        %3253 = vmatpush.bf16.msra.mxu0 %v2970
        %3254 = vmatmul.bf16.gmra.mxu0 %v3090
        %v3255 = vpop.f32.mrf.mxu0
        %v3256 = vadd.f32 %v3032, %v3255
        %v3257 = vpop.f32.mrf.mxu0
        %v3258 = vadd.f32 %v3037, %v3257
        %3259 = vmatmul.bf16.gmra.mxu0 %v3093
        %v3260 = vpop.f32.mrf.mxu0
        %v3261 = vadd.f32 %v3042, %v3260
        %v3262 = vpop.f32.mrf.mxu0
        %v3263 = vadd.f32 %v3047, %v3262
        %3264 = vmatmul.bf16.gmra.mxu0 %v3096
        %v3265 = vpop.f32.mrf.mxu0
        %v3266 = vadd.f32 %v3052, %v3265
        %v3267 = vpop.f32.mrf.mxu0
        %v3268 = vadd.f32 %v3057, %v3267
        %3269 = vmatmul.bf16.gmra.mxu0 %v3099
        %v3270 = vpop.f32.mrf.mxu0
        %v3271 = vadd.f32 %v3062, %v3270
        %v3272 = vpop.f32.mrf.mxu0
        %v3273 = vadd.f32 %v3067, %v3272
        %3274 = vdwg.mxu0
        %3275 = vmatpush.bf16.msra.mxu0 0
        %3276 = vmatpush.bf16.msra.mxu0 0
        %3277 = vmatpush.bf16.msra.mxu0 0
        %3278 = vmatpush.bf16.msra.mxu0 0
        %3279 = vmatpush.bf16.msra.mxu0 %v3019
        %3280 = vmatpush.bf16.msra.mxu0 %v3003
        %3281 = vmatpush.bf16.msra.mxu0 %v2987
        %3282 = vmatpush.bf16.msra.mxu0 %v2971
        %3283 = vmatmul.bf16.gmra.mxu0 %v3090
        %v3284 = vpop.f32.mrf.mxu0
        %v3285 = vadd.f32 %v3032, %v3284
        %v3286 = vpop.f32.mrf.mxu0
        %v3287 = vadd.f32 %v3037, %v3286
        %3288 = vmatmul.bf16.gmra.mxu0 %v3093
        %v3289 = vpop.f32.mrf.mxu0
        %v3290 = vadd.f32 %v3042, %v3289
        %v3291 = vpop.f32.mrf.mxu0
        %v3292 = vadd.f32 %v3047, %v3291
        %3293 = vmatmul.bf16.gmra.mxu0 %v3096
        %v3294 = vpop.f32.mrf.mxu0
        %v3295 = vadd.f32 %v3052, %v3294
        %v3296 = vpop.f32.mrf.mxu0
        %v3297 = vadd.f32 %v3057, %v3296
        %3298 = vmatmul.bf16.gmra.mxu0 %v3099
        %v3299 = vpop.f32.mrf.mxu0
        %v3300 = vadd.f32 %v3062, %v3299
        %v3301 = vpop.f32.mrf.mxu0
        %v3302 = vadd.f32 %v3067, %v3301
        %3303 = vdwg.mxu0
        %3304 = vmatpush.bf16.msra.mxu0 0
        %3305 = vmatpush.bf16.msra.mxu0 0
        %3306 = vmatpush.bf16.msra.mxu0 0
        %3307 = vmatpush.bf16.msra.mxu0 0
        %3308 = vmatpush.bf16.msra.mxu0 %v3020
        %3309 = vmatpush.bf16.msra.mxu0 %v3004
        %3310 = vmatpush.bf16.msra.mxu0 %v2988
        %3311 = vmatpush.bf16.msra.mxu0 %v2972
        %3312 = vmatmul.bf16.gmra.mxu0 %v3090
        %v3313 = vpop.f32.mrf.mxu0
        %v3314 = vadd.f32 %v3032, %v3313
        %v3315 = vpop.f32.mrf.mxu0
        %v3316 = vadd.f32 %v3037, %v3315
        %3317 = vmatmul.bf16.gmra.mxu0 %v3093
        %v3318 = vpop.f32.mrf.mxu0
        %v3319 = vadd.f32 %v3042, %v3318
        %v3320 = vpop.f32.mrf.mxu0
        %v3321 = vadd.f32 %v3047, %v3320
        %3322 = vmatmul.bf16.gmra.mxu0 %v3096
        %v3323 = vpop.f32.mrf.mxu0
        %v3324 = vadd.f32 %v3052, %v3323
        %v3325 = vpop.f32.mrf.mxu0
        %v3326 = vadd.f32 %v3057, %v3325
        %3327 = vmatmul.bf16.gmra.mxu0 %v3099
        %v3328 = vpop.f32.mrf.mxu0
        %v3329 = vadd.f32 %v3062, %v3328
        %v3330 = vpop.f32.mrf.mxu0
        %v3331 = vadd.f32 %v3067, %v3330
        %3332 = vdwg.mxu0
        %3333 = vmatpush.bf16.msra.mxu0 0
        %3334 = vmatpush.bf16.msra.mxu0 0
        %3335 = vmatpush.bf16.msra.mxu0 0
        %3336 = vmatpush.bf16.msra.mxu0 0
        %3337 = vmatpush.bf16.msra.mxu0 %v3021
        %3338 = vmatpush.bf16.msra.mxu0 %v3005
        %3339 = vmatpush.bf16.msra.mxu0 %v2989
        %3340 = vmatpush.bf16.msra.mxu0 %v2973
        %3341 = vmatmul.bf16.gmra.mxu0 %v3090
        %v3342 = vpop.f32.mrf.mxu0
        %v3343 = vadd.f32 %v3032, %v3342
        %v3344 = vpop.f32.mrf.mxu0
        %v3345 = vadd.f32 %v3037, %v3344
        %3346 = vmatmul.bf16.gmra.mxu0 %v3093
        %v3347 = vpop.f32.mrf.mxu0
        %v3348 = vadd.f32 %v3042, %v3347
        %v3349 = vpop.f32.mrf.mxu0
        %v3350 = vadd.f32 %v3047, %v3349
        %3351 = vmatmul.bf16.gmra.mxu0 %v3096
        %v3352 = vpop.f32.mrf.mxu0
        %v3353 = vadd.f32 %v3052, %v3352
        %v3354 = vpop.f32.mrf.mxu0
        %v3355 = vadd.f32 %v3057, %v3354
        %3356 = vmatmul.bf16.gmra.mxu0 %v3099
        %v3357 = vpop.f32.mrf.mxu0
        %v3358 = vadd.f32 %v3062, %v3357
        %v3359 = vpop.f32.mrf.mxu0
        %v3360 = vadd.f32 %v3067, %v3359
        %3361 = vdwg.mxu0
        %3362 = vmatpush.bf16.msra.mxu0 0
        %3363 = vmatpush.bf16.msra.mxu0 0
        %3364 = vmatpush.bf16.msra.mxu0 0
        %3365 = vmatpush.bf16.msra.mxu0 0
        %3366 = vmatpush.bf16.msra.mxu0 %v3022
        %3367 = vmatpush.bf16.msra.mxu0 %v3006
        %3368 = vmatpush.bf16.msra.mxu0 %v2990
        %3369 = vmatpush.bf16.msra.mxu0 %v2974
        %3370 = vmatmul.bf16.gmra.mxu0 %v3090
        %v3371 = vpop.f32.mrf.mxu0
        %v3372 = vadd.f32 %v3032, %v3371
        %v3373 = vpop.f32.mrf.mxu0
        %v3374 = vadd.f32 %v3037, %v3373
        %3375 = vmatmul.bf16.gmra.mxu0 %v3093
        %v3376 = vpop.f32.mrf.mxu0
        %v3377 = vadd.f32 %v3042, %v3376
        %v3378 = vpop.f32.mrf.mxu0
        %v3379 = vadd.f32 %v3047, %v3378
        %3380 = vmatmul.bf16.gmra.mxu0 %v3096
        %v3381 = vpop.f32.mrf.mxu0
        %v3382 = vadd.f32 %v3052, %v3381
        %v3383 = vpop.f32.mrf.mxu0
        %v3384 = vadd.f32 %v3057, %v3383
        %3385 = vmatmul.bf16.gmra.mxu0 %v3099
        %v3386 = vpop.f32.mrf.mxu0
        %v3387 = vadd.f32 %v3062, %v3386
        %v3388 = vpop.f32.mrf.mxu0
        %v3389 = vadd.f32 %v3067, %v3388
        %3390 = vdwg.mxu0
        %3391 = vmatpush.bf16.msra.mxu0 0
        %3392 = vmatpush.bf16.msra.mxu0 0
        %3393 = vmatpush.bf16.msra.mxu0 0
        %3394 = vmatpush.bf16.msra.mxu0 0
        %3395 = vmatpush.bf16.msra.mxu0 %v3023
        %3396 = vmatpush.bf16.msra.mxu0 %v3007
        %3397 = vmatpush.bf16.msra.mxu0 %v2991
        %3398 = vmatpush.bf16.msra.mxu0 %v2975
        %3399 = vmatmul.bf16.gmra.mxu0 %v3090
        %v3400 = vpop.f32.mrf.mxu0
        %v3401 = vadd.f32 %v3032, %v3400
        %v3402 = vpop.f32.mrf.mxu0
        %v3403 = vadd.f32 %v3037, %v3402
        %3404 = vmatmul.bf16.gmra.mxu0 %v3093
        %v3405 = vpop.f32.mrf.mxu0
        %v3406 = vadd.f32 %v3042, %v3405
        %v3407 = vpop.f32.mrf.mxu0
        %v3408 = vadd.f32 %v3047, %v3407
        %3409 = vmatmul.bf16.gmra.mxu0 %v3096
        %v3410 = vpop.f32.mrf.mxu0
        %v3411 = vadd.f32 %v3052, %v3410
        %v3412 = vpop.f32.mrf.mxu0
        %v3413 = vadd.f32 %v3057, %v3412
        %3414 = vmatmul.bf16.gmra.mxu0 %v3099
        %v3415 = vpop.f32.mrf.mxu0
        %v3416 = vadd.f32 %v3062, %v3415
        %v3417 = vpop.f32.mrf.mxu0
        %v3418 = vadd.f32 %v3067, %v3417
        %3419 = vdwg.mxu0
        %3420 = vmatpush.bf16.msra.mxu0 0
        %3421 = vmatpush.bf16.msra.mxu0 0
        %3422 = vmatpush.bf16.msra.mxu0 0
        %3423 = vmatpush.bf16.msra.mxu0 0
        %3424 = vmatpush.bf16.msra.mxu0 %v3024
        %3425 = vmatpush.bf16.msra.mxu0 %v3008
        %3426 = vmatpush.bf16.msra.mxu0 %v2992
        %3427 = vmatpush.bf16.msra.mxu0 %v2976
        %3428 = vmatmul.bf16.gmra.mxu0 %v3090
        %v3429 = vpop.f32.mrf.mxu0
        %v3430 = vadd.f32 %v3032, %v3429
        %v3431 = vpop.f32.mrf.mxu0
        %v3432 = vadd.f32 %v3037, %v3431
        %3433 = vmatmul.bf16.gmra.mxu0 %v3093
        %v3434 = vpop.f32.mrf.mxu0
        %v3435 = vadd.f32 %v3042, %v3434
        %v3436 = vpop.f32.mrf.mxu0
        %v3437 = vadd.f32 %v3047, %v3436
        %3438 = vmatmul.bf16.gmra.mxu0 %v3096
        %v3439 = vpop.f32.mrf.mxu0
        %v3440 = vadd.f32 %v3052, %v3439
        %v3441 = vpop.f32.mrf.mxu0
        %v3442 = vadd.f32 %v3057, %v3441
        %3443 = vmatmul.bf16.gmra.mxu0 %v3099
        %v3444 = vpop.f32.mrf.mxu0
        %v3445 = vadd.f32 %v3062, %v3444
        %v3446 = vpop.f32.mrf.mxu0
        %v3447 = vadd.f32 %v3067, %v3446
        %3448 = vdwg.mxu0
        %3449 = vmatpush.bf16.msra.mxu0 0
        %3450 = vmatpush.bf16.msra.mxu0 0
        %3451 = vmatpush.bf16.msra.mxu0 0
        %3452 = vmatpush.bf16.msra.mxu0 0
        %3453 = vmatpush.bf16.msra.mxu0 %v3025
        %3454 = vmatpush.bf16.msra.mxu0 %v3009
        %3455 = vmatpush.bf16.msra.mxu0 %v2993
        %3456 = vmatpush.bf16.msra.mxu0 %v2977
        %3457 = vmatmul.bf16.gmra.mxu0 %v3090
        %v3458 = vpop.f32.mrf.mxu0
        %v3459 = vadd.f32 %v3032, %v3458
        %v3460 = vpop.f32.mrf.mxu0
        %v3461 = vadd.f32 %v3037, %v3460
        %3462 = vmatmul.bf16.gmra.mxu0 %v3093
        %v3463 = vpop.f32.mrf.mxu0
        %v3464 = vadd.f32 %v3042, %v3463
        %v3465 = vpop.f32.mrf.mxu0
        %v3466 = vadd.f32 %v3047, %v3465
        %3467 = vmatmul.bf16.gmra.mxu0 %v3096
        %v3468 = vpop.f32.mrf.mxu0
        %v3469 = vadd.f32 %v3052, %v3468
        %v3470 = vpop.f32.mrf.mxu0
        %v3471 = vadd.f32 %v3057, %v3470
        %3472 = vmatmul.bf16.gmra.mxu0 %v3099
        %v3473 = vpop.f32.mrf.mxu0
        %v3474 = vadd.f32 %v3062, %v3473
        %v3475 = vpop.f32.mrf.mxu0
        %v3476 = vadd.f32 %v3067, %v3475
        %3477 = vdwg.mxu0
        %3478 = vmatpush.bf16.msra.mxu0 0
        %3479 = vmatpush.bf16.msra.mxu0 0
        %3480 = vmatpush.bf16.msra.mxu0 0
        %3481 = vmatpush.bf16.msra.mxu0 0
        %3482 = vmatpush.bf16.msra.mxu0 %v3026
        %3483 = vmatpush.bf16.msra.mxu0 %v3010
        %3484 = vmatpush.bf16.msra.mxu0 %v2994
        %3485 = vmatpush.bf16.msra.mxu0 %v2978
        %3486 = vmatmul.bf16.gmra.mxu0 %v3090
        %v3487 = vpop.f32.mrf.mxu0
        %v3488 = vadd.f32 %v3032, %v3487
        %v3489 = vpop.f32.mrf.mxu0
        %v3490 = vadd.f32 %v3037, %v3489
        %3491 = vmatmul.bf16.gmra.mxu0 %v3093
        %v3492 = vpop.f32.mrf.mxu0
        %v3493 = vadd.f32 %v3042, %v3492
        %v3494 = vpop.f32.mrf.mxu0
        %v3495 = vadd.f32 %v3047, %v3494
        %3496 = vmatmul.bf16.gmra.mxu0 %v3096
        %v3497 = vpop.f32.mrf.mxu0
        %v3498 = vadd.f32 %v3052, %v3497
        %v3499 = vpop.f32.mrf.mxu0
        %v3500 = vadd.f32 %v3057, %v3499
        %3501 = vmatmul.bf16.gmra.mxu0 %v3099
        %v3502 = vpop.f32.mrf.mxu0
        %v3503 = vadd.f32 %v3062, %v3502
        %v3504 = vpop.f32.mrf.mxu0
        %v3505 = vadd.f32 %v3067, %v3504
        %3506 = vdwg.mxu0
        %3507 = vmatpush.bf16.msra.mxu0 0
        %3508 = vmatpush.bf16.msra.mxu0 0
        %3509 = vmatpush.bf16.msra.mxu0 0
        %3510 = vmatpush.bf16.msra.mxu0 0
        %3511 = vmatpush.bf16.msra.mxu0 %v3027
        %3512 = vmatpush.bf16.msra.mxu0 %v3011
        %3513 = vmatpush.bf16.msra.mxu0 %v2995
        %3514 = vmatpush.bf16.msra.mxu0 %v2979
        %3515 = vmatmul.bf16.gmra.mxu0 %v3090
        %v3516 = vpop.f32.mrf.mxu0
        %v3517 = vadd.f32 %v3032, %v3516
        %v3518 = vpop.f32.mrf.mxu0
        %v3519 = vadd.f32 %v3037, %v3518
        %3520 = vmatmul.bf16.gmra.mxu0 %v3093
        %v3521 = vpop.f32.mrf.mxu0
        %v3522 = vadd.f32 %v3042, %v3521
        %v3523 = vpop.f32.mrf.mxu0
        %v3524 = vadd.f32 %v3047, %v3523
        %3525 = vmatmul.bf16.gmra.mxu0 %v3096
        %v3526 = vpop.f32.mrf.mxu0
        %v3527 = vadd.f32 %v3052, %v3526
        %v3528 = vpop.f32.mrf.mxu0
        %v3529 = vadd.f32 %v3057, %v3528
        %3530 = vmatmul.bf16.gmra.mxu0 %v3099
        %v3531 = vpop.f32.mrf.mxu0
        %v3532 = vadd.f32 %v3062, %v3531
        %v3533 = vpop.f32.mrf.mxu0
        %v3534 = vadd.f32 %v3067, %v3533
        %3535 = vdwg.mxu0
        %3536 = vmatpush.bf16.msra.mxu0 0
        %3537 = vmatpush.bf16.msra.mxu0 0
        %3538 = vmatpush.bf16.msra.mxu0 0
        %3539 = vmatpush.bf16.msra.mxu0 0
        %3540 = vmatpush.bf16.msra.mxu0 %v3028
        %3541 = vmatpush.bf16.msra.mxu0 %v3012
        %3542 = vmatpush.bf16.msra.mxu0 %v2996
        %3543 = vmatpush.bf16.msra.mxu0 %v2980
        %3544 = vmatmul.bf16.gmra.mxu0 %v3090
        %v3545 = vpop.f32.mrf.mxu0
        %v3546 = vadd.f32 %v3032, %v3545
        %v3547 = vpop.f32.mrf.mxu0
        %v3548 = vadd.f32 %v3037, %v3547
        %3549 = vmatmul.bf16.gmra.mxu0 %v3093
        %v3550 = vpop.f32.mrf.mxu0
        %v3551 = vadd.f32 %v3042, %v3550
        %v3552 = vpop.f32.mrf.mxu0
        %v3553 = vadd.f32 %v3047, %v3552
        %3554 = vmatmul.bf16.gmra.mxu0 %v3096
        %v3555 = vpop.f32.mrf.mxu0
        %v3556 = vadd.f32 %v3052, %v3555
        %v3557 = vpop.f32.mrf.mxu0
        %v3558 = vadd.f32 %v3057, %v3557
        %3559 = vmatmul.bf16.gmra.mxu0 %v3099
        %v3560 = vpop.f32.mrf.mxu0
        %v3561 = vadd.f32 %v3062, %v3560
        %v3562 = vpop.f32.mrf.mxu0
        %v3563 = vadd.f32 %v3067, %v3562
        %3564 = vdwg.mxu0
        %v3565 = vmax.f32 %v3111, 0.0
        %v3566 = vmax.f32 %v3140, 0.0
        %v3567 = vmax.f32 %v3169, 0.0
        %v3568 = vmax.f32 %v3198, 0.0
        %v3569 = vmax.f32 %v3227, 0.0
        %v3570 = vmax.f32 %v3256, 0.0
        %v3571 = vmax.f32 %v3285, 0.0
        %v3572 = vmax.f32 %v3314, 0.0
        %v3573 = vmax.f32 %v3343, 0.0
        %v3574 = vmax.f32 %v3372, 0.0
        %v3575 = vmax.f32 %v3401, 0.0
        %v3576 = vmax.f32 %v3430, 0.0
        %v3577 = vmax.f32 %v3459, 0.0
        %v3578 = vmax.f32 %v3488, 0.0
        %v3579 = vmax.f32 %v3517, 0.0
        %v3580 = vmax.f32 %v3546, 0.0
        %v3581 = vmax.f32 %v3113, 0.0
        %v3582 = vmax.f32 %v3142, 0.0
        %v3583 = vmax.f32 %v3171, 0.0
        %v3584 = vmax.f32 %v3200, 0.0
        %v3585 = vmax.f32 %v3229, 0.0
        %v3586 = vmax.f32 %v3258, 0.0
        %v3587 = vmax.f32 %v3287, 0.0
        %v3588 = vmax.f32 %v3316, 0.0
        %v3589 = vmax.f32 %v3345, 0.0
        %v3590 = vmax.f32 %v3374, 0.0
        %v3591 = vmax.f32 %v3403, 0.0
        %v3592 = vmax.f32 %v3432, 0.0
        %v3593 = vmax.f32 %v3461, 0.0
        %v3594 = vmax.f32 %v3490, 0.0
        %v3595 = vmax.f32 %v3519, 0.0
        %v3596 = vmax.f32 %v3548, 0.0
        %v3597 = vmax.f32 %v3116, 0.0
        %v3598 = vmax.f32 %v3145, 0.0
        %v3599 = vmax.f32 %v3174, 0.0
        %v3600 = vmax.f32 %v3203, 0.0
        %v3601 = vmax.f32 %v3232, 0.0
        %v3602 = vmax.f32 %v3261, 0.0
        %v3603 = vmax.f32 %v3290, 0.0
        %v3604 = vmax.f32 %v3319, 0.0
        %v3605 = vmax.f32 %v3348, 0.0
        %v3606 = vmax.f32 %v3377, 0.0
        %v3607 = vmax.f32 %v3406, 0.0
        %v3608 = vmax.f32 %v3435, 0.0
        %v3609 = vmax.f32 %v3464, 0.0
        %v3610 = vmax.f32 %v3493, 0.0
        %v3611 = vmax.f32 %v3522, 0.0
        %v3612 = vmax.f32 %v3551, 0.0
        %v3613 = vmax.f32 %v3118, 0.0
        %v3614 = vmax.f32 %v3147, 0.0
        %v3615 = vmax.f32 %v3176, 0.0
        %v3616 = vmax.f32 %v3205, 0.0
        %v3617 = vmax.f32 %v3234, 0.0
        %v3618 = vmax.f32 %v3263, 0.0
        %v3619 = vmax.f32 %v3292, 0.0
        %v3620 = vmax.f32 %v3321, 0.0
        %v3621 = vmax.f32 %v3350, 0.0
        %v3622 = vmax.f32 %v3379, 0.0
        %v3623 = vmax.f32 %v3408, 0.0
        %v3624 = vmax.f32 %v3437, 0.0
        %v3625 = vmax.f32 %v3466, 0.0
        %v3626 = vmax.f32 %v3495, 0.0
        %v3627 = vmax.f32 %v3524, 0.0
        %v3628 = vmax.f32 %v3553, 0.0
        %v3629 = vmax.f32 %v3121, 0.0
        %v3630 = vmax.f32 %v3150, 0.0
        %v3631 = vmax.f32 %v3179, 0.0
        %v3632 = vmax.f32 %v3208, 0.0
        %v3633 = vmax.f32 %v3237, 0.0
        %v3634 = vmax.f32 %v3266, 0.0
        %v3635 = vmax.f32 %v3295, 0.0
        %v3636 = vmax.f32 %v3324, 0.0
        %v3637 = vmax.f32 %v3353, 0.0
        %v3638 = vmax.f32 %v3382, 0.0
        %v3639 = vmax.f32 %v3411, 0.0
        %v3640 = vmax.f32 %v3440, 0.0
        %v3641 = vmax.f32 %v3469, 0.0
        %v3642 = vmax.f32 %v3498, 0.0
        %v3643 = vmax.f32 %v3527, 0.0
        %v3644 = vmax.f32 %v3556, 0.0
        %v3645 = vmax.f32 %v3123, 0.0
        %v3646 = vmax.f32 %v3152, 0.0
        %v3647 = vmax.f32 %v3181, 0.0
        %v3648 = vmax.f32 %v3210, 0.0
        %v3649 = vmax.f32 %v3239, 0.0
        %v3650 = vmax.f32 %v3268, 0.0
        %v3651 = vmax.f32 %v3297, 0.0
        %v3652 = vmax.f32 %v3326, 0.0
        %v3653 = vmax.f32 %v3355, 0.0
        %v3654 = vmax.f32 %v3384, 0.0
        %v3655 = vmax.f32 %v3413, 0.0
        %v3656 = vmax.f32 %v3442, 0.0
        %v3657 = vmax.f32 %v3471, 0.0
        %v3658 = vmax.f32 %v3500, 0.0
        %v3659 = vmax.f32 %v3529, 0.0
        %v3660 = vmax.f32 %v3558, 0.0
        %v3661 = vmax.f32 %v3126, 0.0
        %v3662 = vmax.f32 %v3155, 0.0
        %v3663 = vmax.f32 %v3184, 0.0
        %v3664 = vmax.f32 %v3213, 0.0
        %v3665 = vmax.f32 %v3242, 0.0
        %v3666 = vmax.f32 %v3271, 0.0
        %v3667 = vmax.f32 %v3300, 0.0
        %v3668 = vmax.f32 %v3329, 0.0
        %v3669 = vmax.f32 %v3358, 0.0
        %v3670 = vmax.f32 %v3387, 0.0
        %v3671 = vmax.f32 %v3416, 0.0
        %v3672 = vmax.f32 %v3445, 0.0
        %v3673 = vmax.f32 %v3474, 0.0
        %v3674 = vmax.f32 %v3503, 0.0
        %v3675 = vmax.f32 %v3532, 0.0
        %v3676 = vmax.f32 %v3561, 0.0
        %v3677 = vmax.f32 %v3128, 0.0
        %v3678 = vmax.f32 %v3157, 0.0
        %v3679 = vmax.f32 %v3186, 0.0
        %v3680 = vmax.f32 %v3215, 0.0
        %v3681 = vmax.f32 %v3244, 0.0
        %v3682 = vmax.f32 %v3273, 0.0
        %v3683 = vmax.f32 %v3302, 0.0
        %v3684 = vmax.f32 %v3331, 0.0
        %v3685 = vmax.f32 %v3360, 0.0
        %v3686 = vmax.f32 %v3389, 0.0
        %v3687 = vmax.f32 %v3418, 0.0
        %v3688 = vmax.f32 %v3447, 0.0
        %v3689 = vmax.f32 %v3476, 0.0
        %v3690 = vmax.f32 %v3505, 0.0
        %v3691 = vmax.f32 %v3534, 0.0
        %v3692 = vmax.f32 %v3563, 0.0
        %3694 = vset.pattern.permute.xlu0 0
        %3695 = vperm.xlu0 %3694, %v359
        %v3696 = vpop.permute.xlu0 %3695
        %3699 = vset.pattern.permute.xlu0 0
        %3700 = vperm.xlu0 %3699, %v360
        %v3701 = vpop.permute.xlu0 %3700
        %3704 = vset.pattern.permute.xlu0 0
        %3705 = vperm.xlu0 %3704, %v361
        %v3706 = vpop.permute.xlu0 %3705
        %3709 = vset.pattern.permute.xlu0 0
        %3710 = vperm.xlu0 %3709, %v362
        %v3711 = vpop.permute.xlu0 %3710
        %3714 = vset.pattern.permute.xlu0 0
        %3715 = vperm.xlu0 %3714, %v363
        %v3716 = vpop.permute.xlu0 %3715
        %3719 = vset.pattern.permute.xlu0 0
        %3720 = vperm.xlu0 %3719, %v364
        %v3721 = vpop.permute.xlu0 %3720
        %3724 = vset.pattern.permute.xlu0 0
        %3725 = vperm.xlu0 %3724, %v365
        %v3726 = vpop.permute.xlu0 %3725
        %3729 = vset.pattern.permute.xlu0 0
        %3730 = vperm.xlu0 %3729, %v366
        %v3731 = vpop.permute.xlu0 %3730
        %v3733 = vmul.f32 %v3565, %v3696
        %v3734 = vmul.f32 %v3566, %v3696
        %v3735 = vmul.f32 %v3567, %v3696
        %v3736 = vmul.f32 %v3568, %v3696
        %v3737 = vmul.f32 %v3569, %v3696
        %v3738 = vmul.f32 %v3570, %v3696
        %v3739 = vmul.f32 %v3571, %v3696
        %v3740 = vmul.f32 %v3572, %v3696
        %v3741 = vmul.f32 %v3573, %v3696
        %v3742 = vmul.f32 %v3574, %v3696
        %v3743 = vmul.f32 %v3575, %v3696
        %v3744 = vmul.f32 %v3576, %v3696
        %v3745 = vmul.f32 %v3577, %v3696
        %v3746 = vmul.f32 %v3578, %v3696
        %v3747 = vmul.f32 %v3579, %v3696
        %v3748 = vmul.f32 %v3580, %v3696
        %v3749 = vmul.f32 %v3581, %v3701
        %v3750 = vmul.f32 %v3582, %v3701
        %v3751 = vmul.f32 %v3583, %v3701
        %v3752 = vmul.f32 %v3584, %v3701
        %v3753 = vmul.f32 %v3585, %v3701
        %v3754 = vmul.f32 %v3586, %v3701
        %v3755 = vmul.f32 %v3587, %v3701
        %v3756 = vmul.f32 %v3588, %v3701
        %v3757 = vmul.f32 %v3589, %v3701
        %v3758 = vmul.f32 %v3590, %v3701
        %v3759 = vmul.f32 %v3591, %v3701
        %v3760 = vmul.f32 %v3592, %v3701
        %v3761 = vmul.f32 %v3593, %v3701
        %v3762 = vmul.f32 %v3594, %v3701
        %v3763 = vmul.f32 %v3595, %v3701
        %v3764 = vmul.f32 %v3596, %v3701
        %v3765 = vmul.f32 %v3597, %v3706
        %v3766 = vmul.f32 %v3598, %v3706
        %v3767 = vmul.f32 %v3599, %v3706
        %v3768 = vmul.f32 %v3600, %v3706
        %v3769 = vmul.f32 %v3601, %v3706
        %v3770 = vmul.f32 %v3602, %v3706
        %v3771 = vmul.f32 %v3603, %v3706
        %v3772 = vmul.f32 %v3604, %v3706
        %v3773 = vmul.f32 %v3605, %v3706
        %v3774 = vmul.f32 %v3606, %v3706
        %v3775 = vmul.f32 %v3607, %v3706
        %v3776 = vmul.f32 %v3608, %v3706
        %v3777 = vmul.f32 %v3609, %v3706
        %v3778 = vmul.f32 %v3610, %v3706
        %v3779 = vmul.f32 %v3611, %v3706
        %v3780 = vmul.f32 %v3612, %v3706
        %v3781 = vmul.f32 %v3613, %v3711
        %v3782 = vmul.f32 %v3614, %v3711
        %v3783 = vmul.f32 %v3615, %v3711
        %v3784 = vmul.f32 %v3616, %v3711
        %v3785 = vmul.f32 %v3617, %v3711
        %v3786 = vmul.f32 %v3618, %v3711
        %v3787 = vmul.f32 %v3619, %v3711
        %v3788 = vmul.f32 %v3620, %v3711
        %v3789 = vmul.f32 %v3621, %v3711
        %v3790 = vmul.f32 %v3622, %v3711
        %v3791 = vmul.f32 %v3623, %v3711
        %v3792 = vmul.f32 %v3624, %v3711
        %v3793 = vmul.f32 %v3625, %v3711
        %v3794 = vmul.f32 %v3626, %v3711
        %v3795 = vmul.f32 %v3627, %v3711
        %v3796 = vmul.f32 %v3628, %v3711
        %v3797 = vmul.f32 %v3629, %v3716
        %v3798 = vmul.f32 %v3630, %v3716
        %v3799 = vmul.f32 %v3631, %v3716
        %v3800 = vmul.f32 %v3632, %v3716
        %v3801 = vmul.f32 %v3633, %v3716
        %v3802 = vmul.f32 %v3634, %v3716
        %v3803 = vmul.f32 %v3635, %v3716
        %v3804 = vmul.f32 %v3636, %v3716
        %v3805 = vmul.f32 %v3637, %v3716
        %v3806 = vmul.f32 %v3638, %v3716
        %v3807 = vmul.f32 %v3639, %v3716
        %v3808 = vmul.f32 %v3640, %v3716
        %v3809 = vmul.f32 %v3641, %v3716
        %v3810 = vmul.f32 %v3642, %v3716
        %v3811 = vmul.f32 %v3643, %v3716
        %v3812 = vmul.f32 %v3644, %v3716
        %v3813 = vmul.f32 %v3645, %v3721
        %v3814 = vmul.f32 %v3646, %v3721
        %v3815 = vmul.f32 %v3647, %v3721
        %v3816 = vmul.f32 %v3648, %v3721
        %v3817 = vmul.f32 %v3649, %v3721
        %v3818 = vmul.f32 %v3650, %v3721
        %v3819 = vmul.f32 %v3651, %v3721
        %v3820 = vmul.f32 %v3652, %v3721
        %v3821 = vmul.f32 %v3653, %v3721
        %v3822 = vmul.f32 %v3654, %v3721
        %v3823 = vmul.f32 %v3655, %v3721
        %v3824 = vmul.f32 %v3656, %v3721
        %v3825 = vmul.f32 %v3657, %v3721
        %v3826 = vmul.f32 %v3658, %v3721
        %v3827 = vmul.f32 %v3659, %v3721
        %v3828 = vmul.f32 %v3660, %v3721
        %v3829 = vmul.f32 %v3661, %v3726
        %v3830 = vmul.f32 %v3662, %v3726
        %v3831 = vmul.f32 %v3663, %v3726
        %v3832 = vmul.f32 %v3664, %v3726
        %v3833 = vmul.f32 %v3665, %v3726
        %v3834 = vmul.f32 %v3666, %v3726
        %v3835 = vmul.f32 %v3667, %v3726
        %v3836 = vmul.f32 %v3668, %v3726
        %v3837 = vmul.f32 %v3669, %v3726
        %v3838 = vmul.f32 %v3670, %v3726
        %v3839 = vmul.f32 %v3671, %v3726
        %v3840 = vmul.f32 %v3672, %v3726
        %v3841 = vmul.f32 %v3673, %v3726
        %v3842 = vmul.f32 %v3674, %v3726
        %v3843 = vmul.f32 %v3675, %v3726
        %v3844 = vmul.f32 %v3676, %v3726
        %v3845 = vmul.f32 %v3677, %v3731
        %v3846 = vmul.f32 %v3678, %v3731
        %v3847 = vmul.f32 %v3679, %v3731
        %v3848 = vmul.f32 %v3680, %v3731
        %v3849 = vmul.f32 %v3681, %v3731
        %v3850 = vmul.f32 %v3682, %v3731
        %v3851 = vmul.f32 %v3683, %v3731
        %v3852 = vmul.f32 %v3684, %v3731
        %v3853 = vmul.f32 %v3685, %v3731
        %v3854 = vmul.f32 %v3686, %v3731
        %v3855 = vmul.f32 %v3687, %v3731
        %v3856 = vmul.f32 %v3688, %v3731
        %v3857 = vmul.f32 %v3689, %v3731
        %v3858 = vmul.f32 %v3690, %v3731
        %v3859 = vmul.f32 %v3691, %v3731
        %v3860 = vmul.f32 %v3692, %v3731
        %v3861 = vadd.f32 %v3733, %v3749
        %v3862 = vadd.f32 %v3861, %v3765
        %v3863 = vadd.f32 %v3862, %v3781
        %v3864 = vadd.f32 %v3863, %v3797
        %v3865 = vadd.f32 %v3864, %v3813
        %v3866 = vadd.f32 %v3865, %v3829
        %v3867 = vadd.f32 %v3866, %v3845
        %v3868 = vrot.slane %v3867, 4
        %v3869 = vadd.f32 %v3867, %v3868
        %v3870 = vrot.slane %v3869, 2
        %v3871 = vadd.f32 %v3869, %v3870
        %v3872 = vrot.slane %v3871, 1
        %v3873 = vadd.f32 %v3871, %v3872
        %v3874 = vadd.f32 %v3734, %v3750
        %v3875 = vadd.f32 %v3874, %v3766
        %v3876 = vadd.f32 %v3875, %v3782
        %v3877 = vadd.f32 %v3876, %v3798
        %v3878 = vadd.f32 %v3877, %v3814
        %v3879 = vadd.f32 %v3878, %v3830
        %v3880 = vadd.f32 %v3879, %v3846
        %v3881 = vrot.slane %v3880, 4
        %v3882 = vadd.f32 %v3880, %v3881
        %v3883 = vrot.slane %v3882, 2
        %v3884 = vadd.f32 %v3882, %v3883
        %v3885 = vrot.slane %v3884, 1
        %v3886 = vadd.f32 %v3884, %v3885
        %v3887 = vadd.f32 %v3735, %v3751
        %v3888 = vadd.f32 %v3887, %v3767
        %v3889 = vadd.f32 %v3888, %v3783
        %v3890 = vadd.f32 %v3889, %v3799
        %v3891 = vadd.f32 %v3890, %v3815
        %v3892 = vadd.f32 %v3891, %v3831
        %v3893 = vadd.f32 %v3892, %v3847
        %v3894 = vrot.slane %v3893, 4
        %v3895 = vadd.f32 %v3893, %v3894
        %v3896 = vrot.slane %v3895, 2
        %v3897 = vadd.f32 %v3895, %v3896
        %v3898 = vrot.slane %v3897, 1
        %v3899 = vadd.f32 %v3897, %v3898
        %v3900 = vadd.f32 %v3736, %v3752
        %v3901 = vadd.f32 %v3900, %v3768
        %v3902 = vadd.f32 %v3901, %v3784
        %v3903 = vadd.f32 %v3902, %v3800
        %v3904 = vadd.f32 %v3903, %v3816
        %v3905 = vadd.f32 %v3904, %v3832
        %v3906 = vadd.f32 %v3905, %v3848
        %v3907 = vrot.slane %v3906, 4
        %v3908 = vadd.f32 %v3906, %v3907
        %v3909 = vrot.slane %v3908, 2
        %v3910 = vadd.f32 %v3908, %v3909
        %v3911 = vrot.slane %v3910, 1
        %v3912 = vadd.f32 %v3910, %v3911
        %v3913 = vadd.f32 %v3737, %v3753
        %v3914 = vadd.f32 %v3913, %v3769
        %v3915 = vadd.f32 %v3914, %v3785
        %v3916 = vadd.f32 %v3915, %v3801
        %v3917 = vadd.f32 %v3916, %v3817
        %v3918 = vadd.f32 %v3917, %v3833
        %v3919 = vadd.f32 %v3918, %v3849
        %v3920 = vrot.slane %v3919, 4
        %v3921 = vadd.f32 %v3919, %v3920
        %v3922 = vrot.slane %v3921, 2
        %v3923 = vadd.f32 %v3921, %v3922
        %v3924 = vrot.slane %v3923, 1
        %v3925 = vadd.f32 %v3923, %v3924
        %v3926 = vadd.f32 %v3738, %v3754
        %v3927 = vadd.f32 %v3926, %v3770
        %v3928 = vadd.f32 %v3927, %v3786
        %v3929 = vadd.f32 %v3928, %v3802
        %v3930 = vadd.f32 %v3929, %v3818
        %v3931 = vadd.f32 %v3930, %v3834
        %v3932 = vadd.f32 %v3931, %v3850
        %v3933 = vrot.slane %v3932, 4
        %v3934 = vadd.f32 %v3932, %v3933
        %v3935 = vrot.slane %v3934, 2
        %v3936 = vadd.f32 %v3934, %v3935
        %v3937 = vrot.slane %v3936, 1
        %v3938 = vadd.f32 %v3936, %v3937
        %v3939 = vadd.f32 %v3739, %v3755
        %v3940 = vadd.f32 %v3939, %v3771
        %v3941 = vadd.f32 %v3940, %v3787
        %v3942 = vadd.f32 %v3941, %v3803
        %v3943 = vadd.f32 %v3942, %v3819
        %v3944 = vadd.f32 %v3943, %v3835
        %v3945 = vadd.f32 %v3944, %v3851
        %v3946 = vrot.slane %v3945, 4
        %v3947 = vadd.f32 %v3945, %v3946
        %v3948 = vrot.slane %v3947, 2
        %v3949 = vadd.f32 %v3947, %v3948
        %v3950 = vrot.slane %v3949, 1
        %v3951 = vadd.f32 %v3949, %v3950
        %v3952 = vadd.f32 %v3740, %v3756
        %v3953 = vadd.f32 %v3952, %v3772
        %v3954 = vadd.f32 %v3953, %v3788
        %v3955 = vadd.f32 %v3954, %v3804
        %v3956 = vadd.f32 %v3955, %v3820
        %v3957 = vadd.f32 %v3956, %v3836
        %v3958 = vadd.f32 %v3957, %v3852
        %v3959 = vrot.slane %v3958, 4
        %v3960 = vadd.f32 %v3958, %v3959
        %v3961 = vrot.slane %v3960, 2
        %v3962 = vadd.f32 %v3960, %v3961
        %v3963 = vrot.slane %v3962, 1
        %v3964 = vadd.f32 %v3962, %v3963
        %v3965 = vadd.f32 %v3741, %v3757
        %v3966 = vadd.f32 %v3965, %v3773
        %v3967 = vadd.f32 %v3966, %v3789
        %v3968 = vadd.f32 %v3967, %v3805
        %v3969 = vadd.f32 %v3968, %v3821
        %v3970 = vadd.f32 %v3969, %v3837
        %v3971 = vadd.f32 %v3970, %v3853
        %v3972 = vrot.slane %v3971, 4
        %v3973 = vadd.f32 %v3971, %v3972
        %v3974 = vrot.slane %v3973, 2
        %v3975 = vadd.f32 %v3973, %v3974
        %v3976 = vrot.slane %v3975, 1
        %v3977 = vadd.f32 %v3975, %v3976
        %v3978 = vadd.f32 %v3742, %v3758
        %v3979 = vadd.f32 %v3978, %v3774
        %v3980 = vadd.f32 %v3979, %v3790
        %v3981 = vadd.f32 %v3980, %v3806
        %v3982 = vadd.f32 %v3981, %v3822
        %v3983 = vadd.f32 %v3982, %v3838
        %v3984 = vadd.f32 %v3983, %v3854
        %v3985 = vrot.slane %v3984, 4
        %v3986 = vadd.f32 %v3984, %v3985
        %v3987 = vrot.slane %v3986, 2
        %v3988 = vadd.f32 %v3986, %v3987
        %v3989 = vrot.slane %v3988, 1
        %v3990 = vadd.f32 %v3988, %v3989
        %v3991 = vadd.f32 %v3743, %v3759
        %v3992 = vadd.f32 %v3991, %v3775
        %v3993 = vadd.f32 %v3992, %v3791
        %v3994 = vadd.f32 %v3993, %v3807
        %v3995 = vadd.f32 %v3994, %v3823
        %v3996 = vadd.f32 %v3995, %v3839
        %v3997 = vadd.f32 %v3996, %v3855
        %v3998 = vrot.slane %v3997, 4
        %v3999 = vadd.f32 %v3997, %v3998
        %v4000 = vrot.slane %v3999, 2
        %v4001 = vadd.f32 %v3999, %v4000
        %v4002 = vrot.slane %v4001, 1
        %v4003 = vadd.f32 %v4001, %v4002
        %v4004 = vadd.f32 %v3744, %v3760
        %v4005 = vadd.f32 %v4004, %v3776
        %v4006 = vadd.f32 %v4005, %v3792
        %v4007 = vadd.f32 %v4006, %v3808
        %v4008 = vadd.f32 %v4007, %v3824
        %v4009 = vadd.f32 %v4008, %v3840
        %v4010 = vadd.f32 %v4009, %v3856
        %v4011 = vrot.slane %v4010, 4
        %v4012 = vadd.f32 %v4010, %v4011
        %v4013 = vrot.slane %v4012, 2
        %v4014 = vadd.f32 %v4012, %v4013
        %v4015 = vrot.slane %v4014, 1
        %v4016 = vadd.f32 %v4014, %v4015
        %v4017 = vadd.f32 %v3745, %v3761
        %v4018 = vadd.f32 %v4017, %v3777
        %v4019 = vadd.f32 %v4018, %v3793
        %v4020 = vadd.f32 %v4019, %v3809
        %v4021 = vadd.f32 %v4020, %v3825
        %v4022 = vadd.f32 %v4021, %v3841
        %v4023 = vadd.f32 %v4022, %v3857
        %v4024 = vrot.slane %v4023, 4
        %v4025 = vadd.f32 %v4023, %v4024
        %v4026 = vrot.slane %v4025, 2
        %v4027 = vadd.f32 %v4025, %v4026
        %v4028 = vrot.slane %v4027, 1
        %v4029 = vadd.f32 %v4027, %v4028
        %v4030 = vadd.f32 %v3746, %v3762
        %v4031 = vadd.f32 %v4030, %v3778
        %v4032 = vadd.f32 %v4031, %v3794
        %v4033 = vadd.f32 %v4032, %v3810
        %v4034 = vadd.f32 %v4033, %v3826
        %v4035 = vadd.f32 %v4034, %v3842
        %v4036 = vadd.f32 %v4035, %v3858
        %v4037 = vrot.slane %v4036, 4
        %v4038 = vadd.f32 %v4036, %v4037
        %v4039 = vrot.slane %v4038, 2
        %v4040 = vadd.f32 %v4038, %v4039
        %v4041 = vrot.slane %v4040, 1
        %v4042 = vadd.f32 %v4040, %v4041
        %v4043 = vadd.f32 %v3747, %v3763
        %v4044 = vadd.f32 %v4043, %v3779
        %v4045 = vadd.f32 %v4044, %v3795
        %v4046 = vadd.f32 %v4045, %v3811
        %v4047 = vadd.f32 %v4046, %v3827
        %v4048 = vadd.f32 %v4047, %v3843
        %v4049 = vadd.f32 %v4048, %v3859
        %v4050 = vrot.slane %v4049, 4
        %v4051 = vadd.f32 %v4049, %v4050
        %v4052 = vrot.slane %v4051, 2
        %v4053 = vadd.f32 %v4051, %v4052
        %v4054 = vrot.slane %v4053, 1
        %v4055 = vadd.f32 %v4053, %v4054
        %v4056 = vadd.f32 %v3748, %v3764
        %v4057 = vadd.f32 %v4056, %v3780
        %v4058 = vadd.f32 %v4057, %v3796
        %v4059 = vadd.f32 %v4058, %v3812
        %v4060 = vadd.f32 %v4059, %v3828
        %v4061 = vadd.f32 %v4060, %v3844
        %v4062 = vadd.f32 %v4061, %v3860
        %v4063 = vrot.slane %v4062, 4
        %v4064 = vadd.f32 %v4062, %v4063
        %v4065 = vrot.slane %v4064, 2
        %v4066 = vadd.f32 %v4064, %v4065
        %v4067 = vrot.slane %v4066, 1
        %v4068 = vadd.f32 %v4066, %v4067
        %4070 = vset.pattern.permute.xlu0 0
        %4071 = vperm.xlu0 %4070, %v357
        %v4072 = vpop.permute.xlu0 %4071
        %v4074 = vadd.f32 %v3873, %v4072
        %v4075 = vadd.f32 %v3886, %v4072
        %v4076 = vadd.f32 %v3899, %v4072
        %v4077 = vadd.f32 %v3912, %v4072
        %v4078 = vadd.f32 %v3925, %v4072
        %v4079 = vadd.f32 %v3938, %v4072
        %v4080 = vadd.f32 %v3951, %v4072
        %v4081 = vadd.f32 %v3964, %v4072
        %v4082 = vadd.f32 %v3977, %v4072
        %v4083 = vadd.f32 %v3990, %v4072
        %v4084 = vadd.f32 %v4003, %v4072
        %v4085 = vadd.f32 %v4016, %v4072
        %v4086 = vadd.f32 %v4029, %v4072
        %v4087 = vadd.f32 %v4042, %v4072
        %v4088 = vadd.f32 %v4055, %v4072
        %v4089 = vadd.f32 %v4068, %v4072
        %v4090 = vtanh.pop %v4074
        %v4091 = vtanh.pop %v4075
        %v4092 = vtanh.pop %v4076
        %v4093 = vtanh.pop %v4077
        %v4094 = vtanh.pop %v4078
        %v4095 = vtanh.pop %v4079
        %v4096 = vtanh.pop %v4080
        %v4097 = vtanh.pop %v4081
        %v4098 = vtanh.pop %v4082
        %v4099 = vtanh.pop %v4083
        %v4100 = vtanh.pop %v4084
        %v4101 = vtanh.pop %v4085
        %v4102 = vtanh.pop %v4086
        %v4103 = vtanh.pop %v4087
        %v4104 = vtanh.pop %v4088
        %v4105 = vtanh.pop %v4089
        %v4122 = vrot.slane %v4091, 7
        %v4123 = vrot.slane %v4092, 6
        %v4124 = vrot.slane %v4093, 5
        %v4125 = vrot.slane %v4094, 4
        %v4126 = vrot.slane %v4095, 3
        %v4127 = vrot.slane %v4096, 2
        %v4128 = vrot.slane %v4097, 1
        %v4129 = vrot.slane %v4099, 7
        %v4130 = vrot.slane %v4100, 6
        %v4131 = vrot.slane %v4101, 5
        %v4132 = vrot.slane %v4102, 4
        %v4133 = vrot.slane %v4103, 3
        %v4134 = vrot.slane %v4104, 2
        %v4135 = vrot.slane %v4105, 1
        %vm4136 = vcmask 1040384
        %v4137 = vsel %vm4136, %v4090, %v4122
        %vm4138 = vcmask 1042434
        %v4139 = vsel %vm4138, %v4123, %v4124
        %vm4140 = vcmask 1041408
        %v4141 = vsel %vm4140, %v4137, %v4139
        %vm4142 = vcmask 1044484
        %v4143 = vsel %vm4142, %v4125, %v4126
        %vm4144 = vcmask 1046534
        %v4145 = vsel %vm4144, %v4127, %v4128
        %vm4146 = vcmask 1045508
        %v4147 = vsel %vm4146, %v4143, %v4145
        %vm4148 = vcmask 1043456
        %v4149 = vsel %vm4148, %v4141, %v4147
        %v4150 = vsel %vm4136, %v4098, %v4129
        %v4151 = vsel %vm4138, %v4130, %v4131
        %v4152 = vsel %vm4140, %v4150, %v4151
        %v4153 = vsel %vm4142, %v4132, %v4133
        %v4154 = vsel %vm4144, %v4134, %v4135
        %v4155 = vsel %vm4146, %v4153, %v4154
        %v4156 = vsel %vm4148, %v4152, %v4155
        %4159 = vst [vmem:[%s250] sm:$0xff] %v4149
        %4160 = vst [vmem:[%s250 + $0x8] sm:$0xff] %v4156
        %s4161 = sand.u32 %s93, 1
        %s4162 = scalar_lea.sflag [#allocation4], %s4161
        %s4163 = sand.u32 %s93, 1
        %s4164 = smul.addr %s4163, 16
        %s4165 = scalar_lea.vmem [#allocation3], %s4164
        // Predicated region
        $region56: #{_decoder_forward_impl.1} parent=50 // pred_check
          %p4166 = pneg %p103
        $region57: #{_decoder_forward_impl.1} parent=50 // pred_check_branch
          %4168 = sbr.rel (%p4166) target = $region59
        $region58: #{_decoder_forward_impl.1} parent=50 // pred_region
          %s4169 = smul.u32 16, %s17
          %4171 = vsyncadd %s4162, 0
          %s4172 = scalar_lea.hbm %s3, %s4169
          %s4174 = sshll.u32 %s4165, 4
          %s4175 = int_to_ptr.vmem [resolvable:$true] %s4174
          %s4176 = sshll.u32 %s4172, 4
          %s4177 = int_to_ptr.hbm [resolvable:$true] %s4176
          %4179 = dma.vmem_to_hbm [thread:$0]  %s4175, 256, %s4177, %s4162
        $region59: #{_decoder_forward_impl.1} parent=50 // pred_fallthru
          _
      $region51: #{_decoder_forward_impl.1} parent=5 // pred_fallthru
        _
      %p4180 = scmp.le.s32.totalorder 2, %s12
      // Predicated region
      $region60: #{_decoder_forward_impl.1} parent=5 // pred_check
        %p4181 = pneg %p4180
      $region61: #{_decoder_forward_impl.1} parent=5 // pred_check_branch
        %4183 = sbr.rel (%p4181) target = $region63
      $region62: #{_decoder_forward_impl.1} parent=5 // pred_region
        %s4184 = ssub.s32 %s12, 2
        // Predicated region
        $region64: #{_decoder_forward_impl.1} parent=62 // pred_check
          %p4185 = pneg %p109
        $region65: #{_decoder_forward_impl.1} parent=62 // pred_check_branch
          %4187 = sbr.rel (%p4185) target = $region67
        $region66: #{_decoder_forward_impl.1} parent=62 // pred_region
          %s4188 = sand.u32 %s94, 1
          %s4189 = scalar_lea.sflag [#allocation4], %s4188
          %s4190 = sand.u32 %s94, 1
          %s4191 = smul.addr %s4190, 16
          %s4192 = scalar_lea.vmem [#allocation3], %s4191
          %4194 = dma.done %s4189, 256
        $region67: #{_decoder_forward_impl.1} parent=62 // pred_fallthru
          _
      $region63: #{_decoder_forward_impl.1} parent=5 // pred_fallthru
        _
    $region6: #{_decoder_forward_impl.1} parent=1 // loop_footer
      %s16 = sadd.s32 1, %s12
    $region7: #{_decoder_forward_impl.1} parent=1 // loop_footer_branch
      %11 = sbr.rel target = $region3
    $region8: #{_decoder_forward_impl.1} parent=1 // loop_exit
      _
    %4195 = vsyncpa [#allocation4], 1
    %s4196 = scalar_lea.sflag [#allocation4], 1
    %4197 = vsyncpa %s4196, 1

</llo_original>
